<compile_context>
chip_gen: v7x
topology: tpu7x:2x2x1
jax: 0.10.0
libtpu: 0.0.40
codegen_flags: <defaults>
</compile_context>

<pallas_src>
import math
from functools import partial

import jax
import jax.numpy as jnp
from jax.experimental import pallas as pl
from jax.experimental.pallas import tpu as pltpu  # noqa: F401 (hardware namespace)

LN_EPS = 1e-5          # nn.LayerNorm default
MASK_NEG = -1e30       # finite stand-in for -inf in masked_fill (avoids NaN rows)


# ----------------------------- in-kernel math helpers -----------------------------

def _layer_norm(x, gamma, beta):
    mu = jnp.mean(x, axis=-1, keepdims=True)
    xc = x - mu
    var = jnp.mean(xc * xc, axis=-1, keepdims=True)
    return xc * jax.lax.rsqrt(var + LN_EPS) * gamma + beta


def _gelu_tanh(x):
    # tanh-approx GELU runs on the EUP (free bundle slot) instead of a chained
    # VALU erf polynomial.
    # TODO(synk): nn.GELU() default is the exact erf form; tanh approx deviates
    # by up to ~1e-3 absolute.
    c = 0.7978845608028654  # sqrt(2/pi)
    return 0.5 * x * (1.0 + jnp.tanh(c * (x + 0.044715 * x * x * x)))


# ----------------------------- fused Pallas kernel -----------------------------

def fused_encoder_kernel(x_ref, amask_ref,
                         ln1g_ref, ln1b_ref, wqkv_ref, wo_ref, bo_ref,
                         ln2g_ref, ln2b_ref, w1_ref, b1_ref, w2_ref, b2_ref,
                         lnfg_ref, lnfb_ref, wcls_ref, bcls_ref,
                         o_ref, *, num_heads):
    B, S, E = x_ref.shape
    L = wqkv_ref.shape[0]
    H = num_heads
    dh = E // H
    scale = 1.0 / math.sqrt(dh)

    x = x_ref[...].reshape(B * S, E)          # f32 activations, VMEM/vreg resident
    amask = amask_ref[...]                    # (B, S, S) additive mask (0 / -1e30)

    # Unrolled layer loop (L is small and static -> full LLO scheduler visibility).
    for l in range(L):
        # ---- LayerNorm 1 + fused QKV projection ----
        xn = _layer_norm(x, ln1g_ref[l], ln1b_ref[l])
        qkv = jnp.dot(xn.astype(jnp.bfloat16), wqkv_ref[l],
                      preferred_element_type=jnp.float32)           # (B*S, 3E) f32
        qkv_bf = qkv.astype(jnp.bfloat16)                            # cast once

        # ---- multi-head self-attention (each head batched over B) ----
        wo = wo_ref[l]                                               # (E, E) bf16
        attn_out = jnp.zeros((B * S, E), jnp.float32)
        for h in range(H):
            lo = h * dh
            qh = qkv_bf[:, lo:lo + dh].reshape(B, S, dh)
            kh = qkv_bf[:, E + lo:E + lo + dh].reshape(B, S, dh)
            vh = qkv_bf[:, 2 * E + lo:2 * E + lo + dh].reshape(B, S, dh)
            s = jnp.einsum('bqd,bkd->bqk', qh, kh,
                           preferred_element_type=jnp.float32) * scale
            s = s + amask                                            # masked_fill
            m = jnp.max(s, axis=-1, keepdims=True)
            e = jnp.exp(s - m)
            p = e * pl.reciprocal(jnp.sum(e, axis=-1, keepdims=True), approx=True)
            # attention dropout is identity in eval mode
            ctx = jnp.einsum('bqk,bkd->bqd', p.astype(jnp.bfloat16), vh,
                             preferred_element_type=jnp.float32)     # (B, S, dh)
            # concat(heads) @ Wo == sum_h ctx_h @ Wo[h*dh:(h+1)*dh, :]  (no concat)
            attn_out = attn_out + jnp.dot(
                ctx.reshape(B * S, dh).astype(jnp.bfloat16),
                wo[lo:lo + dh, :], preferred_element_type=jnp.float32)

        h1 = x + attn_out + bo_ref[l]                                # residual 1

        # ---- LayerNorm 2 + GELU feed-forward ----
        h1n = _layer_norm(h1, ln2g_ref[l], ln2b_ref[l])
        f = jnp.dot(h1n.astype(jnp.bfloat16), w1_ref[l],
                    preferred_element_type=jnp.float32) + b1_ref[l]
        f = _gelu_tanh(f)
        f = jnp.dot(f.astype(jnp.bfloat16), w2_ref[l],
                    preferred_element_type=jnp.float32) + b2_ref[l]
        # FFN dropout is identity in eval mode
        x = h1 + f                                                   # residual 2

    # ---- final LayerNorm (per-token, so CLS-only is equivalent) + classifier ----
    cls = x.reshape(B, S, E)[:, 0, :]                                # (B, E)
    cls = _layer_norm(cls, lnfg_ref[0], lnfb_ref[0])
    # classifier dropout is identity in eval mode
    o_ref[...] = (jnp.dot(cls.astype(jnp.bfloat16), wcls_ref[...],
                          preferred_element_type=jnp.float32)
                  + bcls_ref[0]).astype(o_ref.dtype)


# ----------------------------- wrapper -----------------------------

def encoder_for_sequence_classification(params, input_ids, mask, cfg):
    # Token embedding lookup (gather) stays in plain JAX.
    x = params["embedding"][input_ids]                               # (B, S, E) f32
    # Additive mask: 0 where valid, large-negative where mask == 0.
    add_mask = jnp.where(mask == 0, jnp.float32(MASK_NEG), jnp.float32(0.0))

    B = x.shape[0]
    # Single fused pallas_call: whole model, single grid point, everything in VMEM.
    # TODO(synk): for larger B on v7x, add a leading "parallel" batch grid axis so
    # both TensorCores are used.
    return pl.pallas_call(
        partial(fused_encoder_kernel, num_heads=cfg["num_attention_heads"]),
        out_shape=jax.ShapeDtypeStruct((B, cfg["num_labels"]), jnp.float32),
    )(x, add_mask,
      params["ln1_g"], params["ln1_b"], params["wqkv"], params["wo"], params["bo"],
      params["ln2_g"], params["ln2_b"], params["w1"], params["b1"],
      params["w2"], params["b2"],
      params["ln_f_g"], params["ln_f_b"], params["w_cls"], params["b_cls"])


# ----------------------------- deterministic parameter init -----------------------------

def init_params(key, cfg, vocab_size):
    E = cfg["embed_size"]
    F = cfg["ff_intermediate_size"]
    C = cfg["num_labels"]
    L = cfg["num_encoderblocks"]

    ks = jax.random.split(key, 6)
    nrm = lambda k, shape, dt: (0.02 * jax.random.normal(k, shape, jnp.float32)).astype(dt)

    return dict(
        embedding=nrm(ks[0], (vocab_size, E), jnp.float32),
        # Per-layer weights stacked on a leading layer axis; MXU operands stored bf16.
        ln1_g=jnp.ones((L, E), jnp.float32), ln1_b=jnp.zeros((L, E), jnp.float32),
        # wqkv columns: [Wq heads | Wk heads | Wv heads], each head a dh-wide block.
        wqkv=nrm(ks[1], (L, E, 3 * E), jnp.bfloat16),
        wo=nrm(ks[2], (L, E, E), jnp.bfloat16), bo=jnp.zeros((L, E), jnp.float32),
        ln2_g=jnp.ones((L, E), jnp.float32), ln2_b=jnp.zeros((L, E), jnp.float32),
        w1=nrm(ks[3], (L, E, F), jnp.bfloat16), b1=jnp.zeros((L, F), jnp.float32),
        w2=nrm(ks[4], (L, F, E), jnp.bfloat16), b2=jnp.zeros((L, E), jnp.float32),
        ln_f_g=jnp.ones((1, E), jnp.float32), ln_f_b=jnp.zeros((1, E), jnp.float32),
        w_cls=nrm(ks[5], (E, C), jnp.bfloat16), b_cls=jnp.zeros((1, C), jnp.float32),
    )


# ----------------------------- main -----------------------------

if __name__ == "__main__":
    cfg = dict(
        embed_size=32,
        num_attention_heads=4,
        ff_intermediate_size=64,
        num_encoderblocks=2,
        dropout_prob=0.1,   # eval mode -> all dropouts are identity
        num_labels=4,
        edu=False,
    )
    B, S, VOCAB = 2, 8, 50

    root = jax.random.PRNGKey(0)
    k_params, k_ids = jax.random.split(root)
    params = init_params(k_params, cfg, VOCAB)

    input_ids = jax.random.randint(k_ids, (B, S), 0, VOCAB)
    # TODO(synk): the reference forward never constructs a mask; use the
    # all-positions-valid mask (the additive mask becomes all zeros).
    mask = jnp.ones((B, S, S), jnp.float32)

    logits = encoder_for_sequence_classification(params, input_ids, mask, cfg)
    jax.block_until_ready(logits)
    assert logits.shape == (B, cfg["num_labels"])
    assert bool(jnp.all(jnp.isfinite(logits)))
    print("KERNEL_OK")
</pallas_src>

<mosaic_0001>
module attributes {stable_mosaic.version = 11 : i64} {
  func.func @fused_encoder_kernel(%arg0: memref<2x8x32xf32, #tpu.memory_space<vmem>>, %arg1: memref<2x8x8xf32, #tpu.memory_space<vmem>>, %arg2: memref<2x32xf32, #tpu.memory_space<vmem>>, %arg3: memref<2x32xf32, #tpu.memory_space<vmem>>, %arg4: memref<2x32x96xbf16, #tpu.memory_space<vmem>>, %arg5: memref<2x32x32xbf16, #tpu.memory_space<vmem>>, %arg6: memref<2x32xf32, #tpu.memory_space<vmem>>, %arg7: memref<2x32xf32, #tpu.memory_space<vmem>>, %arg8: memref<2x32xf32, #tpu.memory_space<vmem>>, %arg9: memref<2x32x64xbf16, #tpu.memory_space<vmem>>, %arg10: memref<2x64xf32, #tpu.memory_space<vmem>>, %arg11: memref<2x64x32xbf16, #tpu.memory_space<vmem>>, %arg12: memref<2x32xf32, #tpu.memory_space<vmem>>, %arg13: memref<1x32xf32, #tpu.memory_space<vmem>>, %arg14: memref<1x32xf32, #tpu.memory_space<vmem>>, %arg15: memref<32x4xbf16, #tpu.memory_space<vmem>>, %arg16: memref<1x4xf32, #tpu.memory_space<vmem>>, %arg17: memref<2x4xf32, #tpu.memory_space<vmem>>) attributes {dimension_semantics = [], scalar_prefetch = 0 : i64, scratch_operands = 0 : i64, tpu.core_type = #tpu.core_type<tc>} {
    %c0 = arith.constant 0 : index
    %c0_0 = arith.constant 0 : index
    %c0_1 = arith.constant 0 : index
    %0 = vector.load %arg0[%c0, %c0_0, %c0_1] : memref<2x8x32xf32, #tpu.memory_space<vmem>>, vector<2x8x32xf32>
    %1 = vector.shape_cast %0 : vector<2x8x32xf32> to vector<16x32xf32>
    %c0_2 = arith.constant 0 : index
    %c0_3 = arith.constant 0 : index
    %c0_4 = arith.constant 0 : index
    %2 = vector.load %arg1[%c0_2, %c0_3, %c0_4] : memref<2x8x8xf32, #tpu.memory_space<vmem>>, vector<2x8x8xf32>
    %c0_5 = arith.constant 0 : index
    %c0_6 = arith.constant 0 : index
    %3 = vector.load %arg2[%c0_5, %c0_6] : memref<2x32xf32, #tpu.memory_space<vmem>>, vector<1x32xf32>
    %4 = vector.shape_cast %3 : vector<1x32xf32> to vector<32xf32>
    %c0_7 = arith.constant 0 : index
    %c0_8 = arith.constant 0 : index
    %5 = vector.load %arg3[%c0_7, %c0_8] : memref<2x32xf32, #tpu.memory_space<vmem>>, vector<1x32xf32>
    %6 = vector.shape_cast %5 : vector<1x32xf32> to vector<32xf32>
    %cst = arith.constant dense<0.000000e+00> : vector<16xf32>
    %7 = vector.multi_reduction <add>, %1, %cst [1] : vector<16x32xf32> to vector<16xf32>
    %8 = vector.shape_cast %7 : vector<16xf32> to vector<16x1xf32>
    %cst_9 = arith.constant 3.200000e+01 : f32
    %9 = vector.broadcast %cst_9 : f32 to vector<16x1xf32>
    %10 = arith.divf %8, %9 : vector<16x1xf32>
    %11 = vector.broadcast %10 : vector<16x1xf32> to vector<16x32xf32>
    %12 = arith.subf %1, %11 : vector<16x32xf32>
    %13 = arith.mulf %12, %12 : vector<16x32xf32>
    %cst_10 = arith.constant dense<0.000000e+00> : vector<16xf32>
    %14 = vector.multi_reduction <add>, %13, %cst_10 [1] : vector<16x32xf32> to vector<16xf32>
    %15 = vector.shape_cast %14 : vector<16xf32> to vector<16x1xf32>
    %cst_11 = arith.constant 3.200000e+01 : f32
    %16 = vector.broadcast %cst_11 : f32 to vector<16x1xf32>
    %17 = arith.divf %15, %16 : vector<16x1xf32>
    %cst_12 = arith.constant 9.99999974E-6 : f32
    %18 = vector.broadcast %cst_12 : f32 to vector<16x1xf32>
    %19 = arith.addf %17, %18 : vector<16x1xf32>
    %20 = math.rsqrt %19 : vector<16x1xf32>
    %21 = vector.broadcast %20 : vector<16x1xf32> to vector<16x32xf32>
    %22 = arith.mulf %12, %21 : vector<16x32xf32>
    %23 = vector.shape_cast %4 : vector<32xf32> to vector<1x32xf32>
    %24 = vector.broadcast %23 : vector<1x32xf32> to vector<16x32xf32>
    %25 = arith.mulf %22, %24 : vector<16x32xf32>
    %26 = vector.shape_cast %6 : vector<32xf32> to vector<1x32xf32>
    %27 = vector.broadcast %26 : vector<1x32xf32> to vector<16x32xf32>
    %28 = arith.addf %25, %27 : vector<16x32xf32>
    %29 = arith.truncf %28 : vector<16x32xf32> to vector<16x32xbf16>
    %c0_13 = arith.constant 0 : index
    %c0_14 = arith.constant 0 : index
    %c0_15 = arith.constant 0 : index
    %30 = vector.load %arg4[%c0_13, %c0_14, %c0_15] : memref<2x32x96xbf16, #tpu.memory_space<vmem>>, vector<1x32x96xbf16>
    %31 = vector.shape_cast %30 : vector<1x32x96xbf16> to vector<32x96xbf16>
    %cst_16 = arith.constant dense<0.000000e+00> : vector<16x96xf32>
    %32 = tpu.matmul %29, %31, %cst_16 {dimension_numbers = #tpu.dot_dimension_numbers<[1], [0], [0], [1], [0, 0, 1, 1], [], []>} : vector<16x32xbf16>, vector<32x96xbf16>, vector<16x96xf32> -> vector<16x96xf32>
    %33 = arith.truncf %32 : vector<16x96xf32> to vector<16x96xbf16>
    %c0_17 = arith.constant 0 : index
    %c0_18 = arith.constant 0 : index
    %c0_19 = arith.constant 0 : index
    %34 = vector.load %arg5[%c0_17, %c0_18, %c0_19] : memref<2x32x32xbf16, #tpu.memory_space<vmem>>, vector<1x32x32xbf16>
    %35 = vector.shape_cast %34 : vector<1x32x32xbf16> to vector<32x32xbf16>
    %cst_20 = arith.constant 0.000000e+00 : f32
    %36 = vector.broadcast %cst_20 : f32 to vector<16x32xf32>
    %37 = vector.extract_strided_slice %33 {offsets = [0, 0], sizes = [16, 8], strides = [1, 1]} : vector<16x96xbf16> to vector<16x8xbf16>
    %38 = vector.shape_cast %37 : vector<16x8xbf16> to vector<2x8x8xbf16>
    %39 = vector.extract_strided_slice %33 {offsets = [0, 32], sizes = [16, 8], strides = [1, 1]} : vector<16x96xbf16> to vector<16x8xbf16>
    %40 = vector.shape_cast %39 : vector<16x8xbf16> to vector<2x8x8xbf16>
    %41 = vector.extract_strided_slice %33 {offsets = [0, 64], sizes = [16, 8], strides = [1, 1]} : vector<16x96xbf16> to vector<16x8xbf16>
    %42 = vector.shape_cast %41 : vector<16x8xbf16> to vector<2x8x8xbf16>
    "tpu.trace_start"() <{level = 10 : i32, message = "bqd,bkd->bqk"}> : () -> ()
    %cst_21 = arith.constant dense<0.000000e+00> : vector<2x8x8xf32>
    %43 = tpu.matmul %38, %40, %cst_21 {dimension_numbers = #tpu.dot_dimension_numbers<[2], [2], [1], [1], [0, 0, 0, 1, 1, 1], [0], [0]>} : vector<2x8x8xbf16>, vector<2x8x8xbf16>, vector<2x8x8xf32> -> vector<2x8x8xf32>
    "tpu.trace_stop"() : () -> ()
    %cst_22 = arith.constant 0.353553385 : f32
    %44 = vector.broadcast %cst_22 : f32 to vector<2x8x8xf32>
    %45 = arith.mulf %43, %44 : vector<2x8x8xf32>
    %46 = arith.addf %45, %2 : vector<2x8x8xf32>
    %cst_23 = arith.constant dense<0xFF800000> : vector<2x8xf32>
    %47 = vector.multi_reduction <maximumf>, %46, %cst_23 [2] : vector<2x8x8xf32> to vector<2x8xf32>
    %48 = vector.shape_cast %47 : vector<2x8xf32> to vector<2x8x1xf32>
    %49 = vector.broadcast %48 : vector<2x8x1xf32> to vector<2x8x8xf32>
    %50 = arith.subf %46, %49 : vector<2x8x8xf32>
    %51 = math.exp %50 : vector<2x8x8xf32>
    %cst_24 = arith.constant dense<0.000000e+00> : vector<2x8xf32>
    %52 = vector.multi_reduction <add>, %51, %cst_24 [2] : vector<2x8x8xf32> to vector<2x8xf32>
    %53 = vector.shape_cast %52 : vector<2x8xf32> to vector<2x8x1xf32>
    %54 = tpu.reciprocal %53 {approx = true} : vector<2x8x1xf32> -> vector<2x8x1xf32>
    %55 = vector.broadcast %54 : vector<2x8x1xf32> to vector<2x8x8xf32>
    %56 = arith.mulf %51, %55 : vector<2x8x8xf32>
    %57 = arith.truncf %56 : vector<2x8x8xf32> to vector<2x8x8xbf16>
    "tpu.trace_start"() <{level = 10 : i32, message = "bqk,bkd->bqd"}> : () -> ()
    %cst_25 = arith.constant dense<0.000000e+00> : vector<2x8x8xf32>
    %58 = tpu.matmul %57, %42, %cst_25 {dimension_numbers = #tpu.dot_dimension_numbers<[2], [1], [1], [2], [0, 0, 0, 1, 1, 2], [0], [0]>} : vector<2x8x8xbf16>, vector<2x8x8xbf16>, vector<2x8x8xf32> -> vector<2x8x8xf32>
    "tpu.trace_stop"() : () -> ()
    %59 = vector.shape_cast %58 : vector<2x8x8xf32> to vector<16x8xf32>
    %60 = arith.truncf %59 : vector<16x8xf32> to vector<16x8xbf16>
    %61 = vector.extract_strided_slice %35 {offsets = [0, 0], sizes = [8, 32], strides = [1, 1]} : vector<32x32xbf16> to vector<8x32xbf16>
    %cst_26 = arith.constant dense<0.000000e+00> : vector<16x32xf32>
    %62 = tpu.matmul %60, %61, %cst_26 {dimension_numbers = #tpu.dot_dimension_numbers<[1], [0], [0], [1], [0, 0, 1, 1], [], []>} : vector<16x8xbf16>, vector<8x32xbf16>, vector<16x32xf32> -> vector<16x32xf32>
    %63 = arith.addf %36, %62 : vector<16x32xf32>
    %64 = vector.extract_strided_slice %33 {offsets = [0, 8], sizes = [16, 8], strides = [1, 1]} : vector<16x96xbf16> to vector<16x8xbf16>
    %65 = vector.shape_cast %64 : vector<16x8xbf16> to vector<2x8x8xbf16>
    %66 = vector.extract_strided_slice %33 {offsets = [0, 40], sizes = [16, 8], strides = [1, 1]} : vector<16x96xbf16> to vector<16x8xbf16>
    %67 = vector.shape_cast %66 : vector<16x8xbf16> to vector<2x8x8xbf16>
    %68 = vector.extract_strided_slice %33 {offsets = [0, 72], sizes = [16, 8], strides = [1, 1]} : vector<16x96xbf16> to vector<16x8xbf16>
    %69 = vector.shape_cast %68 : vector<16x8xbf16> to vector<2x8x8xbf16>
    "tpu.trace_start"() <{level = 10 : i32, message = "bqd,bkd->bqk"}> : () -> ()
    %cst_27 = arith.constant dense<0.000000e+00> : vector<2x8x8xf32>
    %70 = tpu.matmul %65, %67, %cst_27 {dimension_numbers = #tpu.dot_dimension_numbers<[2], [2], [1], [1], [0, 0, 0, 1, 1, 1], [0], [0]>} : vector<2x8x8xbf16>, vector<2x8x8xbf16>, vector<2x8x8xf32> -> vector<2x8x8xf32>
    "tpu.trace_stop"() : () -> ()
    %cst_28 = arith.constant 0.353553385 : f32
    %71 = vector.broadcast %cst_28 : f32 to vector<2x8x8xf32>
    %72 = arith.mulf %70, %71 : vector<2x8x8xf32>
    %73 = arith.addf %72, %2 : vector<2x8x8xf32>
    %cst_29 = arith.constant dense<0xFF800000> : vector<2x8xf32>
    %74 = vector.multi_reduction <maximumf>, %73, %cst_29 [2] : vector<2x8x8xf32> to vector<2x8xf32>
    %75 = vector.shape_cast %74 : vector<2x8xf32> to vector<2x8x1xf32>
    %76 = vector.broadcast %75 : vector<2x8x1xf32> to vector<2x8x8xf32>
    %77 = arith.subf %73, %76 : vector<2x8x8xf32>
    %78 = math.exp %77 : vector<2x8x8xf32>
    %cst_30 = arith.constant dense<0.000000e+00> : vector<2x8xf32>
    %79 = vector.multi_reduction <add>, %78, %cst_30 [2] : vector<2x8x8xf32> to vector<2x8xf32>
    %80 = vector.shape_cast %79 : vector<2x8xf32> to vector<2x8x1xf32>
    %81 = tpu.reciprocal %80 {approx = true} : vector<2x8x1xf32> -> vector<2x8x1xf32>
    %82 = vector.broadcast %81 : vector<2x8x1xf32> to vector<2x8x8xf32>
    %83 = arith.mulf %78, %82 : vector<2x8x8xf32>
    %84 = arith.truncf %83 : vector<2x8x8xf32> to vector<2x8x8xbf16>
    "tpu.trace_start"() <{level = 10 : i32, message = "bqk,bkd->bqd"}> : () -> ()
    %cst_31 = arith.constant dense<0.000000e+00> : vector<2x8x8xf32>
    %85 = tpu.matmul %84, %69, %cst_31 {dimension_numbers = #tpu.dot_dimension_numbers<[2], [1], [1], [2], [0, 0, 0, 1, 1, 2], [0], [0]>} : vector<2x8x8xbf16>, vector<2x8x8xbf16>, vector<2x8x8xf32> -> vector<2x8x8xf32>
    "tpu.trace_stop"() : () -> ()
    %86 = vector.shape_cast %85 : vector<2x8x8xf32> to vector<16x8xf32>
    %87 = arith.truncf %86 : vector<16x8xf32> to vector<16x8xbf16>
    %88 = vector.extract_strided_slice %35 {offsets = [8, 0], sizes = [8, 32], strides = [1, 1]} : vector<32x32xbf16> to vector<8x32xbf16>
    %cst_32 = arith.constant dense<0.000000e+00> : vector<16x32xf32>
    %89 = tpu.matmul %87, %88, %cst_32 {dimension_numbers = #tpu.dot_dimension_numbers<[1], [0], [0], [1], [0, 0, 1, 1], [], []>} : vector<16x8xbf16>, vector<8x32xbf16>, vector<16x32xf32> -> vector<16x32xf32>
    %90 = arith.addf %63, %89 : vector<16x32xf32>
    %91 = vector.extract_strided_slice %33 {offsets = [0, 16], sizes = [16, 8], strides = [1, 1]} : vector<16x96xbf16> to vector<16x8xbf16>
    %92 = vector.shape_cast %91 : vector<16x8xbf16> to vector<2x8x8xbf16>
    %93 = vector.extract_strided_slice %33 {offsets = [0, 48], sizes = [16, 8], strides = [1, 1]} : vector<16x96xbf16> to vector<16x8xbf16>
    %94 = vector.shape_cast %93 : vector<16x8xbf16> to vector<2x8x8xbf16>
    %95 = vector.extract_strided_slice %33 {offsets = [0, 80], sizes = [16, 8], strides = [1, 1]} : vector<16x96xbf16> to vector<16x8xbf16>
    %96 = vector.shape_cast %95 : vector<16x8xbf16> to vector<2x8x8xbf16>
    "tpu.trace_start"() <{level = 10 : i32, message = "bqd,bkd->bqk"}> : () -> ()
    %cst_33 = arith.constant dense<0.000000e+00> : vector<2x8x8xf32>
    %97 = tpu.matmul %92, %94, %cst_33 {dimension_numbers = #tpu.dot_dimension_numbers<[2], [2], [1], [1], [0, 0, 0, 1, 1, 1], [0], [0]>} : vector<2x8x8xbf16>, vector<2x8x8xbf16>, vector<2x8x8xf32> -> vector<2x8x8xf32>
    "tpu.trace_stop"() : () -> ()
    %cst_34 = arith.constant 0.353553385 : f32
    %98 = vector.broadcast %cst_34 : f32 to vector<2x8x8xf32>
    %99 = arith.mulf %97, %98 : vector<2x8x8xf32>
    %100 = arith.addf %99, %2 : vector<2x8x8xf32>
    %cst_35 = arith.constant dense<0xFF800000> : vector<2x8xf32>
    %101 = vector.multi_reduction <maximumf>, %100, %cst_35 [2] : vector<2x8x8xf32> to vector<2x8xf32>
    %102 = vector.shape_cast %101 : vector<2x8xf32> to vector<2x8x1xf32>
    %103 = vector.broadcast %102 : vector<2x8x1xf32> to vector<2x8x8xf32>
    %104 = arith.subf %100, %103 : vector<2x8x8xf32>
    %105 = math.exp %104 : vector<2x8x8xf32>
    %cst_36 = arith.constant dense<0.000000e+00> : vector<2x8xf32>
    %106 = vector.multi_reduction <add>, %105, %cst_36 [2] : vector<2x8x8xf32> to vector<2x8xf32>
    %107 = vector.shape_cast %106 : vector<2x8xf32> to vector<2x8x1xf32>
    %108 = tpu.reciprocal %107 {approx = true} : vector<2x8x1xf32> -> vector<2x8x1xf32>
    %109 = vector.broadcast %108 : vector<2x8x1xf32> to vector<2x8x8xf32>
    %110 = arith.mulf %105, %109 : vector<2x8x8xf32>
    %111 = arith.truncf %110 : vector<2x8x8xf32> to vector<2x8x8xbf16>
    "tpu.trace_start"() <{level = 10 : i32, message = "bqk,bkd->bqd"}> : () -> ()
    %cst_37 = arith.constant dense<0.000000e+00> : vector<2x8x8xf32>
    %112 = tpu.matmul %111, %96, %cst_37 {dimension_numbers = #tpu.dot_dimension_numbers<[2], [1], [1], [2], [0, 0, 0, 1, 1, 2], [0], [0]>} : vector<2x8x8xbf16>, vector<2x8x8xbf16>, vector<2x8x8xf32> -> vector<2x8x8xf32>
    "tpu.trace_stop"() : () -> ()
    %113 = vector.shape_cast %112 : vector<2x8x8xf32> to vector<16x8xf32>
    %114 = arith.truncf %113 : vector<16x8xf32> to vector<16x8xbf16>
    %115 = vector.extract_strided_slice %35 {offsets = [16, 0], sizes = [8, 32], strides = [1, 1]} : vector<32x32xbf16> to vector<8x32xbf16>
    %cst_38 = arith.constant dense<0.000000e+00> : vector<16x32xf32>
    %116 = tpu.matmul %114, %115, %cst_38 {dimension_numbers = #tpu.dot_dimension_numbers<[1], [0], [0], [1], [0, 0, 1, 1], [], []>} : vector<16x8xbf16>, vector<8x32xbf16>, vector<16x32xf32> -> vector<16x32xf32>
    %117 = arith.addf %90, %116 : vector<16x32xf32>
    %118 = vector.extract_strided_slice %33 {offsets = [0, 24], sizes = [16, 8], strides = [1, 1]} : vector<16x96xbf16> to vector<16x8xbf16>
    %119 = vector.shape_cast %118 : vector<16x8xbf16> to vector<2x8x8xbf16>
    %120 = vector.extract_strided_slice %33 {offsets = [0, 56], sizes = [16, 8], strides = [1, 1]} : vector<16x96xbf16> to vector<16x8xbf16>
    %121 = vector.shape_cast %120 : vector<16x8xbf16> to vector<2x8x8xbf16>
    %122 = vector.extract_strided_slice %33 {offsets = [0, 88], sizes = [16, 8], strides = [1, 1]} : vector<16x96xbf16> to vector<16x8xbf16>
    %123 = vector.shape_cast %122 : vector<16x8xbf16> to vector<2x8x8xbf16>
    "tpu.trace_start"() <{level = 10 : i32, message = "bqd,bkd->bqk"}> : () -> ()
    %cst_39 = arith.constant dense<0.000000e+00> : vector<2x8x8xf32>
    %124 = tpu.matmul %119, %121, %cst_39 {dimension_numbers = #tpu.dot_dimension_numbers<[2], [2], [1], [1], [0, 0, 0, 1, 1, 1], [0], [0]>} : vector<2x8x8xbf16>, vector<2x8x8xbf16>, vector<2x8x8xf32> -> vector<2x8x8xf32>
    "tpu.trace_stop"() : () -> ()
    %cst_40 = arith.constant 0.353553385 : f32
    %125 = vector.broadcast %cst_40 : f32 to vector<2x8x8xf32>
    %126 = arith.mulf %124, %125 : vector<2x8x8xf32>
    %127 = arith.addf %126, %2 : vector<2x8x8xf32>
    %cst_41 = arith.constant dense<0xFF800000> : vector<2x8xf32>
    %128 = vector.multi_reduction <maximumf>, %127, %cst_41 [2] : vector<2x8x8xf32> to vector<2x8xf32>
    %129 = vector.shape_cast %128 : vector<2x8xf32> to vector<2x8x1xf32>
    %130 = vector.broadcast %129 : vector<2x8x1xf32> to vector<2x8x8xf32>
    %131 = arith.subf %127, %130 : vector<2x8x8xf32>
    %132 = math.exp %131 : vector<2x8x8xf32>
    %cst_42 = arith.constant dense<0.000000e+00> : vector<2x8xf32>
    %133 = vector.multi_reduction <add>, %132, %cst_42 [2] : vector<2x8x8xf32> to vector<2x8xf32>
    %134 = vector.shape_cast %133 : vector<2x8xf32> to vector<2x8x1xf32>
    %135 = tpu.reciprocal %134 {approx = true} : vector<2x8x1xf32> -> vector<2x8x1xf32>
    %136 = vector.broadcast %135 : vector<2x8x1xf32> to vector<2x8x8xf32>
    %137 = arith.mulf %132, %136 : vector<2x8x8xf32>
    %138 = arith.truncf %137 : vector<2x8x8xf32> to vector<2x8x8xbf16>
    "tpu.trace_start"() <{level = 10 : i32, message = "bqk,bkd->bqd"}> : () -> ()
    %cst_43 = arith.constant dense<0.000000e+00> : vector<2x8x8xf32>
    %139 = tpu.matmul %138, %123, %cst_43 {dimension_numbers = #tpu.dot_dimension_numbers<[2], [1], [1], [2], [0, 0, 0, 1, 1, 2], [0], [0]>} : vector<2x8x8xbf16>, vector<2x8x8xbf16>, vector<2x8x8xf32> -> vector<2x8x8xf32>
    "tpu.trace_stop"() : () -> ()
    %140 = vector.shape_cast %139 : vector<2x8x8xf32> to vector<16x8xf32>
    %141 = arith.truncf %140 : vector<16x8xf32> to vector<16x8xbf16>
    %142 = vector.extract_strided_slice %35 {offsets = [24, 0], sizes = [8, 32], strides = [1, 1]} : vector<32x32xbf16> to vector<8x32xbf16>
    %cst_44 = arith.constant dense<0.000000e+00> : vector<16x32xf32>
    %143 = tpu.matmul %141, %142, %cst_44 {dimension_numbers = #tpu.dot_dimension_numbers<[1], [0], [0], [1], [0, 0, 1, 1], [], []>} : vector<16x8xbf16>, vector<8x32xbf16>, vector<16x32xf32> -> vector<16x32xf32>
    %144 = arith.addf %117, %143 : vector<16x32xf32>
    %145 = arith.addf %1, %144 : vector<16x32xf32>
    %c0_45 = arith.constant 0 : index
    %c0_46 = arith.constant 0 : index
    %146 = vector.load %arg6[%c0_45, %c0_46] : memref<2x32xf32, #tpu.memory_space<vmem>>, vector<1x32xf32>
    %147 = vector.shape_cast %146 : vector<1x32xf32> to vector<32xf32>
    %148 = vector.shape_cast %147 : vector<32xf32> to vector<1x32xf32>
    %149 = vector.broadcast %148 : vector<1x32xf32> to vector<16x32xf32>
    %150 = arith.addf %145, %149 : vector<16x32xf32>
    %c0_47 = arith.constant 0 : index
    %c0_48 = arith.constant 0 : index
    %151 = vector.load %arg7[%c0_47, %c0_48] : memref<2x32xf32, #tpu.memory_space<vmem>>, vector<1x32xf32>
    %152 = vector.shape_cast %151 : vector<1x32xf32> to vector<32xf32>
    %c0_49 = arith.constant 0 : index
    %c0_50 = arith.constant 0 : index
    %153 = vector.load %arg8[%c0_49, %c0_50] : memref<2x32xf32, #tpu.memory_space<vmem>>, vector<1x32xf32>
    %154 = vector.shape_cast %153 : vector<1x32xf32> to vector<32xf32>
    %cst_51 = arith.constant dense<0.000000e+00> : vector<16xf32>
    %155 = vector.multi_reduction <add>, %150, %cst_51 [1] : vector<16x32xf32> to vector<16xf32>
    %156 = vector.shape_cast %155 : vector<16xf32> to vector<16x1xf32>
    %cst_52 = arith.constant 3.200000e+01 : f32
    %157 = vector.broadcast %cst_52 : f32 to vector<16x1xf32>
    %158 = arith.divf %156, %157 : vector<16x1xf32>
    %159 = vector.broadcast %158 : vector<16x1xf32> to vector<16x32xf32>
    %160 = arith.subf %150, %159 : vector<16x32xf32>
    %161 = arith.mulf %160, %160 : vector<16x32xf32>
    %cst_53 = arith.constant dense<0.000000e+00> : vector<16xf32>
    %162 = vector.multi_reduction <add>, %161, %cst_53 [1] : vector<16x32xf32> to vector<16xf32>
    %163 = vector.shape_cast %162 : vector<16xf32> to vector<16x1xf32>
    %cst_54 = arith.constant 3.200000e+01 : f32
    %164 = vector.broadcast %cst_54 : f32 to vector<16x1xf32>
    %165 = arith.divf %163, %164 : vector<16x1xf32>
    %cst_55 = arith.constant 9.99999974E-6 : f32
    %166 = vector.broadcast %cst_55 : f32 to vector<16x1xf32>
    %167 = arith.addf %165, %166 : vector<16x1xf32>
    %168 = math.rsqrt %167 : vector<16x1xf32>
    %169 = vector.broadcast %168 : vector<16x1xf32> to vector<16x32xf32>
    %170 = arith.mulf %160, %169 : vector<16x32xf32>
    %171 = vector.shape_cast %152 : vector<32xf32> to vector<1x32xf32>
    %172 = vector.broadcast %171 : vector<1x32xf32> to vector<16x32xf32>
    %173 = arith.mulf %170, %172 : vector<16x32xf32>
    %174 = vector.shape_cast %154 : vector<32xf32> to vector<1x32xf32>
    %175 = vector.broadcast %174 : vector<1x32xf32> to vector<16x32xf32>
    %176 = arith.addf %173, %175 : vector<16x32xf32>
    %177 = arith.truncf %176 : vector<16x32xf32> to vector<16x32xbf16>
    %c0_56 = arith.constant 0 : index
    %c0_57 = arith.constant 0 : index
    %c0_58 = arith.constant 0 : index
    %178 = vector.load %arg9[%c0_56, %c0_57, %c0_58] : memref<2x32x64xbf16, #tpu.memory_space<vmem>>, vector<1x32x64xbf16>
    %179 = vector.shape_cast %178 : vector<1x32x64xbf16> to vector<32x64xbf16>
    %cst_59 = arith.constant dense<0.000000e+00> : vector<16x64xf32>
    %180 = tpu.matmul %177, %179, %cst_59 {dimension_numbers = #tpu.dot_dimension_numbers<[1], [0], [0], [1], [0, 0, 1, 1], [], []>} : vector<16x32xbf16>, vector<32x64xbf16>, vector<16x64xf32> -> vector<16x64xf32>
    %c0_60 = arith.constant 0 : index
    %c0_61 = arith.constant 0 : index
    %181 = vector.load %arg10[%c0_60, %c0_61] : memref<2x64xf32, #tpu.memory_space<vmem>>, vector<1x64xf32>
    %182 = vector.shape_cast %181 : vector<1x64xf32> to vector<64xf32>
    %183 = vector.shape_cast %182 : vector<64xf32> to vector<1x64xf32>
    %184 = vector.broadcast %183 : vector<1x64xf32> to vector<16x64xf32>
    %185 = arith.addf %180, %184 : vector<16x64xf32>
    %cst_62 = arith.constant 5.000000e-01 : f32
    %186 = vector.broadcast %cst_62 : f32 to vector<16x64xf32>
    %187 = arith.mulf %186, %185 : vector<16x64xf32>
    %cst_63 = arith.constant 4.471500e-02 : f32
    %188 = vector.broadcast %cst_63 : f32 to vector<16x64xf32>
    %189 = arith.mulf %188, %185 : vector<16x64xf32>
    %190 = arith.mulf %189, %185 : vector<16x64xf32>
    %191 = arith.mulf %190, %185 : vector<16x64xf32>
    %192 = arith.addf %185, %191 : vector<16x64xf32>
    %cst_64 = arith.constant 0.797884583 : f32
    %193 = vector.broadcast %cst_64 : f32 to vector<16x64xf32>
    %194 = arith.mulf %193, %192 : vector<16x64xf32>
    %195 = math.tanh %194 : vector<16x64xf32>
    %cst_65 = arith.constant 1.000000e+00 : f32
    %196 = vector.broadcast %cst_65 : f32 to vector<16x64xf32>
    %197 = arith.addf %196, %195 : vector<16x64xf32>
    %198 = arith.mulf %187, %197 : vector<16x64xf32>
    %199 = arith.truncf %198 : vector<16x64xf32> to vector<16x64xbf16>
    %c0_66 = arith.constant 0 : index
    %c0_67 = arith.constant 0 : index
    %c0_68 = arith.constant 0 : index
    %200 = vector.load %arg11[%c0_66, %c0_67, %c0_68] : memref<2x64x32xbf16, #tpu.memory_space<vmem>>, vector<1x64x32xbf16>
    %201 = vector.shape_cast %200 : vector<1x64x32xbf16> to vector<64x32xbf16>
    %cst_69 = arith.constant dense<0.000000e+00> : vector<16x32xf32>
    %202 = tpu.matmul %199, %201, %cst_69 {dimension_numbers = #tpu.dot_dimension_numbers<[1], [0], [0], [1], [0, 0, 1, 1], [], []>} : vector<16x64xbf16>, vector<64x32xbf16>, vector<16x32xf32> -> vector<16x32xf32>
    %c0_70 = arith.constant 0 : index
    %c0_71 = arith.constant 0 : index
    %203 = vector.load %arg12[%c0_70, %c0_71] : memref<2x32xf32, #tpu.memory_space<vmem>>, vector<1x32xf32>
    %204 = vector.shape_cast %203 : vector<1x32xf32> to vector<32xf32>
    %205 = vector.shape_cast %204 : vector<32xf32> to vector<1x32xf32>
    %206 = vector.broadcast %205 : vector<1x32xf32> to vector<16x32xf32>
    %207 = arith.addf %202, %206 : vector<16x32xf32>
    %208 = arith.addf %150, %207 : vector<16x32xf32>
    %c1 = arith.constant 1 : index
    %c0_72 = arith.constant 0 : index
    %209 = vector.load %arg2[%c1, %c0_72] : memref<2x32xf32, #tpu.memory_space<vmem>>, vector<1x32xf32>
    %210 = vector.shape_cast %209 : vector<1x32xf32> to vector<32xf32>
    %c1_73 = arith.constant 1 : index
    %c0_74 = arith.constant 0 : index
    %211 = vector.load %arg3[%c1_73, %c0_74] : memref<2x32xf32, #tpu.memory_space<vmem>>, vector<1x32xf32>
    %212 = vector.shape_cast %211 : vector<1x32xf32> to vector<32xf32>
    %cst_75 = arith.constant dense<0.000000e+00> : vector<16xf32>
    %213 = vector.multi_reduction <add>, %208, %cst_75 [1] : vector<16x32xf32> to vector<16xf32>
    %214 = vector.shape_cast %213 : vector<16xf32> to vector<16x1xf32>
    %cst_76 = arith.constant 3.200000e+01 : f32
    %215 = vector.broadcast %cst_76 : f32 to vector<16x1xf32>
    %216 = arith.divf %214, %215 : vector<16x1xf32>
    %217 = vector.broadcast %216 : vector<16x1xf32> to vector<16x32xf32>
    %218 = arith.subf %208, %217 : vector<16x32xf32>
    %219 = arith.mulf %218, %218 : vector<16x32xf32>
    %cst_77 = arith.constant dense<0.000000e+00> : vector<16xf32>
    %220 = vector.multi_reduction <add>, %219, %cst_77 [1] : vector<16x32xf32> to vector<16xf32>
    %221 = vector.shape_cast %220 : vector<16xf32> to vector<16x1xf32>
    %cst_78 = arith.constant 3.200000e+01 : f32
    %222 = vector.broadcast %cst_78 : f32 to vector<16x1xf32>
    %223 = arith.divf %221, %222 : vector<16x1xf32>
    %cst_79 = arith.constant 9.99999974E-6 : f32
    %224 = vector.broadcast %cst_79 : f32 to vector<16x1xf32>
    %225 = arith.addf %223, %224 : vector<16x1xf32>
    %226 = math.rsqrt %225 : vector<16x1xf32>
    %227 = vector.broadcast %226 : vector<16x1xf32> to vector<16x32xf32>
    %228 = arith.mulf %218, %227 : vector<16x32xf32>
    %229 = vector.shape_cast %210 : vector<32xf32> to vector<1x32xf32>
    %230 = vector.broadcast %229 : vector<1x32xf32> to vector<16x32xf32>
    %231 = arith.mulf %228, %230 : vector<16x32xf32>
    %232 = vector.shape_cast %212 : vector<32xf32> to vector<1x32xf32>
    %233 = vector.broadcast %232 : vector<1x32xf32> to vector<16x32xf32>
    %234 = arith.addf %231, %233 : vector<16x32xf32>
    %235 = arith.truncf %234 : vector<16x32xf32> to vector<16x32xbf16>
    %c1_80 = arith.constant 1 : index
    %c0_81 = arith.constant 0 : index
    %c0_82 = arith.constant 0 : index
    %236 = vector.load %arg4[%c1_80, %c0_81, %c0_82] : memref<2x32x96xbf16, #tpu.memory_space<vmem>>, vector<1x32x96xbf16>
    %237 = vector.shape_cast %236 : vector<1x32x96xbf16> to vector<32x96xbf16>
    %cst_83 = arith.constant dense<0.000000e+00> : vector<16x96xf32>
    %238 = tpu.matmul %235, %237, %cst_83 {dimension_numbers = #tpu.dot_dimension_numbers<[1], [0], [0], [1], [0, 0, 1, 1], [], []>} : vector<16x32xbf16>, vector<32x96xbf16>, vector<16x96xf32> -> vector<16x96xf32>
    %239 = arith.truncf %238 : vector<16x96xf32> to vector<16x96xbf16>
    %c1_84 = arith.constant 1 : index
    %c0_85 = arith.constant 0 : index
    %c0_86 = arith.constant 0 : index
    %240 = vector.load %arg5[%c1_84, %c0_85, %c0_86] : memref<2x32x32xbf16, #tpu.memory_space<vmem>>, vector<1x32x32xbf16>
    %241 = vector.shape_cast %240 : vector<1x32x32xbf16> to vector<32x32xbf16>
    %cst_87 = arith.constant 0.000000e+00 : f32
    %242 = vector.broadcast %cst_87 : f32 to vector<16x32xf32>
    %243 = vector.extract_strided_slice %239 {offsets = [0, 0], sizes = [16, 8], strides = [1, 1]} : vector<16x96xbf16> to vector<16x8xbf16>
    %244 = vector.shape_cast %243 : vector<16x8xbf16> to vector<2x8x8xbf16>
    %245 = vector.extract_strided_slice %239 {offsets = [0, 32], sizes = [16, 8], strides = [1, 1]} : vector<16x96xbf16> to vector<16x8xbf16>
    %246 = vector.shape_cast %245 : vector<16x8xbf16> to vector<2x8x8xbf16>
    %247 = vector.extract_strided_slice %239 {offsets = [0, 64], sizes = [16, 8], strides = [1, 1]} : vector<16x96xbf16> to vector<16x8xbf16>
    %248 = vector.shape_cast %247 : vector<16x8xbf16> to vector<2x8x8xbf16>
    "tpu.trace_start"() <{level = 10 : i32, message = "bqd,bkd->bqk"}> : () -> ()
    %cst_88 = arith.constant dense<0.000000e+00> : vector<2x8x8xf32>
    %249 = tpu.matmul %244, %246, %cst_88 {dimension_numbers = #tpu.dot_dimension_numbers<[2], [2], [1], [1], [0, 0, 0, 1, 1, 1], [0], [0]>} : vector<2x8x8xbf16>, vector<2x8x8xbf16>, vector<2x8x8xf32> -> vector<2x8x8xf32>
    "tpu.trace_stop"() : () -> ()
    %cst_89 = arith.constant 0.353553385 : f32
    %250 = vector.broadcast %cst_89 : f32 to vector<2x8x8xf32>
    %251 = arith.mulf %249, %250 : vector<2x8x8xf32>
    %252 = arith.addf %251, %2 : vector<2x8x8xf32>
    %cst_90 = arith.constant dense<0xFF800000> : vector<2x8xf32>
    %253 = vector.multi_reduction <maximumf>, %252, %cst_90 [2] : vector<2x8x8xf32> to vector<2x8xf32>
    %254 = vector.shape_cast %253 : vector<2x8xf32> to vector<2x8x1xf32>
    %255 = vector.broadcast %254 : vector<2x8x1xf32> to vector<2x8x8xf32>
    %256 = arith.subf %252, %255 : vector<2x8x8xf32>
    %257 = math.exp %256 : vector<2x8x8xf32>
    %cst_91 = arith.constant dense<0.000000e+00> : vector<2x8xf32>
    %258 = vector.multi_reduction <add>, %257, %cst_91 [2] : vector<2x8x8xf32> to vector<2x8xf32>
    %259 = vector.shape_cast %258 : vector<2x8xf32> to vector<2x8x1xf32>
    %260 = tpu.reciprocal %259 {approx = true} : vector<2x8x1xf32> -> vector<2x8x1xf32>
    %261 = vector.broadcast %260 : vector<2x8x1xf32> to vector<2x8x8xf32>
    %262 = arith.mulf %257, %261 : vector<2x8x8xf32>
    %263 = arith.truncf %262 : vector<2x8x8xf32> to vector<2x8x8xbf16>
    "tpu.trace_start"() <{level = 10 : i32, message = "bqk,bkd->bqd"}> : () -> ()
    %cst_92 = arith.constant dense<0.000000e+00> : vector<2x8x8xf32>
    %264 = tpu.matmul %263, %248, %cst_92 {dimension_numbers = #tpu.dot_dimension_numbers<[2], [1], [1], [2], [0, 0, 0, 1, 1, 2], [0], [0]>} : vector<2x8x8xbf16>, vector<2x8x8xbf16>, vector<2x8x8xf32> -> vector<2x8x8xf32>
    "tpu.trace_stop"() : () -> ()
    %265 = vector.shape_cast %264 : vector<2x8x8xf32> to vector<16x8xf32>
    %266 = arith.truncf %265 : vector<16x8xf32> to vector<16x8xbf16>
    %267 = vector.extract_strided_slice %241 {offsets = [0, 0], sizes = [8, 32], strides = [1, 1]} : vector<32x32xbf16> to vector<8x32xbf16>
    %cst_93 = arith.constant dense<0.000000e+00> : vector<16x32xf32>
    %268 = tpu.matmul %266, %267, %cst_93 {dimension_numbers = #tpu.dot_dimension_numbers<[1], [0], [0], [1], [0, 0, 1, 1], [], []>} : vector<16x8xbf16>, vector<8x32xbf16>, vector<16x32xf32> -> vector<16x32xf32>
    %269 = arith.addf %242, %268 : vector<16x32xf32>
    %270 = vector.extract_strided_slice %239 {offsets = [0, 8], sizes = [16, 8], strides = [1, 1]} : vector<16x96xbf16> to vector<16x8xbf16>
    %271 = vector.shape_cast %270 : vector<16x8xbf16> to vector<2x8x8xbf16>
    %272 = vector.extract_strided_slice %239 {offsets = [0, 40], sizes = [16, 8], strides = [1, 1]} : vector<16x96xbf16> to vector<16x8xbf16>
    %273 = vector.shape_cast %272 : vector<16x8xbf16> to vector<2x8x8xbf16>
    %274 = vector.extract_strided_slice %239 {offsets = [0, 72], sizes = [16, 8], strides = [1, 1]} : vector<16x96xbf16> to vector<16x8xbf16>
    %275 = vector.shape_cast %274 : vector<16x8xbf16> to vector<2x8x8xbf16>
    "tpu.trace_start"() <{level = 10 : i32, message = "bqd,bkd->bqk"}> : () -> ()
    %cst_94 = arith.constant dense<0.000000e+00> : vector<2x8x8xf32>
    %276 = tpu.matmul %271, %273, %cst_94 {dimension_numbers = #tpu.dot_dimension_numbers<[2], [2], [1], [1], [0, 0, 0, 1, 1, 1], [0], [0]>} : vector<2x8x8xbf16>, vector<2x8x8xbf16>, vector<2x8x8xf32> -> vector<2x8x8xf32>
    "tpu.trace_stop"() : () -> ()
    %cst_95 = arith.constant 0.353553385 : f32
    %277 = vector.broadcast %cst_95 : f32 to vector<2x8x8xf32>
    %278 = arith.mulf %276, %277 : vector<2x8x8xf32>
    %279 = arith.addf %278, %2 : vector<2x8x8xf32>
    %cst_96 = arith.constant dense<0xFF800000> : vector<2x8xf32>
    %280 = vector.multi_reduction <maximumf>, %279, %cst_96 [2] : vector<2x8x8xf32> to vector<2x8xf32>
    %281 = vector.shape_cast %280 : vector<2x8xf32> to vector<2x8x1xf32>
    %282 = vector.broadcast %281 : vector<2x8x1xf32> to vector<2x8x8xf32>
    %283 = arith.subf %279, %282 : vector<2x8x8xf32>
    %284 = math.exp %283 : vector<2x8x8xf32>
    %cst_97 = arith.constant dense<0.000000e+00> : vector<2x8xf32>
    %285 = vector.multi_reduction <add>, %284, %cst_97 [2] : vector<2x8x8xf32> to vector<2x8xf32>
    %286 = vector.shape_cast %285 : vector<2x8xf32> to vector<2x8x1xf32>
    %287 = tpu.reciprocal %286 {approx = true} : vector<2x8x1xf32> -> vector<2x8x1xf32>
    %288 = vector.broadcast %287 : vector<2x8x1xf32> to vector<2x8x8xf32>
    %289 = arith.mulf %284, %288 : vector<2x8x8xf32>
    %290 = arith.truncf %289 : vector<2x8x8xf32> to vector<2x8x8xbf16>
    "tpu.trace_start"() <{level = 10 : i32, message = "bqk,bkd->bqd"}> : () -> ()
    %cst_98 = arith.constant dense<0.000000e+00> : vector<2x8x8xf32>
    %291 = tpu.matmul %290, %275, %cst_98 {dimension_numbers = #tpu.dot_dimension_numbers<[2], [1], [1], [2], [0, 0, 0, 1, 1, 2], [0], [0]>} : vector<2x8x8xbf16>, vector<2x8x8xbf16>, vector<2x8x8xf32> -> vector<2x8x8xf32>
    "tpu.trace_stop"() : () -> ()
    %292 = vector.shape_cast %291 : vector<2x8x8xf32> to vector<16x8xf32>
    %293 = arith.truncf %292 : vector<16x8xf32> to vector<16x8xbf16>
    %294 = vector.extract_strided_slice %241 {offsets = [8, 0], sizes = [8, 32], strides = [1, 1]} : vector<32x32xbf16> to vector<8x32xbf16>
    %cst_99 = arith.constant dense<0.000000e+00> : vector<16x32xf32>
    %295 = tpu.matmul %293, %294, %cst_99 {dimension_numbers = #tpu.dot_dimension_numbers<[1], [0], [0], [1], [0, 0, 1, 1], [], []>} : vector<16x8xbf16>, vector<8x32xbf16>, vector<16x32xf32> -> vector<16x32xf32>
    %296 = arith.addf %269, %295 : vector<16x32xf32>
    %297 = vector.extract_strided_slice %239 {offsets = [0, 16], sizes = [16, 8], strides = [1, 1]} : vector<16x96xbf16> to vector<16x8xbf16>
    %298 = vector.shape_cast %297 : vector<16x8xbf16> to vector<2x8x8xbf16>
    %299 = vector.extract_strided_slice %239 {offsets = [0, 48], sizes = [16, 8], strides = [1, 1]} : vector<16x96xbf16> to vector<16x8xbf16>
    %300 = vector.shape_cast %299 : vector<16x8xbf16> to vector<2x8x8xbf16>
    %301 = vector.extract_strided_slice %239 {offsets = [0, 80], sizes = [16, 8], strides = [1, 1]} : vector<16x96xbf16> to vector<16x8xbf16>
    %302 = vector.shape_cast %301 : vector<16x8xbf16> to vector<2x8x8xbf16>
    "tpu.trace_start"() <{level = 10 : i32, message = "bqd,bkd->bqk"}> : () -> ()
    %cst_100 = arith.constant dense<0.000000e+00> : vector<2x8x8xf32>
    %303 = tpu.matmul %298, %300, %cst_100 {dimension_numbers = #tpu.dot_dimension_numbers<[2], [2], [1], [1], [0, 0, 0, 1, 1, 1], [0], [0]>} : vector<2x8x8xbf16>, vector<2x8x8xbf16>, vector<2x8x8xf32> -> vector<2x8x8xf32>
    "tpu.trace_stop"() : () -> ()
    %cst_101 = arith.constant 0.353553385 : f32
    %304 = vector.broadcast %cst_101 : f32 to vector<2x8x8xf32>
    %305 = arith.mulf %303, %304 : vector<2x8x8xf32>
    %306 = arith.addf %305, %2 : vector<2x8x8xf32>
    %cst_102 = arith.constant dense<0xFF800000> : vector<2x8xf32>
    %307 = vector.multi_reduction <maximumf>, %306, %cst_102 [2] : vector<2x8x8xf32> to vector<2x8xf32>
    %308 = vector.shape_cast %307 : vector<2x8xf32> to vector<2x8x1xf32>
    %309 = vector.broadcast %308 : vector<2x8x1xf32> to vector<2x8x8xf32>
    %310 = arith.subf %306, %309 : vector<2x8x8xf32>
    %311 = math.exp %310 : vector<2x8x8xf32>
    %cst_103 = arith.constant dense<0.000000e+00> : vector<2x8xf32>
    %312 = vector.multi_reduction <add>, %311, %cst_103 [2] : vector<2x8x8xf32> to vector<2x8xf32>
    %313 = vector.shape_cast %312 : vector<2x8xf32> to vector<2x8x1xf32>
    %314 = tpu.reciprocal %313 {approx = true} : vector<2x8x1xf32> -> vector<2x8x1xf32>
    %315 = vector.broadcast %314 : vector<2x8x1xf32> to vector<2x8x8xf32>
    %316 = arith.mulf %311, %315 : vector<2x8x8xf32>
    %317 = arith.truncf %316 : vector<2x8x8xf32> to vector<2x8x8xbf16>
    "tpu.trace_start"() <{level = 10 : i32, message = "bqk,bkd->bqd"}> : () -> ()
    %cst_104 = arith.constant dense<0.000000e+00> : vector<2x8x8xf32>
    %318 = tpu.matmul %317, %302, %cst_104 {dimension_numbers = #tpu.dot_dimension_numbers<[2], [1], [1], [2], [0, 0, 0, 1, 1, 2], [0], [0]>} : vector<2x8x8xbf16>, vector<2x8x8xbf16>, vector<2x8x8xf32> -> vector<2x8x8xf32>
    "tpu.trace_stop"() : () -> ()
    %319 = vector.shape_cast %318 : vector<2x8x8xf32> to vector<16x8xf32>
    %320 = arith.truncf %319 : vector<16x8xf32> to vector<16x8xbf16>
    %321 = vector.extract_strided_slice %241 {offsets = [16, 0], sizes = [8, 32], strides = [1, 1]} : vector<32x32xbf16> to vector<8x32xbf16>
    %cst_105 = arith.constant dense<0.000000e+00> : vector<16x32xf32>
    %322 = tpu.matmul %320, %321, %cst_105 {dimension_numbers = #tpu.dot_dimension_numbers<[1], [0], [0], [1], [0, 0, 1, 1], [], []>} : vector<16x8xbf16>, vector<8x32xbf16>, vector<16x32xf32> -> vector<16x32xf32>
    %323 = arith.addf %296, %322 : vector<16x32xf32>
    %324 = vector.extract_strided_slice %239 {offsets = [0, 24], sizes = [16, 8], strides = [1, 1]} : vector<16x96xbf16> to vector<16x8xbf16>
    %325 = vector.shape_cast %324 : vector<16x8xbf16> to vector<2x8x8xbf16>
    %326 = vector.extract_strided_slice %239 {offsets = [0, 56], sizes = [16, 8], strides = [1, 1]} : vector<16x96xbf16> to vector<16x8xbf16>
    %327 = vector.shape_cast %326 : vector<16x8xbf16> to vector<2x8x8xbf16>
    %328 = vector.extract_strided_slice %239 {offsets = [0, 88], sizes = [16, 8], strides = [1, 1]} : vector<16x96xbf16> to vector<16x8xbf16>
    %329 = vector.shape_cast %328 : vector<16x8xbf16> to vector<2x8x8xbf16>
    "tpu.trace_start"() <{level = 10 : i32, message = "bqd,bkd->bqk"}> : () -> ()
    %cst_106 = arith.constant dense<0.000000e+00> : vector<2x8x8xf32>
    %330 = tpu.matmul %325, %327, %cst_106 {dimension_numbers = #tpu.dot_dimension_numbers<[2], [2], [1], [1], [0, 0, 0, 1, 1, 1], [0], [0]>} : vector<2x8x8xbf16>, vector<2x8x8xbf16>, vector<2x8x8xf32> -> vector<2x8x8xf32>
    "tpu.trace_stop"() : () -> ()
    %cst_107 = arith.constant 0.353553385 : f32
    %331 = vector.broadcast %cst_107 : f32 to vector<2x8x8xf32>
    %332 = arith.mulf %330, %331 : vector<2x8x8xf32>
    %333 = arith.addf %332, %2 : vector<2x8x8xf32>
    %cst_108 = arith.constant dense<0xFF800000> : vector<2x8xf32>
    %334 = vector.multi_reduction <maximumf>, %333, %cst_108 [2] : vector<2x8x8xf32> to vector<2x8xf32>
    %335 = vector.shape_cast %334 : vector<2x8xf32> to vector<2x8x1xf32>
    %336 = vector.broadcast %335 : vector<2x8x1xf32> to vector<2x8x8xf32>
    %337 = arith.subf %333, %336 : vector<2x8x8xf32>
    %338 = math.exp %337 : vector<2x8x8xf32>
    %cst_109 = arith.constant dense<0.000000e+00> : vector<2x8xf32>
    %339 = vector.multi_reduction <add>, %338, %cst_109 [2] : vector<2x8x8xf32> to vector<2x8xf32>
    %340 = vector.shape_cast %339 : vector<2x8xf32> to vector<2x8x1xf32>
    %341 = tpu.reciprocal %340 {approx = true} : vector<2x8x1xf32> -> vector<2x8x1xf32>
    %342 = vector.broadcast %341 : vector<2x8x1xf32> to vector<2x8x8xf32>
    %343 = arith.mulf %338, %342 : vector<2x8x8xf32>
    %344 = arith.truncf %343 : vector<2x8x8xf32> to vector<2x8x8xbf16>
    "tpu.trace_start"() <{level = 10 : i32, message = "bqk,bkd->bqd"}> : () -> ()
    %cst_110 = arith.constant dense<0.000000e+00> : vector<2x8x8xf32>
    %345 = tpu.matmul %344, %329, %cst_110 {dimension_numbers = #tpu.dot_dimension_numbers<[2], [1], [1], [2], [0, 0, 0, 1, 1, 2], [0], [0]>} : vector<2x8x8xbf16>, vector<2x8x8xbf16>, vector<2x8x8xf32> -> vector<2x8x8xf32>
    "tpu.trace_stop"() : () -> ()
    %346 = vector.shape_cast %345 : vector<2x8x8xf32> to vector<16x8xf32>
    %347 = arith.truncf %346 : vector<16x8xf32> to vector<16x8xbf16>
    %348 = vector.extract_strided_slice %241 {offsets = [24, 0], sizes = [8, 32], strides = [1, 1]} : vector<32x32xbf16> to vector<8x32xbf16>
    %cst_111 = arith.constant dense<0.000000e+00> : vector<16x32xf32>
    %349 = tpu.matmul %347, %348, %cst_111 {dimension_numbers = #tpu.dot_dimension_numbers<[1], [0], [0], [1], [0, 0, 1, 1], [], []>} : vector<16x8xbf16>, vector<8x32xbf16>, vector<16x32xf32> -> vector<16x32xf32>
    %350 = arith.addf %323, %349 : vector<16x32xf32>
    %351 = arith.addf %208, %350 : vector<16x32xf32>
    %c1_112 = arith.constant 1 : index
    %c0_113 = arith.constant 0 : index
    %352 = vector.load %arg6[%c1_112, %c0_113] : memref<2x32xf32, #tpu.memory_space<vmem>>, vector<1x32xf32>
    %353 = vector.shape_cast %352 : vector<1x32xf32> to vector<32xf32>
    %354 = vector.shape_cast %353 : vector<32xf32> to vector<1x32xf32>
    %355 = vector.broadcast %354 : vector<1x32xf32> to vector<16x32xf32>
    %356 = arith.addf %351, %355 : vector<16x32xf32>
    %c1_114 = arith.constant 1 : index
    %c0_115 = arith.constant 0 : index
    %357 = vector.load %arg7[%c1_114, %c0_115] : memref<2x32xf32, #tpu.memory_space<vmem>>, vector<1x32xf32>
    %358 = vector.shape_cast %357 : vector<1x32xf32> to vector<32xf32>
    %c1_116 = arith.constant 1 : index
    %c0_117 = arith.constant 0 : index
    %359 = vector.load %arg8[%c1_116, %c0_117] : memref<2x32xf32, #tpu.memory_space<vmem>>, vector<1x32xf32>
    %360 = vector.shape_cast %359 : vector<1x32xf32> to vector<32xf32>
    %cst_118 = arith.constant dense<0.000000e+00> : vector<16xf32>
    %361 = vector.multi_reduction <add>, %356, %cst_118 [1] : vector<16x32xf32> to vector<16xf32>
    %362 = vector.shape_cast %361 : vector<16xf32> to vector<16x1xf32>
    %cst_119 = arith.constant 3.200000e+01 : f32
    %363 = vector.broadcast %cst_119 : f32 to vector<16x1xf32>
    %364 = arith.divf %362, %363 : vector<16x1xf32>
    %365 = vector.broadcast %364 : vector<16x1xf32> to vector<16x32xf32>
    %366 = arith.subf %356, %365 : vector<16x32xf32>
    %367 = arith.mulf %366, %366 : vector<16x32xf32>
    %cst_120 = arith.constant dense<0.000000e+00> : vector<16xf32>
    %368 = vector.multi_reduction <add>, %367, %cst_120 [1] : vector<16x32xf32> to vector<16xf32>
    %369 = vector.shape_cast %368 : vector<16xf32> to vector<16x1xf32>
    %cst_121 = arith.constant 3.200000e+01 : f32
    %370 = vector.broadcast %cst_121 : f32 to vector<16x1xf32>
    %371 = arith.divf %369, %370 : vector<16x1xf32>
    %cst_122 = arith.constant 9.99999974E-6 : f32
    %372 = vector.broadcast %cst_122 : f32 to vector<16x1xf32>
    %373 = arith.addf %371, %372 : vector<16x1xf32>
    %374 = math.rsqrt %373 : vector<16x1xf32>
    %375 = vector.broadcast %374 : vector<16x1xf32> to vector<16x32xf32>
    %376 = arith.mulf %366, %375 : vector<16x32xf32>
    %377 = vector.shape_cast %358 : vector<32xf32> to vector<1x32xf32>
    %378 = vector.broadcast %377 : vector<1x32xf32> to vector<16x32xf32>
    %379 = arith.mulf %376, %378 : vector<16x32xf32>
    %380 = vector.shape_cast %360 : vector<32xf32> to vector<1x32xf32>
    %381 = vector.broadcast %380 : vector<1x32xf32> to vector<16x32xf32>
    %382 = arith.addf %379, %381 : vector<16x32xf32>
    %383 = arith.truncf %382 : vector<16x32xf32> to vector<16x32xbf16>
    %c1_123 = arith.constant 1 : index
    %c0_124 = arith.constant 0 : index
    %c0_125 = arith.constant 0 : index
    %384 = vector.load %arg9[%c1_123, %c0_124, %c0_125] : memref<2x32x64xbf16, #tpu.memory_space<vmem>>, vector<1x32x64xbf16>
    %385 = vector.shape_cast %384 : vector<1x32x64xbf16> to vector<32x64xbf16>
    %cst_126 = arith.constant dense<0.000000e+00> : vector<16x64xf32>
    %386 = tpu.matmul %383, %385, %cst_126 {dimension_numbers = #tpu.dot_dimension_numbers<[1], [0], [0], [1], [0, 0, 1, 1], [], []>} : vector<16x32xbf16>, vector<32x64xbf16>, vector<16x64xf32> -> vector<16x64xf32>
    %c1_127 = arith.constant 1 : index
    %c0_128 = arith.constant 0 : index
    %387 = vector.load %arg10[%c1_127, %c0_128] : memref<2x64xf32, #tpu.memory_space<vmem>>, vector<1x64xf32>
    %388 = vector.shape_cast %387 : vector<1x64xf32> to vector<64xf32>
    %389 = vector.shape_cast %388 : vector<64xf32> to vector<1x64xf32>
    %390 = vector.broadcast %389 : vector<1x64xf32> to vector<16x64xf32>
    %391 = arith.addf %386, %390 : vector<16x64xf32>
    %cst_129 = arith.constant 5.000000e-01 : f32
    %392 = vector.broadcast %cst_129 : f32 to vector<16x64xf32>
    %393 = arith.mulf %392, %391 : vector<16x64xf32>
    %cst_130 = arith.constant 4.471500e-02 : f32
    %394 = vector.broadcast %cst_130 : f32 to vector<16x64xf32>
    %395 = arith.mulf %394, %391 : vector<16x64xf32>
    %396 = arith.mulf %395, %391 : vector<16x64xf32>
    %397 = arith.mulf %396, %391 : vector<16x64xf32>
    %398 = arith.addf %391, %397 : vector<16x64xf32>
    %cst_131 = arith.constant 0.797884583 : f32
    %399 = vector.broadcast %cst_131 : f32 to vector<16x64xf32>
    %400 = arith.mulf %399, %398 : vector<16x64xf32>
    %401 = math.tanh %400 : vector<16x64xf32>
    %cst_132 = arith.constant 1.000000e+00 : f32
    %402 = vector.broadcast %cst_132 : f32 to vector<16x64xf32>
    %403 = arith.addf %402, %401 : vector<16x64xf32>
    %404 = arith.mulf %393, %403 : vector<16x64xf32>
    %405 = arith.truncf %404 : vector<16x64xf32> to vector<16x64xbf16>
    %c1_133 = arith.constant 1 : index
    %c0_134 = arith.constant 0 : index
    %c0_135 = arith.constant 0 : index
    %406 = vector.load %arg11[%c1_133, %c0_134, %c0_135] : memref<2x64x32xbf16, #tpu.memory_space<vmem>>, vector<1x64x32xbf16>
    %407 = vector.shape_cast %406 : vector<1x64x32xbf16> to vector<64x32xbf16>
    %cst_136 = arith.constant dense<0.000000e+00> : vector<16x32xf32>
    %408 = tpu.matmul %405, %407, %cst_136 {dimension_numbers = #tpu.dot_dimension_numbers<[1], [0], [0], [1], [0, 0, 1, 1], [], []>} : vector<16x64xbf16>, vector<64x32xbf16>, vector<16x32xf32> -> vector<16x32xf32>
    %c1_137 = arith.constant 1 : index
    %c0_138 = arith.constant 0 : index
    %409 = vector.load %arg12[%c1_137, %c0_138] : memref<2x32xf32, #tpu.memory_space<vmem>>, vector<1x32xf32>
    %410 = vector.shape_cast %409 : vector<1x32xf32> to vector<32xf32>
    %411 = vector.shape_cast %410 : vector<32xf32> to vector<1x32xf32>
    %412 = vector.broadcast %411 : vector<1x32xf32> to vector<16x32xf32>
    %413 = arith.addf %408, %412 : vector<16x32xf32>
    %414 = arith.addf %356, %413 : vector<16x32xf32>
    %415 = vector.shape_cast %414 : vector<16x32xf32> to vector<2x8x32xf32>
    %416 = vector.extract_strided_slice %415 {offsets = [0, 0, 0], sizes = [2, 1, 32], strides = [1, 1, 1]} : vector<2x8x32xf32> to vector<2x1x32xf32>
    %417 = vector.shape_cast %416 : vector<2x1x32xf32> to vector<2x32xf32>
    %c0_139 = arith.constant 0 : index
    %c0_140 = arith.constant 0 : index
    %418 = vector.load %arg13[%c0_139, %c0_140] : memref<1x32xf32, #tpu.memory_space<vmem>>, vector<1x32xf32>
    %419 = vector.shape_cast %418 : vector<1x32xf32> to vector<32xf32>
    %c0_141 = arith.constant 0 : index
    %c0_142 = arith.constant 0 : index
    %420 = vector.load %arg14[%c0_141, %c0_142] : memref<1x32xf32, #tpu.memory_space<vmem>>, vector<1x32xf32>
    %421 = vector.shape_cast %420 : vector<1x32xf32> to vector<32xf32>
    %cst_143 = arith.constant dense<0.000000e+00> : vector<2xf32>
    %422 = vector.multi_reduction <add>, %417, %cst_143 [1] : vector<2x32xf32> to vector<2xf32>
    %423 = vector.shape_cast %422 : vector<2xf32> to vector<2x1xf32>
    %cst_144 = arith.constant 3.200000e+01 : f32
    %424 = vector.broadcast %cst_144 : f32 to vector<2x1xf32>
    %425 = arith.divf %423, %424 : vector<2x1xf32>
    %426 = vector.broadcast %425 : vector<2x1xf32> to vector<2x32xf32>
    %427 = arith.subf %417, %426 : vector<2x32xf32>
    %428 = arith.mulf %427, %427 : vector<2x32xf32>
    %cst_145 = arith.constant dense<0.000000e+00> : vector<2xf32>
    %429 = vector.multi_reduction <add>, %428, %cst_145 [1] : vector<2x32xf32> to vector<2xf32>
    %430 = vector.shape_cast %429 : vector<2xf32> to vector<2x1xf32>
    %cst_146 = arith.constant 3.200000e+01 : f32
    %431 = vector.broadcast %cst_146 : f32 to vector<2x1xf32>
    %432 = arith.divf %430, %431 : vector<2x1xf32>
    %cst_147 = arith.constant 9.99999974E-6 : f32
    %433 = vector.broadcast %cst_147 : f32 to vector<2x1xf32>
    %434 = arith.addf %432, %433 : vector<2x1xf32>
    %435 = math.rsqrt %434 : vector<2x1xf32>
    %436 = vector.broadcast %435 : vector<2x1xf32> to vector<2x32xf32>
    %437 = arith.mulf %427, %436 : vector<2x32xf32>
    %438 = vector.shape_cast %419 : vector<32xf32> to vector<1x32xf32>
    %439 = vector.broadcast %438 : vector<1x32xf32> to vector<2x32xf32>
    %440 = arith.mulf %437, %439 : vector<2x32xf32>
    %441 = vector.shape_cast %421 : vector<32xf32> to vector<1x32xf32>
    %442 = vector.broadcast %441 : vector<1x32xf32> to vector<2x32xf32>
    %443 = arith.addf %440, %442 : vector<2x32xf32>
    %444 = arith.truncf %443 : vector<2x32xf32> to vector<2x32xbf16>
    %c0_148 = arith.constant 0 : index
    %c0_149 = arith.constant 0 : index
    %445 = vector.load %arg15[%c0_148, %c0_149] : memref<32x4xbf16, #tpu.memory_space<vmem>>, vector<32x4xbf16>
    %cst_150 = arith.constant dense<0.000000e+00> : vector<2x4xf32>
    %446 = tpu.matmul %444, %445, %cst_150 {dimension_numbers = #tpu.dot_dimension_numbers<[1], [0], [0], [1], [0, 0, 1, 1], [], []>} : vector<2x32xbf16>, vector<32x4xbf16>, vector<2x4xf32> -> vector<2x4xf32>
    %c0_151 = arith.constant 0 : index
    %c0_152 = arith.constant 0 : index
    %447 = vector.load %arg16[%c0_151, %c0_152] : memref<1x4xf32, #tpu.memory_space<vmem>>, vector<1x4xf32>
    %448 = vector.shape_cast %447 : vector<1x4xf32> to vector<4xf32>
    %449 = vector.shape_cast %448 : vector<4xf32> to vector<1x4xf32>
    %450 = vector.broadcast %449 : vector<1x4xf32> to vector<2x4xf32>
    %451 = arith.addf %446, %450 : vector<2x4xf32>
    %c0_153 = arith.constant 0 : index
    %c0_154 = arith.constant 0 : index
    %452 = vector.load %arg17[%c0_153, %c0_154] : memref<2x4xf32, #tpu.memory_space<vmem>>, vector<2x4xf32>
    tpu.vector_store %arg17[%c0_153, %c0_154], %451 {strides = array<i32>} : memref<2x4xf32, #tpu.memory_space<vmem>>, vector<2x4xf32>,
    return
  }
}

</mosaic_0001>

<llo_original>
// kernel: tpu_custom_call.1
$region0: #{tpu_custom_call.1}
  #allocation0 [shape = 'u32[]', space=smem, size = 0x4, offset = 0x4, fixed_abs, tag = 'smem constant byte address 0x4 - core index']
  #allocation1 [shape = 'u32[144,128]{1,0:T(1,128)}', space=vmem, size = 0x12000, scoped, tag = 'internal scratch']
  %s0 = inlined_call_operand.vmem [shape: f32[2,8,32], index: 0, kind: input, shape index: {}]
  %s1 = inlined_call_operand.hbm [shape: f32[2,8,8], index: 1, kind: input, shape index: {}]
  %s2 = inlined_call_operand.vmem [shape: f32[2,32], index: 2, kind: input, shape index: {}]
  %s3 = inlined_call_operand.vmem [shape: f32[2,32], index: 3, kind: input, shape index: {}]
  %s4 = inlined_call_operand.vmem [shape: bf16[2,32,96], index: 4, kind: input, shape index: {}]
  %s5 = inlined_call_operand.vmem [shape: bf16[2,32,32], index: 5, kind: input, shape index: {}]
  %s6 = inlined_call_operand.vmem [shape: f32[2,32], index: 6, kind: input, shape index: {}]
  %s7 = inlined_call_operand.vmem [shape: f32[2,32], index: 7, kind: input, shape index: {}]
  %s8 = inlined_call_operand.vmem [shape: f32[2,32], index: 8, kind: input, shape index: {}]
  %s9 = inlined_call_operand.vmem [shape: bf16[2,32,64], index: 9, kind: input, shape index: {}]
  %s10 = inlined_call_operand.hbm [shape: f32[2,64], index: 10, kind: input, shape index: {}]
  %s11 = inlined_call_operand.vmem [shape: bf16[2,64,32], index: 11, kind: input, shape index: {}]
  %s12 = inlined_call_operand.vmem [shape: f32[2,32], index: 12, kind: input, shape index: {}]
  %s13 = inlined_call_operand.vmem [shape: f32[1,32], index: 13, kind: input, shape index: {}]
  %s14 = inlined_call_operand.vmem [shape: f32[1,32], index: 14, kind: input, shape index: {}]
  %s15 = inlined_call_operand.vmem [shape: bf16[32,4], index: 15, kind: input, shape index: {}]
  %s16 = inlined_call_operand.vmem [shape: f32[1,4], index: 16, kind: input, shape index: {}]
  %s17 = inlined_call_operand.hbm [shape: f32[2,4], index: 17, kind: output, shape index: {}]
  %s18 = sld [smem:[#allocation0]]
  $region86: #{tpu_custom_call.1} parent=0
    _
  %s20 = ssub.s32 1, %s18
  %s21 = scalar_select 0, %s20, %s18
  $region1: #{tpu_custom_call.1} parent=0
    #allocation2 [shape = 'u8[8192]{0}', space=vmem, size = 0x2000, scoped, tag = 'input window, operand 1, single buffered']
    #allocation3 [shape = 's32[1]{0}', space=sflag, size = 0x4, scoped, tag = 'scoped memory for tpu_custom_call.1']
    #allocation4 [shape = 's32[1]{0}', space=sflag, size = 0x4, scoped, tag = 'scoped memory for tpu_custom_call.1']
    #allocation5 [shape = 'u8[1024]{0}', space=vmem, size = 0x400, scoped, tag = 'input window, operand 10, single buffered']
    #allocation6 [shape = 's32[1]{0}', space=sflag, size = 0x4, scoped, tag = 'scoped memory for tpu_custom_call.1']
    #allocation7 [shape = 'u8[1024]{0}', space=vmem, size = 0x400, scoped, tag = 'output window, operand 0, single buffered']
    %22 = vsyncpa [#allocation3], 0
    %23 = vsyncpa [#allocation6], 0
    %24 = vsyncpa [#allocation4], 0
    // Predicated region
    $region2: #{tpu_custom_call.1} parent=1 // pred_check
      _
    $region3: #{tpu_custom_call.1} parent=1 // pred_check_branch
      %26 = sbr.rel (0) target = $region5
    $region4: #{tpu_custom_call.1} parent=1 // pred_region
      _
    $region5: #{tpu_custom_call.1} parent=1 // pred_fallthru
      _
    // Predicated region
    $region6: #{tpu_custom_call.1} parent=1 // pred_check
      _
    $region7: #{tpu_custom_call.1} parent=1 // pred_check_branch
      %28 = sbr.rel (0) target = $region9
    $region8: #{tpu_custom_call.1} parent=1 // pred_region
      %s30 = ssub.s32 256, 256
      %31 = vsyncadd [#allocation3], %s30
      %s32 = sshll.u32 [#allocation2], 4
      %s33 = int_to_ptr.vmem [resolvable:$true] %s32
      %38 = dma.hbm_to_vmem [thread:$0]  %s1, 256, %s33, [#allocation3], 128, 128, 8
    $region9: #{tpu_custom_call.1} parent=1 // pred_fallthru
      _
    // Predicated region
    $region10: #{tpu_custom_call.1} parent=1 // pred_check
      _
    $region11: #{tpu_custom_call.1} parent=1 // pred_check_branch
      %40 = sbr.rel (0) target = $region13
    $region12: #{tpu_custom_call.1} parent=1 // pred_region
      _
    $region13: #{tpu_custom_call.1} parent=1 // pred_fallthru
      _
    // Predicated region
    $region14: #{tpu_custom_call.1} parent=1 // pred_check
      _
    $region15: #{tpu_custom_call.1} parent=1 // pred_check_branch
      %42 = sbr.rel (0) target = $region17
    $region16: #{tpu_custom_call.1} parent=1 // pred_region
      _
    $region17: #{tpu_custom_call.1} parent=1 // pred_fallthru
      _
    // Predicated region
    $region18: #{tpu_custom_call.1} parent=1 // pred_check
      _
    $region19: #{tpu_custom_call.1} parent=1 // pred_check_branch
      %44 = sbr.rel (0) target = $region21
    $region20: #{tpu_custom_call.1} parent=1 // pred_region
      _
    $region21: #{tpu_custom_call.1} parent=1 // pred_fallthru
      _
    // Predicated region
    $region22: #{tpu_custom_call.1} parent=1 // pred_check
      _
    $region23: #{tpu_custom_call.1} parent=1 // pred_check_branch
      %46 = sbr.rel (0) target = $region25
    $region24: #{tpu_custom_call.1} parent=1 // pred_region
      _
    $region25: #{tpu_custom_call.1} parent=1 // pred_fallthru
      _
    // Predicated region
    $region26: #{tpu_custom_call.1} parent=1 // pred_check
      _
    $region27: #{tpu_custom_call.1} parent=1 // pred_check_branch
      %48 = sbr.rel (0) target = $region29
    $region28: #{tpu_custom_call.1} parent=1 // pred_region
      _
    $region29: #{tpu_custom_call.1} parent=1 // pred_fallthru
      _
    // Predicated region
    $region30: #{tpu_custom_call.1} parent=1 // pred_check
      _
    $region31: #{tpu_custom_call.1} parent=1 // pred_check_branch
      %50 = sbr.rel (0) target = $region33
    $region32: #{tpu_custom_call.1} parent=1 // pred_region
      _
    $region33: #{tpu_custom_call.1} parent=1 // pred_fallthru
      _
    // Predicated region
    $region34: #{tpu_custom_call.1} parent=1 // pred_check
      _
    $region35: #{tpu_custom_call.1} parent=1 // pred_check_branch
      %52 = sbr.rel (0) target = $region37
    $region36: #{tpu_custom_call.1} parent=1 // pred_region
      _
    $region37: #{tpu_custom_call.1} parent=1 // pred_fallthru
      _
    // Predicated region
    $region38: #{tpu_custom_call.1} parent=1 // pred_check
      _
    $region39: #{tpu_custom_call.1} parent=1 // pred_check_branch
      %54 = sbr.rel (0) target = $region41
    $region40: #{tpu_custom_call.1} parent=1 // pred_region
      _
    $region41: #{tpu_custom_call.1} parent=1 // pred_fallthru
      _
    // Predicated region
    $region42: #{tpu_custom_call.1} parent=1 // pred_check
      _
    $region43: #{tpu_custom_call.1} parent=1 // pred_check_branch
      %56 = sbr.rel (0) target = $region45
    $region44: #{tpu_custom_call.1} parent=1 // pred_region
      %s58 = ssub.s32 32, 32
      %59 = vsyncadd [#allocation6], %s58
      %s61 = sshll.u32 [#allocation5], 4
      %s62 = int_to_ptr.vmem [resolvable:$true] %s61
      %64 = dma.hbm_to_vmem [thread:$0]  %s10, 32, %s62, [#allocation6]
    $region45: #{tpu_custom_call.1} parent=1 // pred_fallthru
      _
    // Predicated region
    $region46: #{tpu_custom_call.1} parent=1 // pred_check
      _
    $region47: #{tpu_custom_call.1} parent=1 // pred_check_branch
      %66 = sbr.rel (0) target = $region49
    $region48: #{tpu_custom_call.1} parent=1 // pred_region
      _
    $region49: #{tpu_custom_call.1} parent=1 // pred_fallthru
      _
    // Predicated region
    $region50: #{tpu_custom_call.1} parent=1 // pred_check
      _
    $region51: #{tpu_custom_call.1} parent=1 // pred_check_branch
      %68 = sbr.rel (0) target = $region53
    $region52: #{tpu_custom_call.1} parent=1 // pred_region
      _
    $region53: #{tpu_custom_call.1} parent=1 // pred_fallthru
      _
    // Predicated region
    $region54: #{tpu_custom_call.1} parent=1 // pred_check
      _
    $region55: #{tpu_custom_call.1} parent=1 // pred_check_branch
      %70 = sbr.rel (0) target = $region57
    $region56: #{tpu_custom_call.1} parent=1 // pred_region
      _
    $region57: #{tpu_custom_call.1} parent=1 // pred_fallthru
      _
    // Predicated region
    $region58: #{tpu_custom_call.1} parent=1 // pred_check
      _
    $region59: #{tpu_custom_call.1} parent=1 // pred_check_branch
      %72 = sbr.rel (0) target = $region61
    $region60: #{tpu_custom_call.1} parent=1 // pred_region
      _
    $region61: #{tpu_custom_call.1} parent=1 // pred_fallthru
      _
    // Predicated region
    $region62: #{tpu_custom_call.1} parent=1 // pred_check
      _
    $region63: #{tpu_custom_call.1} parent=1 // pred_check_branch
      %74 = sbr.rel (0) target = $region65
    $region64: #{tpu_custom_call.1} parent=1 // pred_region
      _
    $region65: #{tpu_custom_call.1} parent=1 // pred_fallthru
      _
    // Predicated region
    $region66: #{tpu_custom_call.1} parent=1 // pred_check
      _
    $region67: #{tpu_custom_call.1} parent=1 // pred_check_branch
      %76 = sbr.rel (0) target = $region69
    $region68: #{tpu_custom_call.1} parent=1 // pred_region
      _
    $region69: #{tpu_custom_call.1} parent=1 // pred_fallthru
      _
    // Predicated region
    $region70: #{tpu_custom_call.1} parent=1 // pred_check
      _
    $region71: #{tpu_custom_call.1} parent=1 // pred_check_branch
      %78 = sbr.rel (0) target = $region73
    $region72: #{tpu_custom_call.1} parent=1 // pred_region
      %79 = dma.done [#allocation3], 256
    $region73: #{tpu_custom_call.1} parent=1 // pred_fallthru
      _
    // Predicated region
    $region74: #{tpu_custom_call.1} parent=1 // pred_check
      _
    $region75: #{tpu_custom_call.1} parent=1 // pred_check_branch
      %81 = sbr.rel (0) target = $region77
    $region76: #{tpu_custom_call.1} parent=1 // pred_region
      %82 = dma.done [#allocation6], 32
    $region77: #{tpu_custom_call.1} parent=1 // pred_fallthru
      _
    %v84 = vld [vmem:[%s0] sm:$0xff]
    %v85 = vld [vmem:[%s0 + $0x8] sm:$0xff]
    %v86 = vld [vmem:[#allocation2] sm:$0xff]
    %v87 = vld [vmem:[#allocation2 + $0x8] sm:$0xff]
    %v88 = vld [vmem:[%s2] sm:$0x1]
    %v89 = vld [vmem:[%s3] sm:$0x1]
    %vm90 = vcmask 261120
    %v91 = vsel %vm90, %v84, 0.0
    %92 = vadd.xlane.f32.xlu0 %v91
    %v93 = vpop.xlane.xlu0 %92
    %v94 = vsel %vm90, %v85, 0.0
    %95 = vadd.xlane.f32.xlu0 %v94
    %v96 = vpop.xlane.xlu0 %95
    %v97 = vrcp.pop 32.0
    %v98 = vmul.f32 %v93, %v97
    %v99 = vmul.f32 %v96, %v97
    %v100 = vsub.f32 %v84, %v98
    %v101 = vsub.f32 %v85, %v99
    %v102 = vmul.f32 %v100, %v100
    %v103 = vmul.f32 %v101, %v101
    %v104 = vsel %vm90, %v102, 0.0
    %105 = vadd.xlane.f32.xlu0 %v104
    %v106 = vpop.xlane.xlu0 %105
    %v107 = vsel %vm90, %v103, 0.0
    %108 = vadd.xlane.f32.xlu0 %v107
    %v109 = vpop.xlane.xlu0 %108
    %v110 = vmul.f32 %v106, %v97
    %v111 = vmul.f32 %v109, %v97
    %v112 = vadd.f32 %v110, 1e-05
    %v113 = vadd.f32 %v111, 1e-05
    %v114 = vrsqrt.pop %v112
    %v115 = vrsqrt.pop %v113
    %v116 = vmul.f32 %v100, %v114
    %v117 = vmul.f32 %v101, %v115
    %v118 = vlaneseq
    %v119 = vshrl.u32 %v118, 7
    %v120 = vsub.s32 0, %v119
    %v121 = vrot.slane %v88, %v120
    %v122 = vmul.f32 %v116, %v121
    %v123 = vmul.f32 %v117, %v121
    %v124 = vlaneseq
    %v125 = vshrl.u32 %v124, 7
    %v126 = vsub.s32 0, %v125
    %v127 = vrot.slane %v89, %v126
    %v128 = vadd.f32 %v122, %v127
    %v129 = vadd.f32 %v123, %v127
    %v130 = vpack.c.bf16 %v129, %v128
    %v131 = vld [vmem:[%s4] sm:$0xf]
    %v132 = vld [vmem:[%s4 + $0x4] sm:$0xf]
    %v133 = vld [vmem:[%s4 + $0x8] sm:$0xf]
    %v134 = vld [vmem:[%s4 + $0xc] sm:$0xf]
    %v139 = vunpack.c.l.b16 %v131
    %v140 = vunpack.c.l.b16 %v132
    %v141 = vunpack.c.l.b16 %v133
    %v142 = vunpack.c.l.b16 %v134
    %v143 = vpack.c.b16 %v140, %v139
    %v144 = vpack.c.b16 %v142, %v141
    %v148 = vsel %vm90, %v130, 0
    %150 = vmatprep.subr.bf16.mxu0 0
    %151 = vmatpush1.bf16.msra.mxu0 %v143
    %152 = vmatprep.subr.bf16.mxu0 0
    %153 = vmatpush1.bf16.msra.mxu0 %v144
    %154 = vmatprep.subr.bf16.mxu0 0
    %155 = vmatpush1.bf16.msra.mxu0 0
    %156 = vmatprep.subr.bf16.mxu0 0
    %157 = vmatpush1.bf16.msra.mxu0 0
    %158 = vmatprep.subr.bf16.mxu0 0
    %159 = vmatpush1.bf16.msra.mxu0 0
    %160 = vmatprep.subr.bf16.mxu0 0
    %161 = vmatpush1.bf16.msra.mxu0 0
    %162 = vmatprep.subr.bf16.mxu0 0
    %163 = vmatpush1.bf16.msra.mxu0 0
    %164 = vmatprep.subr.bf16.mxu0 0
    %165 = vmatpush1.bf16.msra.mxu0 0
    %166 = vmatprep.subr.bf16.mxu0 0
    %167 = vmatpush1.bf16.msra.mxu0 0
    %168 = vmatprep.subr.bf16.mxu0 0
    %169 = vmatpush1.bf16.msra.mxu0 0
    %170 = vmatprep.subr.bf16.mxu0 0
    %171 = vmatpush1.bf16.msra.mxu0 0
    %172 = vmatprep.subr.bf16.mxu0 0
    %173 = vmatpush1.bf16.msra.mxu0 0
    %174 = vmatprep.subr.bf16.mxu0 0
    %175 = vmatpush1.bf16.msra.mxu0 0
    %176 = vmatprep.subr.bf16.mxu0 0
    %177 = vmatpush1.bf16.msra.mxu0 0
    %178 = vmatprep.subr.bf16.mxu0 0
    %179 = vmatpush1.bf16.msra.mxu0 0
    %180 = vmatprep.subr.bf16.mxu0 0
    %181 = vmatpush1.bf16.msra.mxu0 0
    %182 = vmatprep.mubr.bf16.mxu0 0
    %183 = vmatmul.mubr.bf16.gmra.mrb[0].mxu0 %v148
    %v184 = vpop.f32.mrb[0].mxu0
    %v185 = vadd.f32 0.0, %v184
    %v186 = vpop.f32.mrb[0].mxu0
    %v187 = vpop.f32.mrb[0].mxu0
    %v188 = vadd.f32 0.0, %v187
    %v189 = vpop.f32.mrb[0].mxu0
    %190 = vdwg.mxu0
    %v191 = vpack.c.bf16 %v188, %v185
    %v192 = vld [vmem:[%s5] sm:$0xf]
    %v193 = vld [vmem:[%s5 + $0x4] sm:$0xf]
    %v194 = vld [vmem:[%s5 + $0x8] sm:$0xf]
    %v195 = vld [vmem:[%s5 + $0xc] sm:$0xf]
    %v197 = vunpack.c.l.b16 %v191
    %v198 = vunpack.c.h.b16 %v191
    %v199 = vpack.c.b16 %v197, %v197
    %v200 = vpack.c.b16 %v198, %v198
    %201 = vrot.lane.b32.xlu0 %v199, 96
    %v202 = vpop.permute.xlu0 %201
    %vm203 = vcmask 64512
    %v205 = vsel %vm203, %v199, 0
    %v208 = vsel %vm203, %v202, 0
    %210 = vmatprep.subr.bf16.mxu0 0
    %211 = vmatpush1.bf16.xpose.msra.mxu0 %v208
    %212 = vmatprep.subr.bf16.mxu0 0
    %213 = vmatpush1.bf16.xpose.msra.mxu0 0
    %214 = vmatprep.subr.bf16.mxu0 0
    %215 = vmatpush1.bf16.xpose.msra.mxu0 0
    %216 = vmatprep.subr.bf16.mxu0 0
    %217 = vmatpush1.bf16.xpose.msra.mxu0 0
    %218 = vmatprep.subr.bf16.mxu0 0
    %219 = vmatpush1.bf16.xpose.msra.mxu0 0
    %220 = vmatprep.subr.bf16.mxu0 0
    %221 = vmatpush1.bf16.xpose.msra.mxu0 0
    %222 = vmatprep.subr.bf16.mxu0 0
    %223 = vmatpush1.bf16.xpose.msra.mxu0 0
    %224 = vmatprep.subr.bf16.mxu0 0
    %225 = vmatpush1.bf16.xpose.msra.mxu0 0
    %226 = vmatprep.subr.bf16.mxu0 0
    %227 = vmatpush1.bf16.xpose.msra.mxu0 0
    %228 = vmatprep.subr.bf16.mxu0 0
    %229 = vmatpush1.bf16.xpose.msra.mxu0 0
    %230 = vmatprep.subr.bf16.mxu0 0
    %231 = vmatpush1.bf16.xpose.msra.mxu0 0
    %232 = vmatprep.subr.bf16.mxu0 0
    %233 = vmatpush1.bf16.xpose.msra.mxu0 0
    %234 = vmatprep.subr.bf16.mxu0 0
    %235 = vmatpush1.bf16.xpose.msra.mxu0 0
    %236 = vmatprep.subr.bf16.mxu0 0
    %237 = vmatpush1.bf16.xpose.msra.mxu0 0
    %238 = vmatprep.subr.bf16.mxu0 0
    %239 = vmatpush1.bf16.xpose.msra.mxu0 0
    %240 = vmatprep.subr.bf16.mxu0 0
    %241 = vmatpush1.bf16.xpose.msra.mxu0 0
    %242 = vmatprep.mubr.bf16.mxu0 0
    %243 = vmatmul.mubr.bf16.gmra.mrb[0].mxu0 %v205
    %v244 = vpop.f32.mrb[0].mxu0
    %v245 = vadd.f32 0.0, %v244
    %v246 = vpop.f32.mrb[0].mxu0
    %v247 = vpop.f32.mrb[0].mxu0
    %v248 = vpop.f32.mrb[0].mxu0
    %249 = vdwg.mxu0
    %250 = vrot.lane.b32.xlu0 %v200, 96
    %v251 = vpop.permute.xlu0 %250
    %v253 = vsel %vm203, %v200, 0
    %v256 = vsel %vm203, %v251, 0
    %258 = vmatprep.subr.bf16.mxu0 0
    %259 = vmatpush1.bf16.xpose.msra.mxu0 %v256
    %260 = vmatprep.subr.bf16.mxu0 0
    %261 = vmatpush1.bf16.xpose.msra.mxu0 0
    %262 = vmatprep.subr.bf16.mxu0 0
    %263 = vmatpush1.bf16.xpose.msra.mxu0 0
    %264 = vmatprep.subr.bf16.mxu0 0
    %265 = vmatpush1.bf16.xpose.msra.mxu0 0
    %266 = vmatprep.subr.bf16.mxu0 0
    %267 = vmatpush1.bf16.xpose.msra.mxu0 0
    %268 = vmatprep.subr.bf16.mxu0 0
    %269 = vmatpush1.bf16.xpose.msra.mxu0 0
    %270 = vmatprep.subr.bf16.mxu0 0
    %271 = vmatpush1.bf16.xpose.msra.mxu0 0
    %272 = vmatprep.subr.bf16.mxu0 0
    %273 = vmatpush1.bf16.xpose.msra.mxu0 0
    %274 = vmatprep.subr.bf16.mxu0 0
    %275 = vmatpush1.bf16.xpose.msra.mxu0 0
    %276 = vmatprep.subr.bf16.mxu0 0
    %277 = vmatpush1.bf16.xpose.msra.mxu0 0
    %278 = vmatprep.subr.bf16.mxu0 0
    %279 = vmatpush1.bf16.xpose.msra.mxu0 0
    %280 = vmatprep.subr.bf16.mxu0 0
    %281 = vmatpush1.bf16.xpose.msra.mxu0 0
    %282 = vmatprep.subr.bf16.mxu0 0
    %283 = vmatpush1.bf16.xpose.msra.mxu0 0
    %284 = vmatprep.subr.bf16.mxu0 0
    %285 = vmatpush1.bf16.xpose.msra.mxu0 0
    %286 = vmatprep.subr.bf16.mxu0 0
    %287 = vmatpush1.bf16.xpose.msra.mxu0 0
    %288 = vmatprep.subr.bf16.mxu0 0
    %289 = vmatpush1.bf16.xpose.msra.mxu0 0
    %290 = vmatprep.mubr.bf16.mxu0 0
    %291 = vmatmul.mubr.bf16.gmra.mrb[0].mxu0 %v253
    %v292 = vpop.f32.mrb[0].mxu0
    %v293 = vadd.f32 0.0, %v292
    %v294 = vpop.f32.mrb[0].mxu0
    %v295 = vpop.f32.mrb[0].mxu0
    %v296 = vpop.f32.mrb[0].mxu0
    %297 = vdwg.mxu0
    %v298 = vmul.f32 %v245, 0.35355338
    %v299 = vmul.f32 %v293, 0.35355338
    %v300 = vadd.f32 %v298, %v86
    %v301 = vadd.f32 %v299, %v87
    %v302 = vsel %vm203, %v300, -inf
    %303 = vmax.xlane.f32.xlu0 %v302
    %v304 = vpop.xlane.xlu0 %303
    %v305 = vsel %vm203, %v301, -inf
    %306 = vmax.xlane.f32.xlu0 %v305
    %v307 = vpop.xlane.xlu0 %306
    %v308 = vsub.f32 %v300, %v304
    %v309 = vsub.f32 %v301, %v307
    %v310 = vmul.f32 %v308, 1.442695
    %v311 = vpow.pop %v310
    %v312 = vmul.f32 %v309, 1.442695
    %v313 = vpow.pop %v312
    %v314 = vsel %vm203, %v311, 0.0
    %315 = vadd.xlane.f32.xlu0 %v314
    %v316 = vpop.xlane.xlu0 %315
    %v317 = vsel %vm203, %v313, 0.0
    %318 = vadd.xlane.f32.xlu0 %v317
    %v319 = vpop.xlane.xlu0 %318
    %v320 = vrcp.pop %v316
    %v321 = vrcp.pop %v319
    %v322 = vmul.f32 %v311, %v320
    %v323 = vmul.f32 %v313, %v321
    %v324 = vpack.c.bf16 %v322, %v322
    %v325 = vpack.c.bf16 %v323, %v323
    %326 = vrot.lane.b32.xlu0 %v199, 64
    %v327 = vpop.permute.xlu0 %326
    %v329 = vsel %vm203, %v324, 0
    %vm331 = vcmask 1043456
    %v333 = vsel %vm331, %v327, 0
    %335 = vmatprep.subr.bf16.mxu0 0
    %336 = vmatpush1.bf16.msra.mxu0 %v333
    %337 = vmatprep.subr.bf16.mxu0 0
    %338 = vmatpush1.bf16.msra.mxu0 0
    %339 = vmatprep.subr.bf16.mxu0 0
    %340 = vmatpush1.bf16.msra.mxu0 0
    %341 = vmatprep.subr.bf16.mxu0 0
    %342 = vmatpush1.bf16.msra.mxu0 0
    %343 = vmatprep.subr.bf16.mxu0 0
    %344 = vmatpush1.bf16.msra.mxu0 0
    %345 = vmatprep.subr.bf16.mxu0 0
    %346 = vmatpush1.bf16.msra.mxu0 0
    %347 = vmatprep.subr.bf16.mxu0 0
    %348 = vmatpush1.bf16.msra.mxu0 0
    %349 = vmatprep.subr.bf16.mxu0 0
    %350 = vmatpush1.bf16.msra.mxu0 0
    %351 = vmatprep.subr.bf16.mxu0 0
    %352 = vmatpush1.bf16.msra.mxu0 0
    %353 = vmatprep.subr.bf16.mxu0 0
    %354 = vmatpush1.bf16.msra.mxu0 0
    %355 = vmatprep.subr.bf16.mxu0 0
    %356 = vmatpush1.bf16.msra.mxu0 0
    %357 = vmatprep.subr.bf16.mxu0 0
    %358 = vmatpush1.bf16.msra.mxu0 0
    %359 = vmatprep.subr.bf16.mxu0 0
    %360 = vmatpush1.bf16.msra.mxu0 0
    %361 = vmatprep.subr.bf16.mxu0 0
    %362 = vmatpush1.bf16.msra.mxu0 0
    %363 = vmatprep.subr.bf16.mxu0 0
    %364 = vmatpush1.bf16.msra.mxu0 0
    %365 = vmatprep.subr.bf16.mxu0 0
    %366 = vmatpush1.bf16.msra.mxu0 0
    %367 = vmatprep.mubr.bf16.mxu0 0
    %368 = vmatmul.mubr.bf16.gmra.mrb[0].mxu0 %v329
    %v369 = vpop.f32.mrb[0].mxu0
    %v370 = vadd.f32 0.0, %v369
    %v371 = vpop.f32.mrb[0].mxu0
    %v372 = vpop.f32.mrb[0].mxu0
    %v373 = vpop.f32.mrb[0].mxu0
    %374 = vdwg.mxu0
    %375 = vrot.lane.b32.xlu0 %v200, 64
    %v376 = vpop.permute.xlu0 %375
    %v378 = vsel %vm203, %v325, 0
    %v381 = vsel %vm331, %v376, 0
    %383 = vmatprep.subr.bf16.mxu0 0
    %384 = vmatpush1.bf16.msra.mxu0 %v381
    %385 = vmatprep.subr.bf16.mxu0 0
    %386 = vmatpush1.bf16.msra.mxu0 0
    %387 = vmatprep.subr.bf16.mxu0 0
    %388 = vmatpush1.bf16.msra.mxu0 0
    %389 = vmatprep.subr.bf16.mxu0 0
    %390 = vmatpush1.bf16.msra.mxu0 0
    %391 = vmatprep.subr.bf16.mxu0 0
    %392 = vmatpush1.bf16.msra.mxu0 0
    %393 = vmatprep.subr.bf16.mxu0 0
    %394 = vmatpush1.bf16.msra.mxu0 0
    %395 = vmatprep.subr.bf16.mxu0 0
    %396 = vmatpush1.bf16.msra.mxu0 0
    %397 = vmatprep.subr.bf16.mxu0 0
    %398 = vmatpush1.bf16.msra.mxu0 0
    %399 = vmatprep.subr.bf16.mxu0 0
    %400 = vmatpush1.bf16.msra.mxu0 0
    %401 = vmatprep.subr.bf16.mxu0 0
    %402 = vmatpush1.bf16.msra.mxu0 0
    %403 = vmatprep.subr.bf16.mxu0 0
    %404 = vmatpush1.bf16.msra.mxu0 0
    %405 = vmatprep.subr.bf16.mxu0 0
    %406 = vmatpush1.bf16.msra.mxu0 0
    %407 = vmatprep.subr.bf16.mxu0 0
    %408 = vmatpush1.bf16.msra.mxu0 0
    %409 = vmatprep.subr.bf16.mxu0 0
    %410 = vmatpush1.bf16.msra.mxu0 0
    %411 = vmatprep.subr.bf16.mxu0 0
    %412 = vmatpush1.bf16.msra.mxu0 0
    %413 = vmatprep.subr.bf16.mxu0 0
    %414 = vmatpush1.bf16.msra.mxu0 0
    %415 = vmatprep.mubr.bf16.mxu0 0
    %416 = vmatmul.mubr.bf16.gmra.mrb[0].mxu0 %v378
    %v417 = vpop.f32.mrb[0].mxu0
    %v418 = vadd.f32 0.0, %v417
    %v419 = vpop.f32.mrb[0].mxu0
    %v420 = vpop.f32.mrb[0].mxu0
    %v421 = vpop.f32.mrb[0].mxu0
    %422 = vdwg.mxu0
    %v423 = vpack.c.bf16 %v418, %v370
    %424 = vrot.lane.b32.xlu0 %v199, 120
    %v425 = vpop.permute.xlu0 %424
    %426 = vrot.lane.b32.xlu0 %v199, 88
    %v427 = vpop.permute.xlu0 %426
    %v429 = vsel %vm203, %v425, 0
    %v432 = vsel %vm203, %v427, 0
    %434 = vmatprep.subr.bf16.mxu0 0
    %435 = vmatpush1.bf16.xpose.msra.mxu0 %v432
    %436 = vmatprep.subr.bf16.mxu0 0
    %437 = vmatpush1.bf16.xpose.msra.mxu0 0
    %438 = vmatprep.subr.bf16.mxu0 0
    %439 = vmatpush1.bf16.xpose.msra.mxu0 0
    %440 = vmatprep.subr.bf16.mxu0 0
    %441 = vmatpush1.bf16.xpose.msra.mxu0 0
    %442 = vmatprep.subr.bf16.mxu0 0
    %443 = vmatpush1.bf16.xpose.msra.mxu0 0
    %444 = vmatprep.subr.bf16.mxu0 0
    %445 = vmatpush1.bf16.xpose.msra.mxu0 0
    %446 = vmatprep.subr.bf16.mxu0 0
    %447 = vmatpush1.bf16.xpose.msra.mxu0 0
    %448 = vmatprep.subr.bf16.mxu0 0
    %449 = vmatpush1.bf16.xpose.msra.mxu0 0
    %450 = vmatprep.subr.bf16.mxu0 0
    %451 = vmatpush1.bf16.xpose.msra.mxu0 0
    %452 = vmatprep.subr.bf16.mxu0 0
    %453 = vmatpush1.bf16.xpose.msra.mxu0 0
    %454 = vmatprep.subr.bf16.mxu0 0
    %455 = vmatpush1.bf16.xpose.msra.mxu0 0
    %456 = vmatprep.subr.bf16.mxu0 0
    %457 = vmatpush1.bf16.xpose.msra.mxu0 0
    %458 = vmatprep.subr.bf16.mxu0 0
    %459 = vmatpush1.bf16.xpose.msra.mxu0 0
    %460 = vmatprep.subr.bf16.mxu0 0
    %461 = vmatpush1.bf16.xpose.msra.mxu0 0
    %462 = vmatprep.subr.bf16.mxu0 0
    %463 = vmatpush1.bf16.xpose.msra.mxu0 0
    %464 = vmatprep.subr.bf16.mxu0 0
    %465 = vmatpush1.bf16.xpose.msra.mxu0 0
    %466 = vmatprep.mubr.bf16.mxu0 0
    %467 = vmatmul.mubr.bf16.gmra.mrb[0].mxu0 %v429
    %v468 = vpop.f32.mrb[0].mxu0
    %v469 = vadd.f32 0.0, %v468
    %v470 = vpop.f32.mrb[0].mxu0
    %v471 = vpop.f32.mrb[0].mxu0
    %v472 = vpop.f32.mrb[0].mxu0
    %473 = vdwg.mxu0
    %474 = vrot.lane.b32.xlu0 %v200, 120
    %v475 = vpop.permute.xlu0 %474
    %476 = vrot.lane.b32.xlu0 %v200, 88
    %v477 = vpop.permute.xlu0 %476
    %v479 = vsel %vm203, %v475, 0
    %v482 = vsel %vm203, %v477, 0
    %484 = vmatprep.subr.bf16.mxu0 0
    %485 = vmatpush1.bf16.xpose.msra.mxu0 %v482
    %486 = vmatprep.subr.bf16.mxu0 0
    %487 = vmatpush1.bf16.xpose.msra.mxu0 0
    %488 = vmatprep.subr.bf16.mxu0 0
    %489 = vmatpush1.bf16.xpose.msra.mxu0 0
    %490 = vmatprep.subr.bf16.mxu0 0
    %491 = vmatpush1.bf16.xpose.msra.mxu0 0
    %492 = vmatprep.subr.bf16.mxu0 0
    %493 = vmatpush1.bf16.xpose.msra.mxu0 0
    %494 = vmatprep.subr.bf16.mxu0 0
    %495 = vmatpush1.bf16.xpose.msra.mxu0 0
    %496 = vmatprep.subr.bf16.mxu0 0
    %497 = vmatpush1.bf16.xpose.msra.mxu0 0
    %498 = vmatprep.subr.bf16.mxu0 0
    %499 = vmatpush1.bf16.xpose.msra.mxu0 0
    %500 = vmatprep.subr.bf16.mxu0 0
    %501 = vmatpush1.bf16.xpose.msra.mxu0 0
    %502 = vmatprep.subr.bf16.mxu0 0
    %503 = vmatpush1.bf16.xpose.msra.mxu0 0
    %504 = vmatprep.subr.bf16.mxu0 0
    %505 = vmatpush1.bf16.xpose.msra.mxu0 0
    %506 = vmatprep.subr.bf16.mxu0 0
    %507 = vmatpush1.bf16.xpose.msra.mxu0 0
    %508 = vmatprep.subr.bf16.mxu0 0
    %509 = vmatpush1.bf16.xpose.msra.mxu0 0
    %510 = vmatprep.subr.bf16.mxu0 0
    %511 = vmatpush1.bf16.xpose.msra.mxu0 0
    %512 = vmatprep.subr.bf16.mxu0 0
    %513 = vmatpush1.bf16.xpose.msra.mxu0 0
    %514 = vmatprep.subr.bf16.mxu0 0
    %515 = vmatpush1.bf16.xpose.msra.mxu0 0
    %516 = vmatprep.mubr.bf16.mxu0 0
    %517 = vmatmul.mubr.bf16.gmra.mrb[0].mxu0 %v479
    %v518 = vpop.f32.mrb[0].mxu0
    %v519 = vadd.f32 0.0, %v518
    %v520 = vpop.f32.mrb[0].mxu0
    %v521 = vpop.f32.mrb[0].mxu0
    %v522 = vpop.f32.mrb[0].mxu0
    %523 = vdwg.mxu0
    %v524 = vmul.f32 %v469, 0.35355338
    %v525 = vmul.f32 %v519, 0.35355338
    %v526 = vadd.f32 %v524, %v86
    %v527 = vadd.f32 %v525, %v87
    %v528 = vsel %vm203, %v526, -inf
    %529 = vmax.xlane.f32.xlu0 %v528
    %v530 = vpop.xlane.xlu0 %529
    %v531 = vsel %vm203, %v527, -inf
    %532 = vmax.xlane.f32.xlu0 %v531
    %v533 = vpop.xlane.xlu0 %532
    %v534 = vsub.f32 %v526, %v530
    %v535 = vsub.f32 %v527, %v533
    %v536 = vmul.f32 %v534, 1.442695
    %v537 = vpow.pop %v536
    %v538 = vmul.f32 %v535, 1.442695
    %v539 = vpow.pop %v538
    %v540 = vsel %vm203, %v537, 0.0
    %541 = vadd.xlane.f32.xlu0 %v540
    %v542 = vpop.xlane.xlu0 %541
    %v543 = vsel %vm203, %v539, 0.0
    %544 = vadd.xlane.f32.xlu0 %v543
    %v545 = vpop.xlane.xlu0 %544
    %v546 = vrcp.pop %v542
    %v547 = vrcp.pop %v545
    %v548 = vmul.f32 %v537, %v546
    %v549 = vmul.f32 %v539, %v547
    %v550 = vpack.c.bf16 %v548, %v548
    %v551 = vpack.c.bf16 %v549, %v549
    %552 = vrot.lane.b32.xlu0 %v199, 56
    %v553 = vpop.permute.xlu0 %552
    %v555 = vsel %vm203, %v550, 0
    %v558 = vsel %vm331, %v553, 0
    %560 = vmatprep.subr.bf16.mxu0 0
    %561 = vmatpush1.bf16.msra.mxu0 %v558
    %562 = vmatprep.subr.bf16.mxu0 0
    %563 = vmatpush1.bf16.msra.mxu0 0
    %564 = vmatprep.subr.bf16.mxu0 0
    %565 = vmatpush1.bf16.msra.mxu0 0
    %566 = vmatprep.subr.bf16.mxu0 0
    %567 = vmatpush1.bf16.msra.mxu0 0
    %568 = vmatprep.subr.bf16.mxu0 0
    %569 = vmatpush1.bf16.msra.mxu0 0
    %570 = vmatprep.subr.bf16.mxu0 0
    %571 = vmatpush1.bf16.msra.mxu0 0
    %572 = vmatprep.subr.bf16.mxu0 0
    %573 = vmatpush1.bf16.msra.mxu0 0
    %574 = vmatprep.subr.bf16.mxu0 0
    %575 = vmatpush1.bf16.msra.mxu0 0
    %576 = vmatprep.subr.bf16.mxu0 0
    %577 = vmatpush1.bf16.msra.mxu0 0
    %578 = vmatprep.subr.bf16.mxu0 0
    %579 = vmatpush1.bf16.msra.mxu0 0
    %580 = vmatprep.subr.bf16.mxu0 0
    %581 = vmatpush1.bf16.msra.mxu0 0
    %582 = vmatprep.subr.bf16.mxu0 0
    %583 = vmatpush1.bf16.msra.mxu0 0
    %584 = vmatprep.subr.bf16.mxu0 0
    %585 = vmatpush1.bf16.msra.mxu0 0
    %586 = vmatprep.subr.bf16.mxu0 0
    %587 = vmatpush1.bf16.msra.mxu0 0
    %588 = vmatprep.subr.bf16.mxu0 0
    %589 = vmatpush1.bf16.msra.mxu0 0
    %590 = vmatprep.subr.bf16.mxu0 0
    %591 = vmatpush1.bf16.msra.mxu0 0
    %592 = vmatprep.mubr.bf16.mxu0 0
    %593 = vmatmul.mubr.bf16.gmra.mrb[0].mxu0 %v555
    %v594 = vpop.f32.mrb[0].mxu0
    %v595 = vadd.f32 0.0, %v594
    %v596 = vpop.f32.mrb[0].mxu0
    %v597 = vpop.f32.mrb[0].mxu0
    %v598 = vpop.f32.mrb[0].mxu0
    %599 = vdwg.mxu0
    %600 = vrot.lane.b32.xlu0 %v200, 56
    %v601 = vpop.permute.xlu0 %600
    %v603 = vsel %vm203, %v551, 0
    %v606 = vsel %vm331, %v601, 0
    %608 = vmatprep.subr.bf16.mxu0 0
    %609 = vmatpush1.bf16.msra.mxu0 %v606
    %610 = vmatprep.subr.bf16.mxu0 0
    %611 = vmatpush1.bf16.msra.mxu0 0
    %612 = vmatprep.subr.bf16.mxu0 0
    %613 = vmatpush1.bf16.msra.mxu0 0
    %614 = vmatprep.subr.bf16.mxu0 0
    %615 = vmatpush1.bf16.msra.mxu0 0
    %616 = vmatprep.subr.bf16.mxu0 0
    %617 = vmatpush1.bf16.msra.mxu0 0
    %618 = vmatprep.subr.bf16.mxu0 0
    %619 = vmatpush1.bf16.msra.mxu0 0
    %620 = vmatprep.subr.bf16.mxu0 0
    %621 = vmatpush1.bf16.msra.mxu0 0
    %622 = vmatprep.subr.bf16.mxu0 0
    %623 = vmatpush1.bf16.msra.mxu0 0
    %624 = vmatprep.subr.bf16.mxu0 0
    %625 = vmatpush1.bf16.msra.mxu0 0
    %626 = vmatprep.subr.bf16.mxu0 0
    %627 = vmatpush1.bf16.msra.mxu0 0
    %628 = vmatprep.subr.bf16.mxu0 0
    %629 = vmatpush1.bf16.msra.mxu0 0
    %630 = vmatprep.subr.bf16.mxu0 0
    %631 = vmatpush1.bf16.msra.mxu0 0
    %632 = vmatprep.subr.bf16.mxu0 0
    %633 = vmatpush1.bf16.msra.mxu0 0
    %634 = vmatprep.subr.bf16.mxu0 0
    %635 = vmatpush1.bf16.msra.mxu0 0
    %636 = vmatprep.subr.bf16.mxu0 0
    %637 = vmatpush1.bf16.msra.mxu0 0
    %638 = vmatprep.subr.bf16.mxu0 0
    %639 = vmatpush1.bf16.msra.mxu0 0
    %640 = vmatprep.mubr.bf16.mxu0 0
    %641 = vmatmul.mubr.bf16.gmra.mrb[0].mxu0 %v603
    %v642 = vpop.f32.mrb[0].mxu0
    %v643 = vadd.f32 0.0, %v642
    %v644 = vpop.f32.mrb[0].mxu0
    %v645 = vpop.f32.mrb[0].mxu0
    %v646 = vpop.f32.mrb[0].mxu0
    %647 = vdwg.mxu0
    %v648 = vpack.c.bf16 %v643, %v595
    %v650 = vsel %vm203, %v648, 0
    %v653 = vsel %vm331, %v193, 0
    %655 = vmatprep.subr.bf16.mxu0 0
    %656 = vmatpush1.bf16.msra.mxu0 %v653
    %657 = vmatprep.subr.bf16.mxu0 0
    %658 = vmatpush1.bf16.msra.mxu0 0
    %659 = vmatprep.subr.bf16.mxu0 0
    %660 = vmatpush1.bf16.msra.mxu0 0
    %661 = vmatprep.subr.bf16.mxu0 0
    %662 = vmatpush1.bf16.msra.mxu0 0
    %663 = vmatprep.subr.bf16.mxu0 0
    %664 = vmatpush1.bf16.msra.mxu0 0
    %665 = vmatprep.subr.bf16.mxu0 0
    %666 = vmatpush1.bf16.msra.mxu0 0
    %667 = vmatprep.subr.bf16.mxu0 0
    %668 = vmatpush1.bf16.msra.mxu0 0
    %669 = vmatprep.subr.bf16.mxu0 0
    %670 = vmatpush1.bf16.msra.mxu0 0
    %671 = vmatprep.subr.bf16.mxu0 0
    %672 = vmatpush1.bf16.msra.mxu0 0
    %673 = vmatprep.subr.bf16.mxu0 0
    %674 = vmatpush1.bf16.msra.mxu0 0
    %675 = vmatprep.subr.bf16.mxu0 0
    %676 = vmatpush1.bf16.msra.mxu0 0
    %677 = vmatprep.subr.bf16.mxu0 0
    %678 = vmatpush1.bf16.msra.mxu0 0
    %679 = vmatprep.subr.bf16.mxu0 0
    %680 = vmatpush1.bf16.msra.mxu0 0
    %681 = vmatprep.subr.bf16.mxu0 0
    %682 = vmatpush1.bf16.msra.mxu0 0
    %683 = vmatprep.subr.bf16.mxu0 0
    %684 = vmatpush1.bf16.msra.mxu0 0
    %685 = vmatprep.subr.bf16.mxu0 0
    %686 = vmatpush1.bf16.msra.mxu0 0
    %687 = vmatprep.mubr.bf16.mxu0 0
    %688 = vmatmul.mubr.bf16.gmra.mrb[0].mxu0 %v650
    %v689 = vpop.f32.mrb[0].mxu0
    %v690 = vadd.f32 0.0, %v689
    %v691 = vpop.f32.mrb[0].mxu0
    %v692 = vpop.f32.mrb[0].mxu0
    %v693 = vadd.f32 0.0, %v692
    %v694 = vpop.f32.mrb[0].mxu0
    %695 = vdwg.mxu0
    %v697 = vsel %vm203, %v423, 0
    %v700 = vsel %vm331, %v192, 0
    %702 = vmatprep.subr.bf16.mxu0 0
    %703 = vmatpush1.bf16.msra.mxu0 %v700
    %704 = vmatprep.subr.bf16.mxu0 0
    %705 = vmatpush1.bf16.msra.mxu0 0
    %706 = vmatprep.subr.bf16.mxu0 0
    %707 = vmatpush1.bf16.msra.mxu0 0
    %708 = vmatprep.subr.bf16.mxu0 0
    %709 = vmatpush1.bf16.msra.mxu0 0
    %710 = vmatprep.subr.bf16.mxu0 0
    %711 = vmatpush1.bf16.msra.mxu0 0
    %712 = vmatprep.subr.bf16.mxu0 0
    %713 = vmatpush1.bf16.msra.mxu0 0
    %714 = vmatprep.subr.bf16.mxu0 0
    %715 = vmatpush1.bf16.msra.mxu0 0
    %716 = vmatprep.subr.bf16.mxu0 0
    %717 = vmatpush1.bf16.msra.mxu0 0
    %718 = vmatprep.subr.bf16.mxu0 0
    %719 = vmatpush1.bf16.msra.mxu0 0
    %720 = vmatprep.subr.bf16.mxu0 0
    %721 = vmatpush1.bf16.msra.mxu0 0
    %722 = vmatprep.subr.bf16.mxu0 0
    %723 = vmatpush1.bf16.msra.mxu0 0
    %724 = vmatprep.subr.bf16.mxu0 0
    %725 = vmatpush1.bf16.msra.mxu0 0
    %726 = vmatprep.subr.bf16.mxu0 0
    %727 = vmatpush1.bf16.msra.mxu0 0
    %728 = vmatprep.subr.bf16.mxu0 0
    %729 = vmatpush1.bf16.msra.mxu0 0
    %730 = vmatprep.subr.bf16.mxu0 0
    %731 = vmatpush1.bf16.msra.mxu0 0
    %732 = vmatprep.subr.bf16.mxu0 0
    %733 = vmatpush1.bf16.msra.mxu0 0
    %734 = vmatprep.mubr.bf16.mxu0 0
    %735 = vmatmul.mubr.bf16.gmra.mrb[0].mxu0 %v697
    %v736 = vpop.f32.mrb[0].mxu0
    %v737 = vadd.f32 %v690, %v736
    %v738 = vpop.f32.mrb[0].mxu0
    %v739 = vpop.f32.mrb[0].mxu0
    %v740 = vadd.f32 %v693, %v739
    %v741 = vpop.f32.mrb[0].mxu0
    %742 = vdwg.mxu0
    %743 = vrot.lane.b32.xlu0 %v199, 112
    %v744 = vpop.permute.xlu0 %743
    %745 = vrot.lane.b32.xlu0 %v199, 80
    %v746 = vpop.permute.xlu0 %745
    %v748 = vsel %vm203, %v744, 0
    %v751 = vsel %vm203, %v746, 0
    %753 = vmatprep.subr.bf16.mxu0 0
    %754 = vmatpush1.bf16.xpose.msra.mxu0 %v751
    %755 = vmatprep.subr.bf16.mxu0 0
    %756 = vmatpush1.bf16.xpose.msra.mxu0 0
    %757 = vmatprep.subr.bf16.mxu0 0
    %758 = vmatpush1.bf16.xpose.msra.mxu0 0
    %759 = vmatprep.subr.bf16.mxu0 0
    %760 = vmatpush1.bf16.xpose.msra.mxu0 0
    %761 = vmatprep.subr.bf16.mxu0 0
    %762 = vmatpush1.bf16.xpose.msra.mxu0 0
    %763 = vmatprep.subr.bf16.mxu0 0
    %764 = vmatpush1.bf16.xpose.msra.mxu0 0
    %765 = vmatprep.subr.bf16.mxu0 0
    %766 = vmatpush1.bf16.xpose.msra.mxu0 0
    %767 = vmatprep.subr.bf16.mxu0 0
    %768 = vmatpush1.bf16.xpose.msra.mxu0 0
    %769 = vmatprep.subr.bf16.mxu0 0
    %770 = vmatpush1.bf16.xpose.msra.mxu0 0
    %771 = vmatprep.subr.bf16.mxu0 0
    %772 = vmatpush1.bf16.xpose.msra.mxu0 0
    %773 = vmatprep.subr.bf16.mxu0 0
    %774 = vmatpush1.bf16.xpose.msra.mxu0 0
    %775 = vmatprep.subr.bf16.mxu0 0
    %776 = vmatpush1.bf16.xpose.msra.mxu0 0
    %777 = vmatprep.subr.bf16.mxu0 0
    %778 = vmatpush1.bf16.xpose.msra.mxu0 0
    %779 = vmatprep.subr.bf16.mxu0 0
    %780 = vmatpush1.bf16.xpose.msra.mxu0 0
    %781 = vmatprep.subr.bf16.mxu0 0
    %782 = vmatpush1.bf16.xpose.msra.mxu0 0
    %783 = vmatprep.subr.bf16.mxu0 0
    %784 = vmatpush1.bf16.xpose.msra.mxu0 0
    %785 = vmatprep.mubr.bf16.mxu0 0
    %786 = vmatmul.mubr.bf16.gmra.mrb[0].mxu0 %v748
    %v787 = vpop.f32.mrb[0].mxu0
    %v788 = vadd.f32 0.0, %v787
    %v789 = vpop.f32.mrb[0].mxu0
    %v790 = vpop.f32.mrb[0].mxu0
    %v791 = vpop.f32.mrb[0].mxu0
    %792 = vdwg.mxu0
    %793 = vrot.lane.b32.xlu0 %v200, 112
    %v794 = vpop.permute.xlu0 %793
    %795 = vrot.lane.b32.xlu0 %v200, 80
    %v796 = vpop.permute.xlu0 %795
    %v798 = vsel %vm203, %v794, 0
    %v801 = vsel %vm203, %v796, 0
    %803 = vmatprep.subr.bf16.mxu0 0
    %804 = vmatpush1.bf16.xpose.msra.mxu0 %v801
    %805 = vmatprep.subr.bf16.mxu0 0
    %806 = vmatpush1.bf16.xpose.msra.mxu0 0
    %807 = vmatprep.subr.bf16.mxu0 0
    %808 = vmatpush1.bf16.xpose.msra.mxu0 0
    %809 = vmatprep.subr.bf16.mxu0 0
    %810 = vmatpush1.bf16.xpose.msra.mxu0 0
    %811 = vmatprep.subr.bf16.mxu0 0
    %812 = vmatpush1.bf16.xpose.msra.mxu0 0
    %813 = vmatprep.subr.bf16.mxu0 0
    %814 = vmatpush1.bf16.xpose.msra.mxu0 0
    %815 = vmatprep.subr.bf16.mxu0 0
    %816 = vmatpush1.bf16.xpose.msra.mxu0 0
    %817 = vmatprep.subr.bf16.mxu0 0
    %818 = vmatpush1.bf16.xpose.msra.mxu0 0
    %819 = vmatprep.subr.bf16.mxu0 0
    %820 = vmatpush1.bf16.xpose.msra.mxu0 0
    %821 = vmatprep.subr.bf16.mxu0 0
    %822 = vmatpush1.bf16.xpose.msra.mxu0 0
    %823 = vmatprep.subr.bf16.mxu0 0
    %824 = vmatpush1.bf16.xpose.msra.mxu0 0
    %825 = vmatprep.subr.bf16.mxu0 0
    %826 = vmatpush1.bf16.xpose.msra.mxu0 0
    %827 = vmatprep.subr.bf16.mxu0 0
    %828 = vmatpush1.bf16.xpose.msra.mxu0 0
    %829 = vmatprep.subr.bf16.mxu0 0
    %830 = vmatpush1.bf16.xpose.msra.mxu0 0
    %831 = vmatprep.subr.bf16.mxu0 0
    %832 = vmatpush1.bf16.xpose.msra.mxu0 0
    %833 = vmatprep.subr.bf16.mxu0 0
    %834 = vmatpush1.bf16.xpose.msra.mxu0 0
    %835 = vmatprep.mubr.bf16.mxu0 0
    %836 = vmatmul.mubr.bf16.gmra.mrb[0].mxu0 %v798
    %v837 = vpop.f32.mrb[0].mxu0
    %v838 = vadd.f32 0.0, %v837
    %v839 = vpop.f32.mrb[0].mxu0
    %v840 = vpop.f32.mrb[0].mxu0
    %v841 = vpop.f32.mrb[0].mxu0
    %842 = vdwg.mxu0
    %v843 = vmul.f32 %v788, 0.35355338
    %v844 = vmul.f32 %v838, 0.35355338
    %v845 = vadd.f32 %v843, %v86
    %v846 = vadd.f32 %v844, %v87
    %v847 = vsel %vm203, %v845, -inf
    %848 = vmax.xlane.f32.xlu0 %v847
    %v849 = vpop.xlane.xlu0 %848
    %v850 = vsel %vm203, %v846, -inf
    %851 = vmax.xlane.f32.xlu0 %v850
    %v852 = vpop.xlane.xlu0 %851
    %v853 = vsub.f32 %v845, %v849
    %v854 = vsub.f32 %v846, %v852
    %v855 = vmul.f32 %v853, 1.442695
    %v856 = vpow.pop %v855
    %v857 = vmul.f32 %v854, 1.442695
    %v858 = vpow.pop %v857
    %v859 = vsel %vm203, %v856, 0.0
    %860 = vadd.xlane.f32.xlu0 %v859
    %v861 = vpop.xlane.xlu0 %860
    %v862 = vsel %vm203, %v858, 0.0
    %863 = vadd.xlane.f32.xlu0 %v862
    %v864 = vpop.xlane.xlu0 %863
    %v865 = vrcp.pop %v861
    %v866 = vrcp.pop %v864
    %v867 = vmul.f32 %v856, %v865
    %v868 = vmul.f32 %v858, %v866
    %v869 = vpack.c.bf16 %v867, %v867
    %v870 = vpack.c.bf16 %v868, %v868
    %871 = vrot.lane.b32.xlu0 %v199, 48
    %v872 = vpop.permute.xlu0 %871
    %v874 = vsel %vm203, %v869, 0
    %v877 = vsel %vm331, %v872, 0
    %879 = vmatprep.subr.bf16.mxu0 0
    %880 = vmatpush1.bf16.msra.mxu0 %v877
    %881 = vmatprep.subr.bf16.mxu0 0
    %882 = vmatpush1.bf16.msra.mxu0 0
    %883 = vmatprep.subr.bf16.mxu0 0
    %884 = vmatpush1.bf16.msra.mxu0 0
    %885 = vmatprep.subr.bf16.mxu0 0
    %886 = vmatpush1.bf16.msra.mxu0 0
    %887 = vmatprep.subr.bf16.mxu0 0
    %888 = vmatpush1.bf16.msra.mxu0 0
    %889 = vmatprep.subr.bf16.mxu0 0
    %890 = vmatpush1.bf16.msra.mxu0 0
    %891 = vmatprep.subr.bf16.mxu0 0
    %892 = vmatpush1.bf16.msra.mxu0 0
    %893 = vmatprep.subr.bf16.mxu0 0
    %894 = vmatpush1.bf16.msra.mxu0 0
    %895 = vmatprep.subr.bf16.mxu0 0
    %896 = vmatpush1.bf16.msra.mxu0 0
    %897 = vmatprep.subr.bf16.mxu0 0
    %898 = vmatpush1.bf16.msra.mxu0 0
    %899 = vmatprep.subr.bf16.mxu0 0
    %900 = vmatpush1.bf16.msra.mxu0 0
    %901 = vmatprep.subr.bf16.mxu0 0
    %902 = vmatpush1.bf16.msra.mxu0 0
    %903 = vmatprep.subr.bf16.mxu0 0
    %904 = vmatpush1.bf16.msra.mxu0 0
    %905 = vmatprep.subr.bf16.mxu0 0
    %906 = vmatpush1.bf16.msra.mxu0 0
    %907 = vmatprep.subr.bf16.mxu0 0
    %908 = vmatpush1.bf16.msra.mxu0 0
    %909 = vmatprep.subr.bf16.mxu0 0
    %910 = vmatpush1.bf16.msra.mxu0 0
    %911 = vmatprep.mubr.bf16.mxu0 0
    %912 = vmatmul.mubr.bf16.gmra.mrb[0].mxu0 %v874
    %v913 = vpop.f32.mrb[0].mxu0
    %v914 = vadd.f32 0.0, %v913
    %v915 = vpop.f32.mrb[0].mxu0
    %v916 = vpop.f32.mrb[0].mxu0
    %v917 = vpop.f32.mrb[0].mxu0
    %918 = vdwg.mxu0
    %919 = vrot.lane.b32.xlu0 %v200, 48
    %v920 = vpop.permute.xlu0 %919
    %v922 = vsel %vm203, %v870, 0
    %v925 = vsel %vm331, %v920, 0
    %927 = vmatprep.subr.bf16.mxu0 0
    %928 = vmatpush1.bf16.msra.mxu0 %v925
    %929 = vmatprep.subr.bf16.mxu0 0
    %930 = vmatpush1.bf16.msra.mxu0 0
    %931 = vmatprep.subr.bf16.mxu0 0
    %932 = vmatpush1.bf16.msra.mxu0 0
    %933 = vmatprep.subr.bf16.mxu0 0
    %934 = vmatpush1.bf16.msra.mxu0 0
    %935 = vmatprep.subr.bf16.mxu0 0
    %936 = vmatpush1.bf16.msra.mxu0 0
    %937 = vmatprep.subr.bf16.mxu0 0
    %938 = vmatpush1.bf16.msra.mxu0 0
    %939 = vmatprep.subr.bf16.mxu0 0
    %940 = vmatpush1.bf16.msra.mxu0 0
    %941 = vmatprep.subr.bf16.mxu0 0
    %942 = vmatpush1.bf16.msra.mxu0 0
    %943 = vmatprep.subr.bf16.mxu0 0
    %944 = vmatpush1.bf16.msra.mxu0 0
    %945 = vmatprep.subr.bf16.mxu0 0
    %946 = vmatpush1.bf16.msra.mxu0 0
    %947 = vmatprep.subr.bf16.mxu0 0
    %948 = vmatpush1.bf16.msra.mxu0 0
    %949 = vmatprep.subr.bf16.mxu0 0
    %950 = vmatpush1.bf16.msra.mxu0 0
    %951 = vmatprep.subr.bf16.mxu0 0
    %952 = vmatpush1.bf16.msra.mxu0 0
    %953 = vmatprep.subr.bf16.mxu0 0
    %954 = vmatpush1.bf16.msra.mxu0 0
    %955 = vmatprep.subr.bf16.mxu0 0
    %956 = vmatpush1.bf16.msra.mxu0 0
    %957 = vmatprep.subr.bf16.mxu0 0
    %958 = vmatpush1.bf16.msra.mxu0 0
    %959 = vmatprep.mubr.bf16.mxu0 0
    %960 = vmatmul.mubr.bf16.gmra.mrb[0].mxu0 %v922
    %v961 = vpop.f32.mrb[0].mxu0
    %v962 = vadd.f32 0.0, %v961
    %v963 = vpop.f32.mrb[0].mxu0
    %v964 = vpop.f32.mrb[0].mxu0
    %v965 = vpop.f32.mrb[0].mxu0
    %966 = vdwg.mxu0
    %v967 = vpack.c.bf16 %v962, %v914
    %v969 = vsel %vm203, %v967, 0
    %v972 = vsel %vm331, %v194, 0
    %974 = vmatprep.subr.bf16.mxu0 0
    %975 = vmatpush1.bf16.msra.mxu0 %v972
    %976 = vmatprep.subr.bf16.mxu0 0
    %977 = vmatpush1.bf16.msra.mxu0 0
    %978 = vmatprep.subr.bf16.mxu0 0
    %979 = vmatpush1.bf16.msra.mxu0 0
    %980 = vmatprep.subr.bf16.mxu0 0
    %981 = vmatpush1.bf16.msra.mxu0 0
    %982 = vmatprep.subr.bf16.mxu0 0
    %983 = vmatpush1.bf16.msra.mxu0 0
    %984 = vmatprep.subr.bf16.mxu0 0
    %985 = vmatpush1.bf16.msra.mxu0 0
    %986 = vmatprep.subr.bf16.mxu0 0
    %987 = vmatpush1.bf16.msra.mxu0 0
    %988 = vmatprep.subr.bf16.mxu0 0
    %989 = vmatpush1.bf16.msra.mxu0 0
    %990 = vmatprep.subr.bf16.mxu0 0
    %991 = vmatpush1.bf16.msra.mxu0 0
    %992 = vmatprep.subr.bf16.mxu0 0
    %993 = vmatpush1.bf16.msra.mxu0 0
    %994 = vmatprep.subr.bf16.mxu0 0
    %995 = vmatpush1.bf16.msra.mxu0 0
    %996 = vmatprep.subr.bf16.mxu0 0
    %997 = vmatpush1.bf16.msra.mxu0 0
    %998 = vmatprep.subr.bf16.mxu0 0
    %999 = vmatpush1.bf16.msra.mxu0 0
    %1000 = vmatprep.subr.bf16.mxu0 0
    %1001 = vmatpush1.bf16.msra.mxu0 0
    %1002 = vmatprep.subr.bf16.mxu0 0
    %1003 = vmatpush1.bf16.msra.mxu0 0
    %1004 = vmatprep.subr.bf16.mxu0 0
    %1005 = vmatpush1.bf16.msra.mxu0 0
    %1006 = vmatprep.mubr.bf16.mxu0 0
    %1007 = vmatmul.mubr.bf16.gmra.mrb[0].mxu0 %v969
    %v1008 = vpop.f32.mrb[0].mxu0
    %v1009 = vadd.f32 0.0, %v1008
    %v1010 = vpop.f32.mrb[0].mxu0
    %v1011 = vpop.f32.mrb[0].mxu0
    %v1012 = vadd.f32 0.0, %v1011
    %v1013 = vpop.f32.mrb[0].mxu0
    %1014 = vdwg.mxu0
    %v1015 = vadd.f32 %v737, %v1009
    %v1016 = vadd.f32 %v740, %v1012
    %1017 = vrot.lane.b32.xlu0 %v199, 104
    %v1018 = vpop.permute.xlu0 %1017
    %1019 = vrot.lane.b32.xlu0 %v199, 72
    %v1020 = vpop.permute.xlu0 %1019
    %v1022 = vsel %vm203, %v1018, 0
    %v1025 = vsel %vm203, %v1020, 0
    %1027 = vmatprep.subr.bf16.mxu0 0
    %1028 = vmatpush1.bf16.xpose.msra.mxu0 %v1025
    %1029 = vmatprep.subr.bf16.mxu0 0
    %1030 = vmatpush1.bf16.xpose.msra.mxu0 0
    %1031 = vmatprep.subr.bf16.mxu0 0
    %1032 = vmatpush1.bf16.xpose.msra.mxu0 0
    %1033 = vmatprep.subr.bf16.mxu0 0
    %1034 = vmatpush1.bf16.xpose.msra.mxu0 0
    %1035 = vmatprep.subr.bf16.mxu0 0
    %1036 = vmatpush1.bf16.xpose.msra.mxu0 0
    %1037 = vmatprep.subr.bf16.mxu0 0
    %1038 = vmatpush1.bf16.xpose.msra.mxu0 0
    %1039 = vmatprep.subr.bf16.mxu0 0
    %1040 = vmatpush1.bf16.xpose.msra.mxu0 0
    %1041 = vmatprep.subr.bf16.mxu0 0
    %1042 = vmatpush1.bf16.xpose.msra.mxu0 0
    %1043 = vmatprep.subr.bf16.mxu0 0
    %1044 = vmatpush1.bf16.xpose.msra.mxu0 0
    %1045 = vmatprep.subr.bf16.mxu0 0
    %1046 = vmatpush1.bf16.xpose.msra.mxu0 0
    %1047 = vmatprep.subr.bf16.mxu0 0
    %1048 = vmatpush1.bf16.xpose.msra.mxu0 0
    %1049 = vmatprep.subr.bf16.mxu0 0
    %1050 = vmatpush1.bf16.xpose.msra.mxu0 0
    %1051 = vmatprep.subr.bf16.mxu0 0
    %1052 = vmatpush1.bf16.xpose.msra.mxu0 0
    %1053 = vmatprep.subr.bf16.mxu0 0
    %1054 = vmatpush1.bf16.xpose.msra.mxu0 0
    %1055 = vmatprep.subr.bf16.mxu0 0
    %1056 = vmatpush1.bf16.xpose.msra.mxu0 0
    %1057 = vmatprep.subr.bf16.mxu0 0
    %1058 = vmatpush1.bf16.xpose.msra.mxu0 0
    %1059 = vmatprep.mubr.bf16.mxu0 0
    %1060 = vmatmul.mubr.bf16.gmra.mrb[0].mxu0 %v1022
    %v1061 = vpop.f32.mrb[0].mxu0
    %v1062 = vadd.f32 0.0, %v1061
    %v1063 = vpop.f32.mrb[0].mxu0
    %v1064 = vpop.f32.mrb[0].mxu0
    %v1065 = vpop.f32.mrb[0].mxu0
    %1066 = vdwg.mxu0
    %1067 = vrot.lane.b32.xlu0 %v200, 104
    %v1068 = vpop.permute.xlu0 %1067
    %1069 = vrot.lane.b32.xlu0 %v200, 72
    %v1070 = vpop.permute.xlu0 %1069
    %v1072 = vsel %vm203, %v1068, 0
    %v1075 = vsel %vm203, %v1070, 0
    %1077 = vmatprep.subr.bf16.mxu0 0
    %1078 = vmatpush1.bf16.xpose.msra.mxu0 %v1075
    %1079 = vmatprep.subr.bf16.mxu0 0
    %1080 = vmatpush1.bf16.xpose.msra.mxu0 0
    %1081 = vmatprep.subr.bf16.mxu0 0
    %1082 = vmatpush1.bf16.xpose.msra.mxu0 0
    %1083 = vmatprep.subr.bf16.mxu0 0
    %1084 = vmatpush1.bf16.xpose.msra.mxu0 0
    %1085 = vmatprep.subr.bf16.mxu0 0
    %1086 = vmatpush1.bf16.xpose.msra.mxu0 0
    %1087 = vmatprep.subr.bf16.mxu0 0
    %1088 = vmatpush1.bf16.xpose.msra.mxu0 0
    %1089 = vmatprep.subr.bf16.mxu0 0
    %1090 = vmatpush1.bf16.xpose.msra.mxu0 0
    %1091 = vmatprep.subr.bf16.mxu0 0
    %1092 = vmatpush1.bf16.xpose.msra.mxu0 0
    %1093 = vmatprep.subr.bf16.mxu0 0
    %1094 = vmatpush1.bf16.xpose.msra.mxu0 0
    %1095 = vmatprep.subr.bf16.mxu0 0
    %1096 = vmatpush1.bf16.xpose.msra.mxu0 0
    %1097 = vmatprep.subr.bf16.mxu0 0
    %1098 = vmatpush1.bf16.xpose.msra.mxu0 0
    %1099 = vmatprep.subr.bf16.mxu0 0
    %1100 = vmatpush1.bf16.xpose.msra.mxu0 0
    %1101 = vmatprep.subr.bf16.mxu0 0
    %1102 = vmatpush1.bf16.xpose.msra.mxu0 0
    %1103 = vmatprep.subr.bf16.mxu0 0
    %1104 = vmatpush1.bf16.xpose.msra.mxu0 0
    %1105 = vmatprep.subr.bf16.mxu0 0
    %1106 = vmatpush1.bf16.xpose.msra.mxu0 0
    %1107 = vmatprep.subr.bf16.mxu0 0
    %1108 = vmatpush1.bf16.xpose.msra.mxu0 0
    %1109 = vmatprep.mubr.bf16.mxu0 0
    %1110 = vmatmul.mubr.bf16.gmra.mrb[0].mxu0 %v1072
    %v1111 = vpop.f32.mrb[0].mxu0
    %v1112 = vadd.f32 0.0, %v1111
    %v1113 = vpop.f32.mrb[0].mxu0
    %v1114 = vpop.f32.mrb[0].mxu0
    %v1115 = vpop.f32.mrb[0].mxu0
    %1116 = vdwg.mxu0
    %v1117 = vmul.f32 %v1062, 0.35355338
    %v1118 = vmul.f32 %v1112, 0.35355338
    %v1119 = vadd.f32 %v1117, %v86
    %v1120 = vadd.f32 %v1118, %v87
    %v1121 = vsel %vm203, %v1119, -inf
    %1122 = vmax.xlane.f32.xlu0 %v1121
    %v1123 = vpop.xlane.xlu0 %1122
    %v1124 = vsel %vm203, %v1120, -inf
    %1125 = vmax.xlane.f32.xlu0 %v1124
    %v1126 = vpop.xlane.xlu0 %1125
    %v1127 = vsub.f32 %v1119, %v1123
    %v1128 = vsub.f32 %v1120, %v1126
    %v1129 = vmul.f32 %v1127, 1.442695
    %v1130 = vpow.pop %v1129
    %v1131 = vmul.f32 %v1128, 1.442695
    %v1132 = vpow.pop %v1131
    %v1133 = vsel %vm203, %v1130, 0.0
    %1134 = vadd.xlane.f32.xlu0 %v1133
    %v1135 = vpop.xlane.xlu0 %1134
    %v1136 = vsel %vm203, %v1132, 0.0
    %1137 = vadd.xlane.f32.xlu0 %v1136
    %v1138 = vpop.xlane.xlu0 %1137
    %v1139 = vrcp.pop %v1135
    %v1140 = vrcp.pop %v1138
    %v1141 = vmul.f32 %v1130, %v1139
    %v1142 = vmul.f32 %v1132, %v1140
    %v1143 = vpack.c.bf16 %v1141, %v1141
    %v1144 = vpack.c.bf16 %v1142, %v1142
    %1145 = vrot.lane.b32.xlu0 %v199, 40
    %v1146 = vpop.permute.xlu0 %1145
    %v1148 = vsel %vm203, %v1143, 0
    %v1151 = vsel %vm331, %v1146, 0
    %1153 = vmatprep.subr.bf16.mxu0 0
    %1154 = vmatpush1.bf16.msra.mxu0 %v1151
    %1155 = vmatprep.subr.bf16.mxu0 0
    %1156 = vmatpush1.bf16.msra.mxu0 0
    %1157 = vmatprep.subr.bf16.mxu0 0
    %1158 = vmatpush1.bf16.msra.mxu0 0
    %1159 = vmatprep.subr.bf16.mxu0 0
    %1160 = vmatpush1.bf16.msra.mxu0 0
    %1161 = vmatprep.subr.bf16.mxu0 0
    %1162 = vmatpush1.bf16.msra.mxu0 0
    %1163 = vmatprep.subr.bf16.mxu0 0
    %1164 = vmatpush1.bf16.msra.mxu0 0
    %1165 = vmatprep.subr.bf16.mxu0 0
    %1166 = vmatpush1.bf16.msra.mxu0 0
    %1167 = vmatprep.subr.bf16.mxu0 0
    %1168 = vmatpush1.bf16.msra.mxu0 0
    %1169 = vmatprep.subr.bf16.mxu0 0
    %1170 = vmatpush1.bf16.msra.mxu0 0
    %1171 = vmatprep.subr.bf16.mxu0 0
    %1172 = vmatpush1.bf16.msra.mxu0 0
    %1173 = vmatprep.subr.bf16.mxu0 0
    %1174 = vmatpush1.bf16.msra.mxu0 0
    %1175 = vmatprep.subr.bf16.mxu0 0
    %1176 = vmatpush1.bf16.msra.mxu0 0
    %1177 = vmatprep.subr.bf16.mxu0 0
    %1178 = vmatpush1.bf16.msra.mxu0 0
    %1179 = vmatprep.subr.bf16.mxu0 0
    %1180 = vmatpush1.bf16.msra.mxu0 0
    %1181 = vmatprep.subr.bf16.mxu0 0
    %1182 = vmatpush1.bf16.msra.mxu0 0
    %1183 = vmatprep.subr.bf16.mxu0 0
    %1184 = vmatpush1.bf16.msra.mxu0 0
    %1185 = vmatprep.mubr.bf16.mxu0 0
    %1186 = vmatmul.mubr.bf16.gmra.mrb[0].mxu0 %v1148
    %v1187 = vpop.f32.mrb[0].mxu0
    %v1188 = vadd.f32 0.0, %v1187
    %v1189 = vpop.f32.mrb[0].mxu0
    %v1190 = vpop.f32.mrb[0].mxu0
    %v1191 = vpop.f32.mrb[0].mxu0
    %1192 = vdwg.mxu0
    %1193 = vrot.lane.b32.xlu0 %v200, 40
    %v1194 = vpop.permute.xlu0 %1193
    %v1196 = vsel %vm203, %v1144, 0
    %v1199 = vsel %vm331, %v1194, 0
    %1201 = vmatprep.subr.bf16.mxu0 0
    %1202 = vmatpush1.bf16.msra.mxu0 %v1199
    %1203 = vmatprep.subr.bf16.mxu0 0
    %1204 = vmatpush1.bf16.msra.mxu0 0
    %1205 = vmatprep.subr.bf16.mxu0 0
    %1206 = vmatpush1.bf16.msra.mxu0 0
    %1207 = vmatprep.subr.bf16.mxu0 0
    %1208 = vmatpush1.bf16.msra.mxu0 0
    %1209 = vmatprep.subr.bf16.mxu0 0
    %1210 = vmatpush1.bf16.msra.mxu0 0
    %1211 = vmatprep.subr.bf16.mxu0 0
    %1212 = vmatpush1.bf16.msra.mxu0 0
    %1213 = vmatprep.subr.bf16.mxu0 0
    %1214 = vmatpush1.bf16.msra.mxu0 0
    %1215 = vmatprep.subr.bf16.mxu0 0
    %1216 = vmatpush1.bf16.msra.mxu0 0
    %1217 = vmatprep.subr.bf16.mxu0 0
    %1218 = vmatpush1.bf16.msra.mxu0 0
    %1219 = vmatprep.subr.bf16.mxu0 0
    %1220 = vmatpush1.bf16.msra.mxu0 0
    %1221 = vmatprep.subr.bf16.mxu0 0
    %1222 = vmatpush1.bf16.msra.mxu0 0
    %1223 = vmatprep.subr.bf16.mxu0 0
    %1224 = vmatpush1.bf16.msra.mxu0 0
    %1225 = vmatprep.subr.bf16.mxu0 0
    %1226 = vmatpush1.bf16.msra.mxu0 0
    %1227 = vmatprep.subr.bf16.mxu0 0
    %1228 = vmatpush1.bf16.msra.mxu0 0
    %1229 = vmatprep.subr.bf16.mxu0 0
    %1230 = vmatpush1.bf16.msra.mxu0 0
    %1231 = vmatprep.subr.bf16.mxu0 0
    %1232 = vmatpush1.bf16.msra.mxu0 0
    %1233 = vmatprep.mubr.bf16.mxu0 0
    %1234 = vmatmul.mubr.bf16.gmra.mrb[0].mxu0 %v1196
    %v1235 = vpop.f32.mrb[0].mxu0
    %v1236 = vadd.f32 0.0, %v1235
    %v1237 = vpop.f32.mrb[0].mxu0
    %v1238 = vpop.f32.mrb[0].mxu0
    %v1239 = vpop.f32.mrb[0].mxu0
    %1240 = vdwg.mxu0
    %v1241 = vpack.c.bf16 %v1236, %v1188
    %v1243 = vsel %vm203, %v1241, 0
    %v1246 = vsel %vm331, %v195, 0
    %1248 = vmatprep.subr.bf16.mxu0 0
    %1249 = vmatpush1.bf16.msra.mxu0 %v1246
    %1250 = vmatprep.subr.bf16.mxu0 0
    %1251 = vmatpush1.bf16.msra.mxu0 0
    %1252 = vmatprep.subr.bf16.mxu0 0
    %1253 = vmatpush1.bf16.msra.mxu0 0
    %1254 = vmatprep.subr.bf16.mxu0 0
    %1255 = vmatpush1.bf16.msra.mxu0 0
    %1256 = vmatprep.subr.bf16.mxu0 0
    %1257 = vmatpush1.bf16.msra.mxu0 0
    %1258 = vmatprep.subr.bf16.mxu0 0
    %1259 = vmatpush1.bf16.msra.mxu0 0
    %1260 = vmatprep.subr.bf16.mxu0 0
    %1261 = vmatpush1.bf16.msra.mxu0 0
    %1262 = vmatprep.subr.bf16.mxu0 0
    %1263 = vmatpush1.bf16.msra.mxu0 0
    %1264 = vmatprep.subr.bf16.mxu0 0
    %1265 = vmatpush1.bf16.msra.mxu0 0
    %1266 = vmatprep.subr.bf16.mxu0 0
    %1267 = vmatpush1.bf16.msra.mxu0 0
    %1268 = vmatprep.subr.bf16.mxu0 0
    %1269 = vmatpush1.bf16.msra.mxu0 0
    %1270 = vmatprep.subr.bf16.mxu0 0
    %1271 = vmatpush1.bf16.msra.mxu0 0
    %1272 = vmatprep.subr.bf16.mxu0 0
    %1273 = vmatpush1.bf16.msra.mxu0 0
    %1274 = vmatprep.subr.bf16.mxu0 0
    %1275 = vmatpush1.bf16.msra.mxu0 0
    %1276 = vmatprep.subr.bf16.mxu0 0
    %1277 = vmatpush1.bf16.msra.mxu0 0
    %1278 = vmatprep.subr.bf16.mxu0 0
    %1279 = vmatpush1.bf16.msra.mxu0 0
    %1280 = vmatprep.mubr.bf16.mxu0 0
    %1281 = vmatmul.mubr.bf16.gmra.mrb[0].mxu0 %v1243
    %v1282 = vpop.f32.mrb[0].mxu0
    %v1283 = vadd.f32 0.0, %v1282
    %v1284 = vpop.f32.mrb[0].mxu0
    %v1285 = vpop.f32.mrb[0].mxu0
    %v1286 = vadd.f32 0.0, %v1285
    %v1287 = vpop.f32.mrb[0].mxu0
    %1288 = vdwg.mxu0
    %v1289 = vadd.f32 %v1015, %v1283
    %v1290 = vadd.f32 %v1016, %v1286
    %v1291 = vadd.f32 %v84, %v1289
    %v1292 = vadd.f32 %v85, %v1290
    %v1293 = vld [vmem:[%s6] sm:$0x1]
    %v1294 = vlaneseq
    %v1295 = vshrl.u32 %v1294, 7
    %v1296 = vsub.s32 0, %v1295
    %v1297 = vrot.slane %v1293, %v1296
    %v1298 = vadd.f32 %v1291, %v1297
    %v1299 = vadd.f32 %v1292, %v1297
    %v1300 = vld [vmem:[%s7] sm:$0x1]
    %v1301 = vld [vmem:[%s8] sm:$0x1]
    %v1302 = vsel %vm90, %v1298, 0.0
    %1303 = vadd.xlane.f32.xlu0 %v1302
    %v1304 = vpop.xlane.xlu0 %1303
    %v1305 = vsel %vm90, %v1299, 0.0
    %1306 = vadd.xlane.f32.xlu0 %v1305
    %v1307 = vpop.xlane.xlu0 %1306
    %v1308 = vmul.f32 %v1304, %v97
    %v1309 = vmul.f32 %v1307, %v97
    %v1310 = vsub.f32 %v1298, %v1308
    %v1311 = vsub.f32 %v1299, %v1309
    %v1312 = vmul.f32 %v1310, %v1310
    %v1313 = vmul.f32 %v1311, %v1311
    %v1314 = vsel %vm90, %v1312, 0.0
    %1315 = vadd.xlane.f32.xlu0 %v1314
    %v1316 = vpop.xlane.xlu0 %1315
    %v1317 = vsel %vm90, %v1313, 0.0
    %1318 = vadd.xlane.f32.xlu0 %v1317
    %v1319 = vpop.xlane.xlu0 %1318
    %v1320 = vmul.f32 %v1316, %v97
    %v1321 = vmul.f32 %v1319, %v97
    %v1322 = vadd.f32 %v1320, 1e-05
    %v1323 = vadd.f32 %v1321, 1e-05
    %v1324 = vrsqrt.pop %v1322
    %v1325 = vrsqrt.pop %v1323
    %v1326 = vmul.f32 %v1310, %v1324
    %v1327 = vmul.f32 %v1311, %v1325
    %v1328 = vlaneseq
    %v1329 = vshrl.u32 %v1328, 7
    %v1330 = vsub.s32 0, %v1329
    %v1331 = vrot.slane %v1300, %v1330
    %v1332 = vmul.f32 %v1326, %v1331
    %v1333 = vmul.f32 %v1327, %v1331
    %v1334 = vlaneseq
    %v1335 = vshrl.u32 %v1334, 7
    %v1336 = vsub.s32 0, %v1335
    %v1337 = vrot.slane %v1301, %v1336
    %v1338 = vadd.f32 %v1332, %v1337
    %v1339 = vadd.f32 %v1333, %v1337
    %v1340 = vpack.c.bf16 %v1339, %v1338
    %v1341 = vld [vmem:[%s9] sm:$0xf]
    %v1342 = vld [vmem:[%s9 + $0x4] sm:$0xf]
    %v1343 = vld [vmem:[%s9 + $0x8] sm:$0xf]
    %v1344 = vld [vmem:[%s9 + $0xc] sm:$0xf]
    %v1345 = vld [vmem:[#allocation5] sm:$0x1]
    %v1346 = vlaneseq
    %v1347 = vshrl.u32 %v1346, 7
    %v1348 = vsub.s32 0, %v1347
    %v1349 = vrot.slane %v1345, %v1348
    %v1354 = vunpack.c.l.b16 %v1341
    %v1355 = vunpack.c.l.b16 %v1342
    %v1356 = vunpack.c.l.b16 %v1343
    %v1357 = vunpack.c.l.b16 %v1344
    %v1358 = vpack.c.b16 %v1355, %v1354
    %v1359 = vpack.c.b16 %v1357, %v1356
    %v1363 = vsel %vm90, %v1340, 0
    %1365 = vmatprep.subr.bf16.mxu0 0
    %1366 = vmatpush1.bf16.msra.mxu0 %v1358
    %1367 = vmatprep.subr.bf16.mxu0 0
    %1368 = vmatpush1.bf16.msra.mxu0 %v1359
    %1369 = vmatprep.subr.bf16.mxu0 0
    %1370 = vmatpush1.bf16.msra.mxu0 0
    %1371 = vmatprep.subr.bf16.mxu0 0
    %1372 = vmatpush1.bf16.msra.mxu0 0
    %1373 = vmatprep.subr.bf16.mxu0 0
    %1374 = vmatpush1.bf16.msra.mxu0 0
    %1375 = vmatprep.subr.bf16.mxu0 0
    %1376 = vmatpush1.bf16.msra.mxu0 0
    %1377 = vmatprep.subr.bf16.mxu0 0
    %1378 = vmatpush1.bf16.msra.mxu0 0
    %1379 = vmatprep.subr.bf16.mxu0 0
    %1380 = vmatpush1.bf16.msra.mxu0 0
    %1381 = vmatprep.subr.bf16.mxu0 0
    %1382 = vmatpush1.bf16.msra.mxu0 0
    %1383 = vmatprep.subr.bf16.mxu0 0
    %1384 = vmatpush1.bf16.msra.mxu0 0
    %1385 = vmatprep.subr.bf16.mxu0 0
    %1386 = vmatpush1.bf16.msra.mxu0 0
    %1387 = vmatprep.subr.bf16.mxu0 0
    %1388 = vmatpush1.bf16.msra.mxu0 0
    %1389 = vmatprep.subr.bf16.mxu0 0
    %1390 = vmatpush1.bf16.msra.mxu0 0
    %1391 = vmatprep.subr.bf16.mxu0 0
    %1392 = vmatpush1.bf16.msra.mxu0 0
    %1393 = vmatprep.subr.bf16.mxu0 0
    %1394 = vmatpush1.bf16.msra.mxu0 0
    %1395 = vmatprep.subr.bf16.mxu0 0
    %1396 = vmatpush1.bf16.msra.mxu0 0
    %1397 = vmatprep.mubr.bf16.mxu0 0
    %1398 = vmatmul.mubr.bf16.gmra.mrb[0].mxu0 %v1363
    %v1399 = vpop.f32.mrb[0].mxu0
    %v1400 = vadd.f32 %v1349, %v1399
    %v1401 = vpop.f32.mrb[0].mxu0
    %v1402 = vpop.f32.mrb[0].mxu0
    %v1403 = vadd.f32 %v1349, %v1402
    %v1404 = vpop.f32.mrb[0].mxu0
    %1405 = vdwg.mxu0
    %v1406 = vmul.f32 %v1400, 0.5
    %v1407 = vmul.f32 %v1403, 0.5
    %v1408 = vmul.f32 %v1400, 0.044715
    %v1409 = vmul.f32 %v1403, 0.044715
    %v1410 = vmul.f32 %v1408, %v1400
    %v1411 = vmul.f32 %v1409, %v1403
    %v1412 = vmul.f32 %v1410, %v1400
    %v1413 = vmul.f32 %v1411, %v1403
    %v1414 = vadd.f32 %v1400, %v1412
    %v1415 = vadd.f32 %v1403, %v1413
    %v1416 = vmul.f32 %v1414, 0.7978846
    %v1417 = vmul.f32 %v1415, 0.7978846
    %v1418 = vtanh.pop %v1416
    %v1419 = vtanh.pop %v1417
    %v1420 = vadd.f32 %v1418, 1.0
    %v1421 = vadd.f32 %v1419, 1.0
    %v1422 = vmul.f32 %v1406, %v1420
    %v1423 = vmul.f32 %v1407, %v1421
    %v1424 = vpack.c.bf16 %v1423, %v1422
    %v1425 = vld [vmem:[%s11] sm:$0xf]
    %v1426 = vld [vmem:[%s11 + $0x4] sm:$0xf]
    %v1427 = vld [vmem:[%s11 + $0x8] sm:$0xf]
    %v1428 = vld [vmem:[%s11 + $0xc] sm:$0xf]
    %v1429 = vld [vmem:[%s11 + $0x10] sm:$0xf]
    %v1430 = vld [vmem:[%s11 + $0x14] sm:$0xf]
    %v1431 = vld [vmem:[%s11 + $0x18] sm:$0xf]
    %v1432 = vld [vmem:[%s11 + $0x1c] sm:$0xf]
    %v1433 = vld [vmem:[%s12] sm:$0x1]
    %v1434 = vlaneseq
    %v1435 = vshrl.u32 %v1434, 7
    %v1436 = vsub.s32 0, %v1435
    %v1437 = vrot.slane %v1433, %v1436
    %v1446 = vunpack.c.l.b16 %v1425
    %v1447 = vunpack.c.l.b16 %v1426
    %v1448 = vunpack.c.l.b16 %v1427
    %v1449 = vunpack.c.l.b16 %v1428
    %v1450 = vunpack.c.l.b16 %v1429
    %v1451 = vunpack.c.l.b16 %v1430
    %v1452 = vunpack.c.l.b16 %v1431
    %v1453 = vunpack.c.l.b16 %v1432
    %v1454 = vpack.c.b16 %v1447, %v1446
    %v1455 = vpack.c.b16 %v1449, %v1448
    %v1456 = vpack.c.b16 %v1451, %v1450
    %v1457 = vpack.c.b16 %v1453, %v1452
    %vm1462 = vcmask 523264
    %v1464 = vsel %vm1462, %v1424, 0
    %1466 = vmatprep.subr.bf16.mxu0 0
    %1467 = vmatpush1.bf16.msra.mxu0 %v1454
    %1468 = vmatprep.subr.bf16.mxu0 0
    %1469 = vmatpush1.bf16.msra.mxu0 %v1455
    %1470 = vmatprep.subr.bf16.mxu0 0
    %1471 = vmatpush1.bf16.msra.mxu0 %v1456
    %1472 = vmatprep.subr.bf16.mxu0 0
    %1473 = vmatpush1.bf16.msra.mxu0 %v1457
    %1474 = vmatprep.subr.bf16.mxu0 0
    %1475 = vmatpush1.bf16.msra.mxu0 0
    %1476 = vmatprep.subr.bf16.mxu0 0
    %1477 = vmatpush1.bf16.msra.mxu0 0
    %1478 = vmatprep.subr.bf16.mxu0 0
    %1479 = vmatpush1.bf16.msra.mxu0 0
    %1480 = vmatprep.subr.bf16.mxu0 0
    %1481 = vmatpush1.bf16.msra.mxu0 0
    %1482 = vmatprep.subr.bf16.mxu0 0
    %1483 = vmatpush1.bf16.msra.mxu0 0
    %1484 = vmatprep.subr.bf16.mxu0 0
    %1485 = vmatpush1.bf16.msra.mxu0 0
    %1486 = vmatprep.subr.bf16.mxu0 0
    %1487 = vmatpush1.bf16.msra.mxu0 0
    %1488 = vmatprep.subr.bf16.mxu0 0
    %1489 = vmatpush1.bf16.msra.mxu0 0
    %1490 = vmatprep.subr.bf16.mxu0 0
    %1491 = vmatpush1.bf16.msra.mxu0 0
    %1492 = vmatprep.subr.bf16.mxu0 0
    %1493 = vmatpush1.bf16.msra.mxu0 0
    %1494 = vmatprep.subr.bf16.mxu0 0
    %1495 = vmatpush1.bf16.msra.mxu0 0
    %1496 = vmatprep.subr.bf16.mxu0 0
    %1497 = vmatpush1.bf16.msra.mxu0 0
    %1498 = vmatprep.mubr.bf16.mxu0 0
    %1499 = vmatmul.mubr.bf16.gmra.mrb[0].mxu0 %v1464
    %v1500 = vpop.f32.mrb[0].mxu0
    %v1501 = vadd.f32 %v1437, %v1500
    %v1502 = vpop.f32.mrb[0].mxu0
    %v1503 = vpop.f32.mrb[0].mxu0
    %v1504 = vadd.f32 %v1437, %v1503
    %v1505 = vpop.f32.mrb[0].mxu0
    %1506 = vdwg.mxu0
    %v1507 = vadd.f32 %v1298, %v1501
    %v1508 = vadd.f32 %v1299, %v1504
    %v1509 = vld [vmem:[%s2 + $0x1] sm:$0x1]
    %v1510 = vld [vmem:[%s3 + $0x1] sm:$0x1]
    %v1511 = vsel %vm90, %v1507, 0.0
    %1512 = vadd.xlane.f32.xlu0 %v1511
    %v1513 = vpop.xlane.xlu0 %1512
    %v1514 = vsel %vm90, %v1508, 0.0
    %1515 = vadd.xlane.f32.xlu0 %v1514
    %v1516 = vpop.xlane.xlu0 %1515
    %v1517 = vmul.f32 %v1513, %v97
    %v1518 = vmul.f32 %v1516, %v97
    %v1519 = vsub.f32 %v1507, %v1517
    %v1520 = vsub.f32 %v1508, %v1518
    %v1521 = vmul.f32 %v1519, %v1519
    %v1522 = vmul.f32 %v1520, %v1520
    %v1523 = vsel %vm90, %v1521, 0.0
    %1524 = vadd.xlane.f32.xlu0 %v1523
    %v1525 = vpop.xlane.xlu0 %1524
    %v1526 = vsel %vm90, %v1522, 0.0
    %1527 = vadd.xlane.f32.xlu0 %v1526
    %v1528 = vpop.xlane.xlu0 %1527
    %v1529 = vmul.f32 %v1525, %v97
    %v1530 = vmul.f32 %v1528, %v97
    %v1531 = vadd.f32 %v1529, 1e-05
    %v1532 = vadd.f32 %v1530, 1e-05
    %v1533 = vrsqrt.pop %v1531
    %v1534 = vrsqrt.pop %v1532
    %v1535 = vmul.f32 %v1519, %v1533
    %v1536 = vmul.f32 %v1520, %v1534
    %v1537 = vlaneseq
    %v1538 = vshrl.u32 %v1537, 7
    %v1539 = vsub.s32 0, %v1538
    %v1540 = vrot.slane %v1509, %v1539
    %v1541 = vmul.f32 %v1535, %v1540
    %v1542 = vmul.f32 %v1536, %v1540
    %v1543 = vlaneseq
    %v1544 = vshrl.u32 %v1543, 7
    %v1545 = vsub.s32 0, %v1544
    %v1546 = vrot.slane %v1510, %v1545
    %v1547 = vadd.f32 %v1541, %v1546
    %v1548 = vadd.f32 %v1542, %v1546
    %v1549 = vpack.c.bf16 %v1548, %v1547
    %s1550 = scalar_lea.vmem %s4, 16
    %v1551 = vld [vmem:[%s1550] sm:$0xf]
    %v1552 = vld [vmem:[%s1550 + $0x4] sm:$0xf]
    %v1553 = vld [vmem:[%s1550 + $0x8] sm:$0xf]
    %v1554 = vld [vmem:[%s1550 + $0xc] sm:$0xf]
    %v1559 = vunpack.c.l.b16 %v1551
    %v1560 = vunpack.c.l.b16 %v1552
    %v1561 = vunpack.c.l.b16 %v1553
    %v1562 = vunpack.c.l.b16 %v1554
    %v1563 = vpack.c.b16 %v1560, %v1559
    %v1564 = vpack.c.b16 %v1562, %v1561
    %v1568 = vsel %vm90, %v1549, 0
    %1570 = vmatprep.subr.bf16.mxu0 0
    %1571 = vmatpush1.bf16.msra.mxu0 %v1563
    %1572 = vmatprep.subr.bf16.mxu0 0
    %1573 = vmatpush1.bf16.msra.mxu0 %v1564
    %1574 = vmatprep.subr.bf16.mxu0 0
    %1575 = vmatpush1.bf16.msra.mxu0 0
    %1576 = vmatprep.subr.bf16.mxu0 0
    %1577 = vmatpush1.bf16.msra.mxu0 0
    %1578 = vmatprep.subr.bf16.mxu0 0
    %1579 = vmatpush1.bf16.msra.mxu0 0
    %1580 = vmatprep.subr.bf16.mxu0 0
    %1581 = vmatpush1.bf16.msra.mxu0 0
    %1582 = vmatprep.subr.bf16.mxu0 0
    %1583 = vmatpush1.bf16.msra.mxu0 0
    %1584 = vmatprep.subr.bf16.mxu0 0
    %1585 = vmatpush1.bf16.msra.mxu0 0
    %1586 = vmatprep.subr.bf16.mxu0 0
    %1587 = vmatpush1.bf16.msra.mxu0 0
    %1588 = vmatprep.subr.bf16.mxu0 0
    %1589 = vmatpush1.bf16.msra.mxu0 0
    %1590 = vmatprep.subr.bf16.mxu0 0
    %1591 = vmatpush1.bf16.msra.mxu0 0
    %1592 = vmatprep.subr.bf16.mxu0 0
    %1593 = vmatpush1.bf16.msra.mxu0 0
    %1594 = vmatprep.subr.bf16.mxu0 0
    %1595 = vmatpush1.bf16.msra.mxu0 0
    %1596 = vmatprep.subr.bf16.mxu0 0
    %1597 = vmatpush1.bf16.msra.mxu0 0
    %1598 = vmatprep.subr.bf16.mxu0 0
    %1599 = vmatpush1.bf16.msra.mxu0 0
    %1600 = vmatprep.subr.bf16.mxu0 0
    %1601 = vmatpush1.bf16.msra.mxu0 0
    %1602 = vmatprep.mubr.bf16.mxu0 0
    %1603 = vmatmul.mubr.bf16.gmra.mrb[0].mxu0 %v1568
    %v1604 = vpop.f32.mrb[0].mxu0
    %v1605 = vadd.f32 0.0, %v1604
    %v1606 = vpop.f32.mrb[0].mxu0
    %v1607 = vpop.f32.mrb[0].mxu0
    %v1608 = vadd.f32 0.0, %v1607
    %v1609 = vpop.f32.mrb[0].mxu0
    %1610 = vdwg.mxu0
    %v1611 = vpack.c.bf16 %v1608, %v1605
    %s1612 = scalar_lea.vmem %s5, 16
    %v1613 = vld [vmem:[%s1612] sm:$0xf]
    %v1614 = vld [vmem:[%s1612 + $0x4] sm:$0xf]
    %v1615 = vld [vmem:[%s1612 + $0x8] sm:$0xf]
    %v1616 = vld [vmem:[%s1612 + $0xc] sm:$0xf]
    %v1618 = vunpack.c.l.b16 %v1611
    %v1619 = vunpack.c.h.b16 %v1611
    %v1620 = vpack.c.b16 %v1618, %v1618
    %v1621 = vpack.c.b16 %v1619, %v1619
    %1622 = vrot.lane.b32.xlu0 %v1620, 96
    %v1623 = vpop.permute.xlu0 %1622
    %v1625 = vsel %vm203, %v1620, 0
    %v1628 = vsel %vm203, %v1623, 0
    %1630 = vmatprep.subr.bf16.mxu0 0
    %1631 = vmatpush1.bf16.xpose.msra.mxu0 %v1628
    %1632 = vmatprep.subr.bf16.mxu0 0
    %1633 = vmatpush1.bf16.xpose.msra.mxu0 0
    %1634 = vmatprep.subr.bf16.mxu0 0
    %1635 = vmatpush1.bf16.xpose.msra.mxu0 0
    %1636 = vmatprep.subr.bf16.mxu0 0
    %1637 = vmatpush1.bf16.xpose.msra.mxu0 0
    %1638 = vmatprep.subr.bf16.mxu0 0
    %1639 = vmatpush1.bf16.xpose.msra.mxu0 0
    %1640 = vmatprep.subr.bf16.mxu0 0
    %1641 = vmatpush1.bf16.xpose.msra.mxu0 0
    %1642 = vmatprep.subr.bf16.mxu0 0
    %1643 = vmatpush1.bf16.xpose.msra.mxu0 0
    %1644 = vmatprep.subr.bf16.mxu0 0
    %1645 = vmatpush1.bf16.xpose.msra.mxu0 0
    %1646 = vmatprep.subr.bf16.mxu0 0
    %1647 = vmatpush1.bf16.xpose.msra.mxu0 0
    %1648 = vmatprep.subr.bf16.mxu0 0
    %1649 = vmatpush1.bf16.xpose.msra.mxu0 0
    %1650 = vmatprep.subr.bf16.mxu0 0
    %1651 = vmatpush1.bf16.xpose.msra.mxu0 0
    %1652 = vmatprep.subr.bf16.mxu0 0
    %1653 = vmatpush1.bf16.xpose.msra.mxu0 0
    %1654 = vmatprep.subr.bf16.mxu0 0
    %1655 = vmatpush1.bf16.xpose.msra.mxu0 0
    %1656 = vmatprep.subr.bf16.mxu0 0
    %1657 = vmatpush1.bf16.xpose.msra.mxu0 0
    %1658 = vmatprep.subr.bf16.mxu0 0
    %1659 = vmatpush1.bf16.xpose.msra.mxu0 0
    %1660 = vmatprep.subr.bf16.mxu0 0
    %1661 = vmatpush1.bf16.xpose.msra.mxu0 0
    %1662 = vmatprep.mubr.bf16.mxu0 0
    %1663 = vmatmul.mubr.bf16.gmra.mrb[0].mxu0 %v1625
    %v1664 = vpop.f32.mrb[0].mxu0
    %v1665 = vadd.f32 0.0, %v1664
    %v1666 = vpop.f32.mrb[0].mxu0
    %v1667 = vpop.f32.mrb[0].mxu0
    %v1668 = vpop.f32.mrb[0].mxu0
    %1669 = vdwg.mxu0
    %1670 = vrot.lane.b32.xlu0 %v1621, 96
    %v1671 = vpop.permute.xlu0 %1670
    %v1673 = vsel %vm203, %v1621, 0
    %v1676 = vsel %vm203, %v1671, 0
    %1678 = vmatprep.subr.bf16.mxu0 0
    %1679 = vmatpush1.bf16.xpose.msra.mxu0 %v1676
    %1680 = vmatprep.subr.bf16.mxu0 0
    %1681 = vmatpush1.bf16.xpose.msra.mxu0 0
    %1682 = vmatprep.subr.bf16.mxu0 0
    %1683 = vmatpush1.bf16.xpose.msra.mxu0 0
    %1684 = vmatprep.subr.bf16.mxu0 0
    %1685 = vmatpush1.bf16.xpose.msra.mxu0 0
    %1686 = vmatprep.subr.bf16.mxu0 0
    %1687 = vmatpush1.bf16.xpose.msra.mxu0 0
    %1688 = vmatprep.subr.bf16.mxu0 0
    %1689 = vmatpush1.bf16.xpose.msra.mxu0 0
    %1690 = vmatprep.subr.bf16.mxu0 0
    %1691 = vmatpush1.bf16.xpose.msra.mxu0 0
    %1692 = vmatprep.subr.bf16.mxu0 0
    %1693 = vmatpush1.bf16.xpose.msra.mxu0 0
    %1694 = vmatprep.subr.bf16.mxu0 0
    %1695 = vmatpush1.bf16.xpose.msra.mxu0 0
    %1696 = vmatprep.subr.bf16.mxu0 0
    %1697 = vmatpush1.bf16.xpose.msra.mxu0 0
    %1698 = vmatprep.subr.bf16.mxu0 0
    %1699 = vmatpush1.bf16.xpose.msra.mxu0 0
    %1700 = vmatprep.subr.bf16.mxu0 0
    %1701 = vmatpush1.bf16.xpose.msra.mxu0 0
    %1702 = vmatprep.subr.bf16.mxu0 0
    %1703 = vmatpush1.bf16.xpose.msra.mxu0 0
    %1704 = vmatprep.subr.bf16.mxu0 0
    %1705 = vmatpush1.bf16.xpose.msra.mxu0 0
    %1706 = vmatprep.subr.bf16.mxu0 0
    %1707 = vmatpush1.bf16.xpose.msra.mxu0 0
    %1708 = vmatprep.subr.bf16.mxu0 0
    %1709 = vmatpush1.bf16.xpose.msra.mxu0 0
    %1710 = vmatprep.mubr.bf16.mxu0 0
    %1711 = vmatmul.mubr.bf16.gmra.mrb[0].mxu0 %v1673
    %v1712 = vpop.f32.mrb[0].mxu0
    %v1713 = vadd.f32 0.0, %v1712
    %v1714 = vpop.f32.mrb[0].mxu0
    %v1715 = vpop.f32.mrb[0].mxu0
    %v1716 = vpop.f32.mrb[0].mxu0
    %1717 = vdwg.mxu0
    %v1718 = vmul.f32 %v1665, 0.35355338
    %v1719 = vmul.f32 %v1713, 0.35355338
    %v1720 = vadd.f32 %v1718, %v86
    %v1721 = vadd.f32 %v1719, %v87
    %v1722 = vsel %vm203, %v1720, -inf
    %1723 = vmax.xlane.f32.xlu0 %v1722
    %v1724 = vpop.xlane.xlu0 %1723
    %v1725 = vsel %vm203, %v1721, -inf
    %1726 = vmax.xlane.f32.xlu0 %v1725
    %v1727 = vpop.xlane.xlu0 %1726
    %v1728 = vsub.f32 %v1720, %v1724
    %v1729 = vsub.f32 %v1721, %v1727
    %v1730 = vmul.f32 %v1728, 1.442695
    %v1731 = vpow.pop %v1730
    %v1732 = vmul.f32 %v1729, 1.442695
    %v1733 = vpow.pop %v1732
    %v1734 = vsel %vm203, %v1731, 0.0
    %1735 = vadd.xlane.f32.xlu0 %v1734
    %v1736 = vpop.xlane.xlu0 %1735
    %v1737 = vsel %vm203, %v1733, 0.0
    %1738 = vadd.xlane.f32.xlu0 %v1737
    %v1739 = vpop.xlane.xlu0 %1738
    %v1740 = vrcp.pop %v1736
    %v1741 = vrcp.pop %v1739
    %v1742 = vmul.f32 %v1731, %v1740
    %v1743 = vmul.f32 %v1733, %v1741
    %v1744 = vpack.c.bf16 %v1742, %v1742
    %v1745 = vpack.c.bf16 %v1743, %v1743
    %1746 = vrot.lane.b32.xlu0 %v1620, 64
    %v1747 = vpop.permute.xlu0 %1746
    %v1749 = vsel %vm203, %v1744, 0
    %v1752 = vsel %vm331, %v1747, 0
    %1754 = vmatprep.subr.bf16.mxu0 0
    %1755 = vmatpush1.bf16.msra.mxu0 %v1752
    %1756 = vmatprep.subr.bf16.mxu0 0
    %1757 = vmatpush1.bf16.msra.mxu0 0
    %1758 = vmatprep.subr.bf16.mxu0 0
    %1759 = vmatpush1.bf16.msra.mxu0 0
    %1760 = vmatprep.subr.bf16.mxu0 0
    %1761 = vmatpush1.bf16.msra.mxu0 0
    %1762 = vmatprep.subr.bf16.mxu0 0
    %1763 = vmatpush1.bf16.msra.mxu0 0
    %1764 = vmatprep.subr.bf16.mxu0 0
    %1765 = vmatpush1.bf16.msra.mxu0 0
    %1766 = vmatprep.subr.bf16.mxu0 0
    %1767 = vmatpush1.bf16.msra.mxu0 0
    %1768 = vmatprep.subr.bf16.mxu0 0
    %1769 = vmatpush1.bf16.msra.mxu0 0
    %1770 = vmatprep.subr.bf16.mxu0 0
    %1771 = vmatpush1.bf16.msra.mxu0 0
    %1772 = vmatprep.subr.bf16.mxu0 0
    %1773 = vmatpush1.bf16.msra.mxu0 0
    %1774 = vmatprep.subr.bf16.mxu0 0
    %1775 = vmatpush1.bf16.msra.mxu0 0
    %1776 = vmatprep.subr.bf16.mxu0 0
    %1777 = vmatpush1.bf16.msra.mxu0 0
    %1778 = vmatprep.subr.bf16.mxu0 0
    %1779 = vmatpush1.bf16.msra.mxu0 0
    %1780 = vmatprep.subr.bf16.mxu0 0
    %1781 = vmatpush1.bf16.msra.mxu0 0
    %1782 = vmatprep.subr.bf16.mxu0 0
    %1783 = vmatpush1.bf16.msra.mxu0 0
    %1784 = vmatprep.subr.bf16.mxu0 0
    %1785 = vmatpush1.bf16.msra.mxu0 0
    %1786 = vmatprep.mubr.bf16.mxu0 0
    %1787 = vmatmul.mubr.bf16.gmra.mrb[0].mxu0 %v1749
    %v1788 = vpop.f32.mrb[0].mxu0
    %v1789 = vadd.f32 0.0, %v1788
    %v1790 = vpop.f32.mrb[0].mxu0
    %v1791 = vpop.f32.mrb[0].mxu0
    %v1792 = vpop.f32.mrb[0].mxu0
    %1793 = vdwg.mxu0
    %1794 = vrot.lane.b32.xlu0 %v1621, 64
    %v1795 = vpop.permute.xlu0 %1794
    %v1797 = vsel %vm203, %v1745, 0
    %v1800 = vsel %vm331, %v1795, 0
    %1802 = vmatprep.subr.bf16.mxu0 0
    %1803 = vmatpush1.bf16.msra.mxu0 %v1800
    %1804 = vmatprep.subr.bf16.mxu0 0
    %1805 = vmatpush1.bf16.msra.mxu0 0
    %1806 = vmatprep.subr.bf16.mxu0 0
    %1807 = vmatpush1.bf16.msra.mxu0 0
    %1808 = vmatprep.subr.bf16.mxu0 0
    %1809 = vmatpush1.bf16.msra.mxu0 0
    %1810 = vmatprep.subr.bf16.mxu0 0
    %1811 = vmatpush1.bf16.msra.mxu0 0
    %1812 = vmatprep.subr.bf16.mxu0 0
    %1813 = vmatpush1.bf16.msra.mxu0 0
    %1814 = vmatprep.subr.bf16.mxu0 0
    %1815 = vmatpush1.bf16.msra.mxu0 0
    %1816 = vmatprep.subr.bf16.mxu0 0
    %1817 = vmatpush1.bf16.msra.mxu0 0
    %1818 = vmatprep.subr.bf16.mxu0 0
    %1819 = vmatpush1.bf16.msra.mxu0 0
    %1820 = vmatprep.subr.bf16.mxu0 0
    %1821 = vmatpush1.bf16.msra.mxu0 0
    %1822 = vmatprep.subr.bf16.mxu0 0
    %1823 = vmatpush1.bf16.msra.mxu0 0
    %1824 = vmatprep.subr.bf16.mxu0 0
    %1825 = vmatpush1.bf16.msra.mxu0 0
    %1826 = vmatprep.subr.bf16.mxu0 0
    %1827 = vmatpush1.bf16.msra.mxu0 0
    %1828 = vmatprep.subr.bf16.mxu0 0
    %1829 = vmatpush1.bf16.msra.mxu0 0
    %1830 = vmatprep.subr.bf16.mxu0 0
    %1831 = vmatpush1.bf16.msra.mxu0 0
    %1832 = vmatprep.subr.bf16.mxu0 0
    %1833 = vmatpush1.bf16.msra.mxu0 0
    %1834 = vmatprep.mubr.bf16.mxu0 0
    %1835 = vmatmul.mubr.bf16.gmra.mrb[0].mxu0 %v1797
    %v1836 = vpop.f32.mrb[0].mxu0
    %v1837 = vadd.f32 0.0, %v1836
    %v1838 = vpop.f32.mrb[0].mxu0
    %v1839 = vpop.f32.mrb[0].mxu0
    %v1840 = vpop.f32.mrb[0].mxu0
    %1841 = vdwg.mxu0
    %v1842 = vpack.c.bf16 %v1837, %v1789
    %1843 = vrot.lane.b32.xlu0 %v1620, 120
    %v1844 = vpop.permute.xlu0 %1843
    %1845 = vrot.lane.b32.xlu0 %v1620, 88
    %v1846 = vpop.permute.xlu0 %1845
    %v1848 = vsel %vm203, %v1844, 0
    %v1851 = vsel %vm203, %v1846, 0
    %1853 = vmatprep.subr.bf16.mxu0 0
    %1854 = vmatpush1.bf16.xpose.msra.mxu0 %v1851
    %1855 = vmatprep.subr.bf16.mxu0 0
    %1856 = vmatpush1.bf16.xpose.msra.mxu0 0
    %1857 = vmatprep.subr.bf16.mxu0 0
    %1858 = vmatpush1.bf16.xpose.msra.mxu0 0
    %1859 = vmatprep.subr.bf16.mxu0 0
    %1860 = vmatpush1.bf16.xpose.msra.mxu0 0
    %1861 = vmatprep.subr.bf16.mxu0 0
    %1862 = vmatpush1.bf16.xpose.msra.mxu0 0
    %1863 = vmatprep.subr.bf16.mxu0 0
    %1864 = vmatpush1.bf16.xpose.msra.mxu0 0
    %1865 = vmatprep.subr.bf16.mxu0 0
    %1866 = vmatpush1.bf16.xpose.msra.mxu0 0
    %1867 = vmatprep.subr.bf16.mxu0 0
    %1868 = vmatpush1.bf16.xpose.msra.mxu0 0
    %1869 = vmatprep.subr.bf16.mxu0 0
    %1870 = vmatpush1.bf16.xpose.msra.mxu0 0
    %1871 = vmatprep.subr.bf16.mxu0 0
    %1872 = vmatpush1.bf16.xpose.msra.mxu0 0
    %1873 = vmatprep.subr.bf16.mxu0 0
    %1874 = vmatpush1.bf16.xpose.msra.mxu0 0
    %1875 = vmatprep.subr.bf16.mxu0 0
    %1876 = vmatpush1.bf16.xpose.msra.mxu0 0
    %1877 = vmatprep.subr.bf16.mxu0 0
    %1878 = vmatpush1.bf16.xpose.msra.mxu0 0
    %1879 = vmatprep.subr.bf16.mxu0 0
    %1880 = vmatpush1.bf16.xpose.msra.mxu0 0
    %1881 = vmatprep.subr.bf16.mxu0 0
    %1882 = vmatpush1.bf16.xpose.msra.mxu0 0
    %1883 = vmatprep.subr.bf16.mxu0 0
    %1884 = vmatpush1.bf16.xpose.msra.mxu0 0
    %1885 = vmatprep.mubr.bf16.mxu0 0
    %1886 = vmatmul.mubr.bf16.gmra.mrb[0].mxu0 %v1848
    %v1887 = vpop.f32.mrb[0].mxu0
    %v1888 = vadd.f32 0.0, %v1887
    %v1889 = vpop.f32.mrb[0].mxu0
    %v1890 = vpop.f32.mrb[0].mxu0
    %v1891 = vpop.f32.mrb[0].mxu0
    %1892 = vdwg.mxu0
    %1893 = vrot.lane.b32.xlu0 %v1621, 120
    %v1894 = vpop.permute.xlu0 %1893
    %1895 = vrot.lane.b32.xlu0 %v1621, 88
    %v1896 = vpop.permute.xlu0 %1895
    %v1898 = vsel %vm203, %v1894, 0
    %v1901 = vsel %vm203, %v1896, 0
    %1903 = vmatprep.subr.bf16.mxu0 0
    %1904 = vmatpush1.bf16.xpose.msra.mxu0 %v1901
    %1905 = vmatprep.subr.bf16.mxu0 0
    %1906 = vmatpush1.bf16.xpose.msra.mxu0 0
    %1907 = vmatprep.subr.bf16.mxu0 0
    %1908 = vmatpush1.bf16.xpose.msra.mxu0 0
    %1909 = vmatprep.subr.bf16.mxu0 0
    %1910 = vmatpush1.bf16.xpose.msra.mxu0 0
    %1911 = vmatprep.subr.bf16.mxu0 0
    %1912 = vmatpush1.bf16.xpose.msra.mxu0 0
    %1913 = vmatprep.subr.bf16.mxu0 0
    %1914 = vmatpush1.bf16.xpose.msra.mxu0 0
    %1915 = vmatprep.subr.bf16.mxu0 0
    %1916 = vmatpush1.bf16.xpose.msra.mxu0 0
    %1917 = vmatprep.subr.bf16.mxu0 0
    %1918 = vmatpush1.bf16.xpose.msra.mxu0 0
    %1919 = vmatprep.subr.bf16.mxu0 0
    %1920 = vmatpush1.bf16.xpose.msra.mxu0 0
    %1921 = vmatprep.subr.bf16.mxu0 0
    %1922 = vmatpush1.bf16.xpose.msra.mxu0 0
    %1923 = vmatprep.subr.bf16.mxu0 0
    %1924 = vmatpush1.bf16.xpose.msra.mxu0 0
    %1925 = vmatprep.subr.bf16.mxu0 0
    %1926 = vmatpush1.bf16.xpose.msra.mxu0 0
    %1927 = vmatprep.subr.bf16.mxu0 0
    %1928 = vmatpush1.bf16.xpose.msra.mxu0 0
    %1929 = vmatprep.subr.bf16.mxu0 0
    %1930 = vmatpush1.bf16.xpose.msra.mxu0 0
    %1931 = vmatprep.subr.bf16.mxu0 0
    %1932 = vmatpush1.bf16.xpose.msra.mxu0 0
    %1933 = vmatprep.subr.bf16.mxu0 0
    %1934 = vmatpush1.bf16.xpose.msra.mxu0 0
    %1935 = vmatprep.mubr.bf16.mxu0 0
    %1936 = vmatmul.mubr.bf16.gmra.mrb[0].mxu0 %v1898
    %v1937 = vpop.f32.mrb[0].mxu0
    %v1938 = vadd.f32 0.0, %v1937
    %v1939 = vpop.f32.mrb[0].mxu0
    %v1940 = vpop.f32.mrb[0].mxu0
    %v1941 = vpop.f32.mrb[0].mxu0
    %1942 = vdwg.mxu0
    %v1943 = vmul.f32 %v1888, 0.35355338
    %v1944 = vmul.f32 %v1938, 0.35355338
    %v1945 = vadd.f32 %v1943, %v86
    %v1946 = vadd.f32 %v1944, %v87
    %v1947 = vsel %vm203, %v1945, -inf
    %1948 = vmax.xlane.f32.xlu0 %v1947
    %v1949 = vpop.xlane.xlu0 %1948
    %v1950 = vsel %vm203, %v1946, -inf
    %1951 = vmax.xlane.f32.xlu0 %v1950
    %v1952 = vpop.xlane.xlu0 %1951
    %v1953 = vsub.f32 %v1945, %v1949
    %v1954 = vsub.f32 %v1946, %v1952
    %v1955 = vmul.f32 %v1953, 1.442695
    %v1956 = vpow.pop %v1955
    %v1957 = vmul.f32 %v1954, 1.442695
    %v1958 = vpow.pop %v1957
    %v1959 = vsel %vm203, %v1956, 0.0
    %1960 = vadd.xlane.f32.xlu0 %v1959
    %v1961 = vpop.xlane.xlu0 %1960
    %v1962 = vsel %vm203, %v1958, 0.0
    %1963 = vadd.xlane.f32.xlu0 %v1962
    %v1964 = vpop.xlane.xlu0 %1963
    %v1965 = vrcp.pop %v1961
    %v1966 = vrcp.pop %v1964
    %v1967 = vmul.f32 %v1956, %v1965
    %v1968 = vmul.f32 %v1958, %v1966
    %v1969 = vpack.c.bf16 %v1967, %v1967
    %v1970 = vpack.c.bf16 %v1968, %v1968
    %1971 = vrot.lane.b32.xlu0 %v1620, 56
    %v1972 = vpop.permute.xlu0 %1971
    %v1974 = vsel %vm203, %v1969, 0
    %v1977 = vsel %vm331, %v1972, 0
    %1979 = vmatprep.subr.bf16.mxu0 0
    %1980 = vmatpush1.bf16.msra.mxu0 %v1977
    %1981 = vmatprep.subr.bf16.mxu0 0
    %1982 = vmatpush1.bf16.msra.mxu0 0
    %1983 = vmatprep.subr.bf16.mxu0 0
    %1984 = vmatpush1.bf16.msra.mxu0 0
    %1985 = vmatprep.subr.bf16.mxu0 0
    %1986 = vmatpush1.bf16.msra.mxu0 0
    %1987 = vmatprep.subr.bf16.mxu0 0
    %1988 = vmatpush1.bf16.msra.mxu0 0
    %1989 = vmatprep.subr.bf16.mxu0 0
    %1990 = vmatpush1.bf16.msra.mxu0 0
    %1991 = vmatprep.subr.bf16.mxu0 0
    %1992 = vmatpush1.bf16.msra.mxu0 0
    %1993 = vmatprep.subr.bf16.mxu0 0
    %1994 = vmatpush1.bf16.msra.mxu0 0
    %1995 = vmatprep.subr.bf16.mxu0 0
    %1996 = vmatpush1.bf16.msra.mxu0 0
    %1997 = vmatprep.subr.bf16.mxu0 0
    %1998 = vmatpush1.bf16.msra.mxu0 0
    %1999 = vmatprep.subr.bf16.mxu0 0
    %2000 = vmatpush1.bf16.msra.mxu0 0
    %2001 = vmatprep.subr.bf16.mxu0 0
    %2002 = vmatpush1.bf16.msra.mxu0 0
    %2003 = vmatprep.subr.bf16.mxu0 0
    %2004 = vmatpush1.bf16.msra.mxu0 0
    %2005 = vmatprep.subr.bf16.mxu0 0
    %2006 = vmatpush1.bf16.msra.mxu0 0
    %2007 = vmatprep.subr.bf16.mxu0 0
    %2008 = vmatpush1.bf16.msra.mxu0 0
    %2009 = vmatprep.subr.bf16.mxu0 0
    %2010 = vmatpush1.bf16.msra.mxu0 0
    %2011 = vmatprep.mubr.bf16.mxu0 0
    %2012 = vmatmul.mubr.bf16.gmra.mrb[0].mxu0 %v1974
    %v2013 = vpop.f32.mrb[0].mxu0
    %v2014 = vadd.f32 0.0, %v2013
    %v2015 = vpop.f32.mrb[0].mxu0
    %v2016 = vpop.f32.mrb[0].mxu0
    %v2017 = vpop.f32.mrb[0].mxu0
    %2018 = vdwg.mxu0
    %2019 = vrot.lane.b32.xlu0 %v1621, 56
    %v2020 = vpop.permute.xlu0 %2019
    %v2022 = vsel %vm203, %v1970, 0
    %v2025 = vsel %vm331, %v2020, 0
    %2027 = vmatprep.subr.bf16.mxu0 0
    %2028 = vmatpush1.bf16.msra.mxu0 %v2025
    %2029 = vmatprep.subr.bf16.mxu0 0
    %2030 = vmatpush1.bf16.msra.mxu0 0
    %2031 = vmatprep.subr.bf16.mxu0 0
    %2032 = vmatpush1.bf16.msra.mxu0 0
    %2033 = vmatprep.subr.bf16.mxu0 0
    %2034 = vmatpush1.bf16.msra.mxu0 0
    %2035 = vmatprep.subr.bf16.mxu0 0
    %2036 = vmatpush1.bf16.msra.mxu0 0
    %2037 = vmatprep.subr.bf16.mxu0 0
    %2038 = vmatpush1.bf16.msra.mxu0 0
    %2039 = vmatprep.subr.bf16.mxu0 0
    %2040 = vmatpush1.bf16.msra.mxu0 0
    %2041 = vmatprep.subr.bf16.mxu0 0
    %2042 = vmatpush1.bf16.msra.mxu0 0
    %2043 = vmatprep.subr.bf16.mxu0 0
    %2044 = vmatpush1.bf16.msra.mxu0 0
    %2045 = vmatprep.subr.bf16.mxu0 0
    %2046 = vmatpush1.bf16.msra.mxu0 0
    %2047 = vmatprep.subr.bf16.mxu0 0
    %2048 = vmatpush1.bf16.msra.mxu0 0
    %2049 = vmatprep.subr.bf16.mxu0 0
    %2050 = vmatpush1.bf16.msra.mxu0 0
    %2051 = vmatprep.subr.bf16.mxu0 0
    %2052 = vmatpush1.bf16.msra.mxu0 0
    %2053 = vmatprep.subr.bf16.mxu0 0
    %2054 = vmatpush1.bf16.msra.mxu0 0
    %2055 = vmatprep.subr.bf16.mxu0 0
    %2056 = vmatpush1.bf16.msra.mxu0 0
    %2057 = vmatprep.subr.bf16.mxu0 0
    %2058 = vmatpush1.bf16.msra.mxu0 0
    %2059 = vmatprep.mubr.bf16.mxu0 0
    %2060 = vmatmul.mubr.bf16.gmra.mrb[0].mxu0 %v2022
    %v2061 = vpop.f32.mrb[0].mxu0
    %v2062 = vadd.f32 0.0, %v2061
    %v2063 = vpop.f32.mrb[0].mxu0
    %v2064 = vpop.f32.mrb[0].mxu0
    %v2065 = vpop.f32.mrb[0].mxu0
    %2066 = vdwg.mxu0
    %v2067 = vpack.c.bf16 %v2062, %v2014
    %v2069 = vsel %vm203, %v2067, 0
    %v2072 = vsel %vm331, %v1614, 0
    %2074 = vmatprep.subr.bf16.mxu0 0
    %2075 = vmatpush1.bf16.msra.mxu0 %v2072
    %2076 = vmatprep.subr.bf16.mxu0 0
    %2077 = vmatpush1.bf16.msra.mxu0 0
    %2078 = vmatprep.subr.bf16.mxu0 0
    %2079 = vmatpush1.bf16.msra.mxu0 0
    %2080 = vmatprep.subr.bf16.mxu0 0
    %2081 = vmatpush1.bf16.msra.mxu0 0
    %2082 = vmatprep.subr.bf16.mxu0 0
    %2083 = vmatpush1.bf16.msra.mxu0 0
    %2084 = vmatprep.subr.bf16.mxu0 0
    %2085 = vmatpush1.bf16.msra.mxu0 0
    %2086 = vmatprep.subr.bf16.mxu0 0
    %2087 = vmatpush1.bf16.msra.mxu0 0
    %2088 = vmatprep.subr.bf16.mxu0 0
    %2089 = vmatpush1.bf16.msra.mxu0 0
    %2090 = vmatprep.subr.bf16.mxu0 0
    %2091 = vmatpush1.bf16.msra.mxu0 0
    %2092 = vmatprep.subr.bf16.mxu0 0
    %2093 = vmatpush1.bf16.msra.mxu0 0
    %2094 = vmatprep.subr.bf16.mxu0 0
    %2095 = vmatpush1.bf16.msra.mxu0 0
    %2096 = vmatprep.subr.bf16.mxu0 0
    %2097 = vmatpush1.bf16.msra.mxu0 0
    %2098 = vmatprep.subr.bf16.mxu0 0
    %2099 = vmatpush1.bf16.msra.mxu0 0
    %2100 = vmatprep.subr.bf16.mxu0 0
    %2101 = vmatpush1.bf16.msra.mxu0 0
    %2102 = vmatprep.subr.bf16.mxu0 0
    %2103 = vmatpush1.bf16.msra.mxu0 0
    %2104 = vmatprep.subr.bf16.mxu0 0
    %2105 = vmatpush1.bf16.msra.mxu0 0
    %2106 = vmatprep.mubr.bf16.mxu0 0
    %2107 = vmatmul.mubr.bf16.gmra.mrb[0].mxu0 %v2069
    %v2108 = vpop.f32.mrb[0].mxu0
    %v2109 = vadd.f32 0.0, %v2108
    %v2110 = vpop.f32.mrb[0].mxu0
    %v2111 = vpop.f32.mrb[0].mxu0
    %v2112 = vadd.f32 0.0, %v2111
    %v2113 = vpop.f32.mrb[0].mxu0
    %2114 = vdwg.mxu0
    %v2116 = vsel %vm203, %v1842, 0
    %v2119 = vsel %vm331, %v1613, 0
    %2121 = vmatprep.subr.bf16.mxu0 0
    %2122 = vmatpush1.bf16.msra.mxu0 %v2119
    %2123 = vmatprep.subr.bf16.mxu0 0
    %2124 = vmatpush1.bf16.msra.mxu0 0
    %2125 = vmatprep.subr.bf16.mxu0 0
    %2126 = vmatpush1.bf16.msra.mxu0 0
    %2127 = vmatprep.subr.bf16.mxu0 0
    %2128 = vmatpush1.bf16.msra.mxu0 0
    %2129 = vmatprep.subr.bf16.mxu0 0
    %2130 = vmatpush1.bf16.msra.mxu0 0
    %2131 = vmatprep.subr.bf16.mxu0 0
    %2132 = vmatpush1.bf16.msra.mxu0 0
    %2133 = vmatprep.subr.bf16.mxu0 0
    %2134 = vmatpush1.bf16.msra.mxu0 0
    %2135 = vmatprep.subr.bf16.mxu0 0
    %2136 = vmatpush1.bf16.msra.mxu0 0
    %2137 = vmatprep.subr.bf16.mxu0 0
    %2138 = vmatpush1.bf16.msra.mxu0 0
    %2139 = vmatprep.subr.bf16.mxu0 0
    %2140 = vmatpush1.bf16.msra.mxu0 0
    %2141 = vmatprep.subr.bf16.mxu0 0
    %2142 = vmatpush1.bf16.msra.mxu0 0
    %2143 = vmatprep.subr.bf16.mxu0 0
    %2144 = vmatpush1.bf16.msra.mxu0 0
    %2145 = vmatprep.subr.bf16.mxu0 0
    %2146 = vmatpush1.bf16.msra.mxu0 0
    %2147 = vmatprep.subr.bf16.mxu0 0
    %2148 = vmatpush1.bf16.msra.mxu0 0
    %2149 = vmatprep.subr.bf16.mxu0 0
    %2150 = vmatpush1.bf16.msra.mxu0 0
    %2151 = vmatprep.subr.bf16.mxu0 0
    %2152 = vmatpush1.bf16.msra.mxu0 0
    %2153 = vmatprep.mubr.bf16.mxu0 0
    %2154 = vmatmul.mubr.bf16.gmra.mrb[0].mxu0 %v2116
    %v2155 = vpop.f32.mrb[0].mxu0
    %v2156 = vadd.f32 %v2109, %v2155
    %v2157 = vpop.f32.mrb[0].mxu0
    %v2158 = vpop.f32.mrb[0].mxu0
    %v2159 = vadd.f32 %v2112, %v2158
    %v2160 = vpop.f32.mrb[0].mxu0
    %2161 = vdwg.mxu0
    %2162 = vrot.lane.b32.xlu0 %v1620, 112
    %v2163 = vpop.permute.xlu0 %2162
    %2164 = vrot.lane.b32.xlu0 %v1620, 80
    %v2165 = vpop.permute.xlu0 %2164
    %v2167 = vsel %vm203, %v2163, 0
    %v2170 = vsel %vm203, %v2165, 0
    %2172 = vmatprep.subr.bf16.mxu0 0
    %2173 = vmatpush1.bf16.xpose.msra.mxu0 %v2170
    %2174 = vmatprep.subr.bf16.mxu0 0
    %2175 = vmatpush1.bf16.xpose.msra.mxu0 0
    %2176 = vmatprep.subr.bf16.mxu0 0
    %2177 = vmatpush1.bf16.xpose.msra.mxu0 0
    %2178 = vmatprep.subr.bf16.mxu0 0
    %2179 = vmatpush1.bf16.xpose.msra.mxu0 0
    %2180 = vmatprep.subr.bf16.mxu0 0
    %2181 = vmatpush1.bf16.xpose.msra.mxu0 0
    %2182 = vmatprep.subr.bf16.mxu0 0
    %2183 = vmatpush1.bf16.xpose.msra.mxu0 0
    %2184 = vmatprep.subr.bf16.mxu0 0
    %2185 = vmatpush1.bf16.xpose.msra.mxu0 0
    %2186 = vmatprep.subr.bf16.mxu0 0
    %2187 = vmatpush1.bf16.xpose.msra.mxu0 0
    %2188 = vmatprep.subr.bf16.mxu0 0
    %2189 = vmatpush1.bf16.xpose.msra.mxu0 0
    %2190 = vmatprep.subr.bf16.mxu0 0
    %2191 = vmatpush1.bf16.xpose.msra.mxu0 0
    %2192 = vmatprep.subr.bf16.mxu0 0
    %2193 = vmatpush1.bf16.xpose.msra.mxu0 0
    %2194 = vmatprep.subr.bf16.mxu0 0
    %2195 = vmatpush1.bf16.xpose.msra.mxu0 0
    %2196 = vmatprep.subr.bf16.mxu0 0
    %2197 = vmatpush1.bf16.xpose.msra.mxu0 0
    %2198 = vmatprep.subr.bf16.mxu0 0
    %2199 = vmatpush1.bf16.xpose.msra.mxu0 0
    %2200 = vmatprep.subr.bf16.mxu0 0
    %2201 = vmatpush1.bf16.xpose.msra.mxu0 0
    %2202 = vmatprep.subr.bf16.mxu0 0
    %2203 = vmatpush1.bf16.xpose.msra.mxu0 0
    %2204 = vmatprep.mubr.bf16.mxu0 0
    %2205 = vmatmul.mubr.bf16.gmra.mrb[0].mxu0 %v2167
    %v2206 = vpop.f32.mrb[0].mxu0
    %v2207 = vadd.f32 0.0, %v2206
    %v2208 = vpop.f32.mrb[0].mxu0
    %v2209 = vpop.f32.mrb[0].mxu0
    %v2210 = vpop.f32.mrb[0].mxu0
    %2211 = vdwg.mxu0
    %2212 = vrot.lane.b32.xlu0 %v1621, 112
    %v2213 = vpop.permute.xlu0 %2212
    %2214 = vrot.lane.b32.xlu0 %v1621, 80
    %v2215 = vpop.permute.xlu0 %2214
    %v2217 = vsel %vm203, %v2213, 0
    %v2220 = vsel %vm203, %v2215, 0
    %2222 = vmatprep.subr.bf16.mxu0 0
    %2223 = vmatpush1.bf16.xpose.msra.mxu0 %v2220
    %2224 = vmatprep.subr.bf16.mxu0 0
    %2225 = vmatpush1.bf16.xpose.msra.mxu0 0
    %2226 = vmatprep.subr.bf16.mxu0 0
    %2227 = vmatpush1.bf16.xpose.msra.mxu0 0
    %2228 = vmatprep.subr.bf16.mxu0 0
    %2229 = vmatpush1.bf16.xpose.msra.mxu0 0
    %2230 = vmatprep.subr.bf16.mxu0 0
    %2231 = vmatpush1.bf16.xpose.msra.mxu0 0
    %2232 = vmatprep.subr.bf16.mxu0 0
    %2233 = vmatpush1.bf16.xpose.msra.mxu0 0
    %2234 = vmatprep.subr.bf16.mxu0 0
    %2235 = vmatpush1.bf16.xpose.msra.mxu0 0
    %2236 = vmatprep.subr.bf16.mxu0 0
    %2237 = vmatpush1.bf16.xpose.msra.mxu0 0
    %2238 = vmatprep.subr.bf16.mxu0 0
    %2239 = vmatpush1.bf16.xpose.msra.mxu0 0
    %2240 = vmatprep.subr.bf16.mxu0 0
    %2241 = vmatpush1.bf16.xpose.msra.mxu0 0
    %2242 = vmatprep.subr.bf16.mxu0 0
    %2243 = vmatpush1.bf16.xpose.msra.mxu0 0
    %2244 = vmatprep.subr.bf16.mxu0 0
    %2245 = vmatpush1.bf16.xpose.msra.mxu0 0
    %2246 = vmatprep.subr.bf16.mxu0 0
    %2247 = vmatpush1.bf16.xpose.msra.mxu0 0
    %2248 = vmatprep.subr.bf16.mxu0 0
    %2249 = vmatpush1.bf16.xpose.msra.mxu0 0
    %2250 = vmatprep.subr.bf16.mxu0 0
    %2251 = vmatpush1.bf16.xpose.msra.mxu0 0
    %2252 = vmatprep.subr.bf16.mxu0 0
    %2253 = vmatpush1.bf16.xpose.msra.mxu0 0
    %2254 = vmatprep.mubr.bf16.mxu0 0
    %2255 = vmatmul.mubr.bf16.gmra.mrb[0].mxu0 %v2217
    %v2256 = vpop.f32.mrb[0].mxu0
    %v2257 = vadd.f32 0.0, %v2256
    %v2258 = vpop.f32.mrb[0].mxu0
    %v2259 = vpop.f32.mrb[0].mxu0
    %v2260 = vpop.f32.mrb[0].mxu0
    %2261 = vdwg.mxu0
    %v2262 = vmul.f32 %v2207, 0.35355338
    %v2263 = vmul.f32 %v2257, 0.35355338
    %v2264 = vadd.f32 %v2262, %v86
    %v2265 = vadd.f32 %v2263, %v87
    %v2266 = vsel %vm203, %v2264, -inf
    %2267 = vmax.xlane.f32.xlu0 %v2266
    %v2268 = vpop.xlane.xlu0 %2267
    %v2269 = vsel %vm203, %v2265, -inf
    %2270 = vmax.xlane.f32.xlu0 %v2269
    %v2271 = vpop.xlane.xlu0 %2270
    %v2272 = vsub.f32 %v2264, %v2268
    %v2273 = vsub.f32 %v2265, %v2271
    %v2274 = vmul.f32 %v2272, 1.442695
    %v2275 = vpow.pop %v2274
    %v2276 = vmul.f32 %v2273, 1.442695
    %v2277 = vpow.pop %v2276
    %v2278 = vsel %vm203, %v2275, 0.0
    %2279 = vadd.xlane.f32.xlu0 %v2278
    %v2280 = vpop.xlane.xlu0 %2279
    %v2281 = vsel %vm203, %v2277, 0.0
    %2282 = vadd.xlane.f32.xlu0 %v2281
    %v2283 = vpop.xlane.xlu0 %2282
    %v2284 = vrcp.pop %v2280
    %v2285 = vrcp.pop %v2283
    %v2286 = vmul.f32 %v2275, %v2284
    %v2287 = vmul.f32 %v2277, %v2285
    %v2288 = vpack.c.bf16 %v2286, %v2286
    %v2289 = vpack.c.bf16 %v2287, %v2287
    %2290 = vrot.lane.b32.xlu0 %v1620, 48
    %v2291 = vpop.permute.xlu0 %2290
    %v2293 = vsel %vm203, %v2288, 0
    %v2296 = vsel %vm331, %v2291, 0
    %2298 = vmatprep.subr.bf16.mxu0 0
    %2299 = vmatpush1.bf16.msra.mxu0 %v2296
    %2300 = vmatprep.subr.bf16.mxu0 0
    %2301 = vmatpush1.bf16.msra.mxu0 0
    %2302 = vmatprep.subr.bf16.mxu0 0
    %2303 = vmatpush1.bf16.msra.mxu0 0
    %2304 = vmatprep.subr.bf16.mxu0 0
    %2305 = vmatpush1.bf16.msra.mxu0 0
    %2306 = vmatprep.subr.bf16.mxu0 0
    %2307 = vmatpush1.bf16.msra.mxu0 0
    %2308 = vmatprep.subr.bf16.mxu0 0
    %2309 = vmatpush1.bf16.msra.mxu0 0
    %2310 = vmatprep.subr.bf16.mxu0 0
    %2311 = vmatpush1.bf16.msra.mxu0 0
    %2312 = vmatprep.subr.bf16.mxu0 0
    %2313 = vmatpush1.bf16.msra.mxu0 0
    %2314 = vmatprep.subr.bf16.mxu0 0
    %2315 = vmatpush1.bf16.msra.mxu0 0
    %2316 = vmatprep.subr.bf16.mxu0 0
    %2317 = vmatpush1.bf16.msra.mxu0 0
    %2318 = vmatprep.subr.bf16.mxu0 0
    %2319 = vmatpush1.bf16.msra.mxu0 0
    %2320 = vmatprep.subr.bf16.mxu0 0
    %2321 = vmatpush1.bf16.msra.mxu0 0
    %2322 = vmatprep.subr.bf16.mxu0 0
    %2323 = vmatpush1.bf16.msra.mxu0 0
    %2324 = vmatprep.subr.bf16.mxu0 0
    %2325 = vmatpush1.bf16.msra.mxu0 0
    %2326 = vmatprep.subr.bf16.mxu0 0
    %2327 = vmatpush1.bf16.msra.mxu0 0
    %2328 = vmatprep.subr.bf16.mxu0 0
    %2329 = vmatpush1.bf16.msra.mxu0 0
    %2330 = vmatprep.mubr.bf16.mxu0 0
    %2331 = vmatmul.mubr.bf16.gmra.mrb[0].mxu0 %v2293
    %v2332 = vpop.f32.mrb[0].mxu0
    %v2333 = vadd.f32 0.0, %v2332
    %v2334 = vpop.f32.mrb[0].mxu0
    %v2335 = vpop.f32.mrb[0].mxu0
    %v2336 = vpop.f32.mrb[0].mxu0
    %2337 = vdwg.mxu0
    %2338 = vrot.lane.b32.xlu0 %v1621, 48
    %v2339 = vpop.permute.xlu0 %2338
    %v2341 = vsel %vm203, %v2289, 0
    %v2344 = vsel %vm331, %v2339, 0
    %2346 = vmatprep.subr.bf16.mxu0 0
    %2347 = vmatpush1.bf16.msra.mxu0 %v2344
    %2348 = vmatprep.subr.bf16.mxu0 0
    %2349 = vmatpush1.bf16.msra.mxu0 0
    %2350 = vmatprep.subr.bf16.mxu0 0
    %2351 = vmatpush1.bf16.msra.mxu0 0
    %2352 = vmatprep.subr.bf16.mxu0 0
    %2353 = vmatpush1.bf16.msra.mxu0 0
    %2354 = vmatprep.subr.bf16.mxu0 0
    %2355 = vmatpush1.bf16.msra.mxu0 0
    %2356 = vmatprep.subr.bf16.mxu0 0
    %2357 = vmatpush1.bf16.msra.mxu0 0
    %2358 = vmatprep.subr.bf16.mxu0 0
    %2359 = vmatpush1.bf16.msra.mxu0 0
    %2360 = vmatprep.subr.bf16.mxu0 0
    %2361 = vmatpush1.bf16.msra.mxu0 0
    %2362 = vmatprep.subr.bf16.mxu0 0
    %2363 = vmatpush1.bf16.msra.mxu0 0
    %2364 = vmatprep.subr.bf16.mxu0 0
    %2365 = vmatpush1.bf16.msra.mxu0 0
    %2366 = vmatprep.subr.bf16.mxu0 0
    %2367 = vmatpush1.bf16.msra.mxu0 0
    %2368 = vmatprep.subr.bf16.mxu0 0
    %2369 = vmatpush1.bf16.msra.mxu0 0
    %2370 = vmatprep.subr.bf16.mxu0 0
    %2371 = vmatpush1.bf16.msra.mxu0 0
    %2372 = vmatprep.subr.bf16.mxu0 0
    %2373 = vmatpush1.bf16.msra.mxu0 0
    %2374 = vmatprep.subr.bf16.mxu0 0
    %2375 = vmatpush1.bf16.msra.mxu0 0
    %2376 = vmatprep.subr.bf16.mxu0 0
    %2377 = vmatpush1.bf16.msra.mxu0 0
    %2378 = vmatprep.mubr.bf16.mxu0 0
    %2379 = vmatmul.mubr.bf16.gmra.mrb[0].mxu0 %v2341
    %v2380 = vpop.f32.mrb[0].mxu0
    %v2381 = vadd.f32 0.0, %v2380
    %v2382 = vpop.f32.mrb[0].mxu0
    %v2383 = vpop.f32.mrb[0].mxu0
    %v2384 = vpop.f32.mrb[0].mxu0
    %2385 = vdwg.mxu0
    %v2386 = vpack.c.bf16 %v2381, %v2333
    %v2388 = vsel %vm203, %v2386, 0
    %v2391 = vsel %vm331, %v1615, 0
    %2393 = vmatprep.subr.bf16.mxu0 0
    %2394 = vmatpush1.bf16.msra.mxu0 %v2391
    %2395 = vmatprep.subr.bf16.mxu0 0
    %2396 = vmatpush1.bf16.msra.mxu0 0
    %2397 = vmatprep.subr.bf16.mxu0 0
    %2398 = vmatpush1.bf16.msra.mxu0 0
    %2399 = vmatprep.subr.bf16.mxu0 0
    %2400 = vmatpush1.bf16.msra.mxu0 0
    %2401 = vmatprep.subr.bf16.mxu0 0
    %2402 = vmatpush1.bf16.msra.mxu0 0
    %2403 = vmatprep.subr.bf16.mxu0 0
    %2404 = vmatpush1.bf16.msra.mxu0 0
    %2405 = vmatprep.subr.bf16.mxu0 0
    %2406 = vmatpush1.bf16.msra.mxu0 0
    %2407 = vmatprep.subr.bf16.mxu0 0
    %2408 = vmatpush1.bf16.msra.mxu0 0
    %2409 = vmatprep.subr.bf16.mxu0 0
    %2410 = vmatpush1.bf16.msra.mxu0 0
    %2411 = vmatprep.subr.bf16.mxu0 0
    %2412 = vmatpush1.bf16.msra.mxu0 0
    %2413 = vmatprep.subr.bf16.mxu0 0
    %2414 = vmatpush1.bf16.msra.mxu0 0
    %2415 = vmatprep.subr.bf16.mxu0 0
    %2416 = vmatpush1.bf16.msra.mxu0 0
    %2417 = vmatprep.subr.bf16.mxu0 0
    %2418 = vmatpush1.bf16.msra.mxu0 0
    %2419 = vmatprep.subr.bf16.mxu0 0
    %2420 = vmatpush1.bf16.msra.mxu0 0
    %2421 = vmatprep.subr.bf16.mxu0 0
    %2422 = vmatpush1.bf16.msra.mxu0 0
    %2423 = vmatprep.subr.bf16.mxu0 0
    %2424 = vmatpush1.bf16.msra.mxu0 0
    %2425 = vmatprep.mubr.bf16.mxu0 0
    %2426 = vmatmul.mubr.bf16.gmra.mrb[0].mxu0 %v2388
    %v2427 = vpop.f32.mrb[0].mxu0
    %v2428 = vadd.f32 0.0, %v2427
    %v2429 = vpop.f32.mrb[0].mxu0
    %v2430 = vpop.f32.mrb[0].mxu0
    %v2431 = vadd.f32 0.0, %v2430
    %v2432 = vpop.f32.mrb[0].mxu0
    %2433 = vdwg.mxu0
    %v2434 = vadd.f32 %v2156, %v2428
    %v2435 = vadd.f32 %v2159, %v2431
    %2436 = vrot.lane.b32.xlu0 %v1620, 104
    %v2437 = vpop.permute.xlu0 %2436
    %2438 = vrot.lane.b32.xlu0 %v1620, 72
    %v2439 = vpop.permute.xlu0 %2438
    %v2441 = vsel %vm203, %v2437, 0
    %v2444 = vsel %vm203, %v2439, 0
    %2446 = vmatprep.subr.bf16.mxu0 0
    %2447 = vmatpush1.bf16.xpose.msra.mxu0 %v2444
    %2448 = vmatprep.subr.bf16.mxu0 0
    %2449 = vmatpush1.bf16.xpose.msra.mxu0 0
    %2450 = vmatprep.subr.bf16.mxu0 0
    %2451 = vmatpush1.bf16.xpose.msra.mxu0 0
    %2452 = vmatprep.subr.bf16.mxu0 0
    %2453 = vmatpush1.bf16.xpose.msra.mxu0 0
    %2454 = vmatprep.subr.bf16.mxu0 0
    %2455 = vmatpush1.bf16.xpose.msra.mxu0 0
    %2456 = vmatprep.subr.bf16.mxu0 0
    %2457 = vmatpush1.bf16.xpose.msra.mxu0 0
    %2458 = vmatprep.subr.bf16.mxu0 0
    %2459 = vmatpush1.bf16.xpose.msra.mxu0 0
    %2460 = vmatprep.subr.bf16.mxu0 0
    %2461 = vmatpush1.bf16.xpose.msra.mxu0 0
    %2462 = vmatprep.subr.bf16.mxu0 0
    %2463 = vmatpush1.bf16.xpose.msra.mxu0 0
    %2464 = vmatprep.subr.bf16.mxu0 0
    %2465 = vmatpush1.bf16.xpose.msra.mxu0 0
    %2466 = vmatprep.subr.bf16.mxu0 0
    %2467 = vmatpush1.bf16.xpose.msra.mxu0 0
    %2468 = vmatprep.subr.bf16.mxu0 0
    %2469 = vmatpush1.bf16.xpose.msra.mxu0 0
    %2470 = vmatprep.subr.bf16.mxu0 0
    %2471 = vmatpush1.bf16.xpose.msra.mxu0 0
    %2472 = vmatprep.subr.bf16.mxu0 0
    %2473 = vmatpush1.bf16.xpose.msra.mxu0 0
    %2474 = vmatprep.subr.bf16.mxu0 0
    %2475 = vmatpush1.bf16.xpose.msra.mxu0 0
    %2476 = vmatprep.subr.bf16.mxu0 0
    %2477 = vmatpush1.bf16.xpose.msra.mxu0 0
    %2478 = vmatprep.mubr.bf16.mxu0 0
    %2479 = vmatmul.mubr.bf16.gmra.mrb[0].mxu0 %v2441
    %v2480 = vpop.f32.mrb[0].mxu0
    %v2481 = vadd.f32 0.0, %v2480
    %v2482 = vpop.f32.mrb[0].mxu0
    %v2483 = vpop.f32.mrb[0].mxu0
    %v2484 = vpop.f32.mrb[0].mxu0
    %2485 = vdwg.mxu0
    %2486 = vrot.lane.b32.xlu0 %v1621, 104
    %v2487 = vpop.permute.xlu0 %2486
    %2488 = vrot.lane.b32.xlu0 %v1621, 72
    %v2489 = vpop.permute.xlu0 %2488
    %v2491 = vsel %vm203, %v2487, 0
    %v2494 = vsel %vm203, %v2489, 0
    %2496 = vmatprep.subr.bf16.mxu0 0
    %2497 = vmatpush1.bf16.xpose.msra.mxu0 %v2494
    %2498 = vmatprep.subr.bf16.mxu0 0
    %2499 = vmatpush1.bf16.xpose.msra.mxu0 0
    %2500 = vmatprep.subr.bf16.mxu0 0
    %2501 = vmatpush1.bf16.xpose.msra.mxu0 0
    %2502 = vmatprep.subr.bf16.mxu0 0
    %2503 = vmatpush1.bf16.xpose.msra.mxu0 0
    %2504 = vmatprep.subr.bf16.mxu0 0
    %2505 = vmatpush1.bf16.xpose.msra.mxu0 0
    %2506 = vmatprep.subr.bf16.mxu0 0
    %2507 = vmatpush1.bf16.xpose.msra.mxu0 0
    %2508 = vmatprep.subr.bf16.mxu0 0
    %2509 = vmatpush1.bf16.xpose.msra.mxu0 0
    %2510 = vmatprep.subr.bf16.mxu0 0
    %2511 = vmatpush1.bf16.xpose.msra.mxu0 0
    %2512 = vmatprep.subr.bf16.mxu0 0
    %2513 = vmatpush1.bf16.xpose.msra.mxu0 0
    %2514 = vmatprep.subr.bf16.mxu0 0
    %2515 = vmatpush1.bf16.xpose.msra.mxu0 0
    %2516 = vmatprep.subr.bf16.mxu0 0
    %2517 = vmatpush1.bf16.xpose.msra.mxu0 0
    %2518 = vmatprep.subr.bf16.mxu0 0
    %2519 = vmatpush1.bf16.xpose.msra.mxu0 0
    %2520 = vmatprep.subr.bf16.mxu0 0
    %2521 = vmatpush1.bf16.xpose.msra.mxu0 0
    %2522 = vmatprep.subr.bf16.mxu0 0
    %2523 = vmatpush1.bf16.xpose.msra.mxu0 0
    %2524 = vmatprep.subr.bf16.mxu0 0
    %2525 = vmatpush1.bf16.xpose.msra.mxu0 0
    %2526 = vmatprep.subr.bf16.mxu0 0
    %2527 = vmatpush1.bf16.xpose.msra.mxu0 0
    %2528 = vmatprep.mubr.bf16.mxu0 0
    %2529 = vmatmul.mubr.bf16.gmra.mrb[0].mxu0 %v2491
    %v2530 = vpop.f32.mrb[0].mxu0
    %v2531 = vadd.f32 0.0, %v2530
    %v2532 = vpop.f32.mrb[0].mxu0
    %v2533 = vpop.f32.mrb[0].mxu0
    %v2534 = vpop.f32.mrb[0].mxu0
    %2535 = vdwg.mxu0
    %v2536 = vmul.f32 %v2481, 0.35355338
    %v2537 = vmul.f32 %v2531, 0.35355338
    %v2538 = vadd.f32 %v2536, %v86
    %v2539 = vadd.f32 %v2537, %v87
    %v2540 = vsel %vm203, %v2538, -inf
    %2541 = vmax.xlane.f32.xlu0 %v2540
    %v2542 = vpop.xlane.xlu0 %2541
    %v2543 = vsel %vm203, %v2539, -inf
    %2544 = vmax.xlane.f32.xlu0 %v2543
    %v2545 = vpop.xlane.xlu0 %2544
    %v2546 = vsub.f32 %v2538, %v2542
    %v2547 = vsub.f32 %v2539, %v2545
    %v2548 = vmul.f32 %v2546, 1.442695
    %v2549 = vpow.pop %v2548
    %v2550 = vmul.f32 %v2547, 1.442695
    %v2551 = vpow.pop %v2550
    %v2552 = vsel %vm203, %v2549, 0.0
    %2553 = vadd.xlane.f32.xlu0 %v2552
    %v2554 = vpop.xlane.xlu0 %2553
    %v2555 = vsel %vm203, %v2551, 0.0
    %2556 = vadd.xlane.f32.xlu0 %v2555
    %v2557 = vpop.xlane.xlu0 %2556
    %v2558 = vrcp.pop %v2554
    %v2559 = vrcp.pop %v2557
    %v2560 = vmul.f32 %v2549, %v2558
    %v2561 = vmul.f32 %v2551, %v2559
    %v2562 = vpack.c.bf16 %v2560, %v2560
    %v2563 = vpack.c.bf16 %v2561, %v2561
    %2564 = vrot.lane.b32.xlu0 %v1620, 40
    %v2565 = vpop.permute.xlu0 %2564
    %v2567 = vsel %vm203, %v2562, 0
    %v2570 = vsel %vm331, %v2565, 0
    %2572 = vmatprep.subr.bf16.mxu0 0
    %2573 = vmatpush1.bf16.msra.mxu0 %v2570
    %2574 = vmatprep.subr.bf16.mxu0 0
    %2575 = vmatpush1.bf16.msra.mxu0 0
    %2576 = vmatprep.subr.bf16.mxu0 0
    %2577 = vmatpush1.bf16.msra.mxu0 0
    %2578 = vmatprep.subr.bf16.mxu0 0
    %2579 = vmatpush1.bf16.msra.mxu0 0
    %2580 = vmatprep.subr.bf16.mxu0 0
    %2581 = vmatpush1.bf16.msra.mxu0 0
    %2582 = vmatprep.subr.bf16.mxu0 0
    %2583 = vmatpush1.bf16.msra.mxu0 0
    %2584 = vmatprep.subr.bf16.mxu0 0
    %2585 = vmatpush1.bf16.msra.mxu0 0
    %2586 = vmatprep.subr.bf16.mxu0 0
    %2587 = vmatpush1.bf16.msra.mxu0 0
    %2588 = vmatprep.subr.bf16.mxu0 0
    %2589 = vmatpush1.bf16.msra.mxu0 0
    %2590 = vmatprep.subr.bf16.mxu0 0
    %2591 = vmatpush1.bf16.msra.mxu0 0
    %2592 = vmatprep.subr.bf16.mxu0 0
    %2593 = vmatpush1.bf16.msra.mxu0 0
    %2594 = vmatprep.subr.bf16.mxu0 0
    %2595 = vmatpush1.bf16.msra.mxu0 0
    %2596 = vmatprep.subr.bf16.mxu0 0
    %2597 = vmatpush1.bf16.msra.mxu0 0
    %2598 = vmatprep.subr.bf16.mxu0 0
    %2599 = vmatpush1.bf16.msra.mxu0 0
    %2600 = vmatprep.subr.bf16.mxu0 0
    %2601 = vmatpush1.bf16.msra.mxu0 0
    %2602 = vmatprep.subr.bf16.mxu0 0
    %2603 = vmatpush1.bf16.msra.mxu0 0
    %2604 = vmatprep.mubr.bf16.mxu0 0
    %2605 = vmatmul.mubr.bf16.gmra.mrb[0].mxu0 %v2567
    %v2606 = vpop.f32.mrb[0].mxu0
    %v2607 = vadd.f32 0.0, %v2606
    %v2608 = vpop.f32.mrb[0].mxu0
    %v2609 = vpop.f32.mrb[0].mxu0
    %v2610 = vpop.f32.mrb[0].mxu0
    %2611 = vdwg.mxu0
    %2612 = vrot.lane.b32.xlu0 %v1621, 40
    %v2613 = vpop.permute.xlu0 %2612
    %v2615 = vsel %vm203, %v2563, 0
    %v2618 = vsel %vm331, %v2613, 0
    %2620 = vmatprep.subr.bf16.mxu0 0
    %2621 = vmatpush1.bf16.msra.mxu0 %v2618
    %2622 = vmatprep.subr.bf16.mxu0 0
    %2623 = vmatpush1.bf16.msra.mxu0 0
    %2624 = vmatprep.subr.bf16.mxu0 0
    %2625 = vmatpush1.bf16.msra.mxu0 0
    %2626 = vmatprep.subr.bf16.mxu0 0
    %2627 = vmatpush1.bf16.msra.mxu0 0
    %2628 = vmatprep.subr.bf16.mxu0 0
    %2629 = vmatpush1.bf16.msra.mxu0 0
    %2630 = vmatprep.subr.bf16.mxu0 0
    %2631 = vmatpush1.bf16.msra.mxu0 0
    %2632 = vmatprep.subr.bf16.mxu0 0
    %2633 = vmatpush1.bf16.msra.mxu0 0
    %2634 = vmatprep.subr.bf16.mxu0 0
    %2635 = vmatpush1.bf16.msra.mxu0 0
    %2636 = vmatprep.subr.bf16.mxu0 0
    %2637 = vmatpush1.bf16.msra.mxu0 0
    %2638 = vmatprep.subr.bf16.mxu0 0
    %2639 = vmatpush1.bf16.msra.mxu0 0
    %2640 = vmatprep.subr.bf16.mxu0 0
    %2641 = vmatpush1.bf16.msra.mxu0 0
    %2642 = vmatprep.subr.bf16.mxu0 0
    %2643 = vmatpush1.bf16.msra.mxu0 0
    %2644 = vmatprep.subr.bf16.mxu0 0
    %2645 = vmatpush1.bf16.msra.mxu0 0
    %2646 = vmatprep.subr.bf16.mxu0 0
    %2647 = vmatpush1.bf16.msra.mxu0 0
    %2648 = vmatprep.subr.bf16.mxu0 0
    %2649 = vmatpush1.bf16.msra.mxu0 0
    %2650 = vmatprep.subr.bf16.mxu0 0
    %2651 = vmatpush1.bf16.msra.mxu0 0
    %2652 = vmatprep.mubr.bf16.mxu0 0
    %2653 = vmatmul.mubr.bf16.gmra.mrb[0].mxu0 %v2615
    %v2654 = vpop.f32.mrb[0].mxu0
    %v2655 = vadd.f32 0.0, %v2654
    %v2656 = vpop.f32.mrb[0].mxu0
    %v2657 = vpop.f32.mrb[0].mxu0
    %v2658 = vpop.f32.mrb[0].mxu0
    %2659 = vdwg.mxu0
    %v2660 = vpack.c.bf16 %v2655, %v2607
    %v2662 = vsel %vm203, %v2660, 0
    %v2665 = vsel %vm331, %v1616, 0
    %2667 = vmatprep.subr.bf16.mxu0 0
    %2668 = vmatpush1.bf16.msra.mxu0 %v2665
    %2669 = vmatprep.subr.bf16.mxu0 0
    %2670 = vmatpush1.bf16.msra.mxu0 0
    %2671 = vmatprep.subr.bf16.mxu0 0
    %2672 = vmatpush1.bf16.msra.mxu0 0
    %2673 = vmatprep.subr.bf16.mxu0 0
    %2674 = vmatpush1.bf16.msra.mxu0 0
    %2675 = vmatprep.subr.bf16.mxu0 0
    %2676 = vmatpush1.bf16.msra.mxu0 0
    %2677 = vmatprep.subr.bf16.mxu0 0
    %2678 = vmatpush1.bf16.msra.mxu0 0
    %2679 = vmatprep.subr.bf16.mxu0 0
    %2680 = vmatpush1.bf16.msra.mxu0 0
    %2681 = vmatprep.subr.bf16.mxu0 0
    %2682 = vmatpush1.bf16.msra.mxu0 0
    %2683 = vmatprep.subr.bf16.mxu0 0
    %2684 = vmatpush1.bf16.msra.mxu0 0
    %2685 = vmatprep.subr.bf16.mxu0 0
    %2686 = vmatpush1.bf16.msra.mxu0 0
    %2687 = vmatprep.subr.bf16.mxu0 0
    %2688 = vmatpush1.bf16.msra.mxu0 0
    %2689 = vmatprep.subr.bf16.mxu0 0
    %2690 = vmatpush1.bf16.msra.mxu0 0
    %2691 = vmatprep.subr.bf16.mxu0 0
    %2692 = vmatpush1.bf16.msra.mxu0 0
    %2693 = vmatprep.subr.bf16.mxu0 0
    %2694 = vmatpush1.bf16.msra.mxu0 0
    %2695 = vmatprep.subr.bf16.mxu0 0
    %2696 = vmatpush1.bf16.msra.mxu0 0
    %2697 = vmatprep.subr.bf16.mxu0 0
    %2698 = vmatpush1.bf16.msra.mxu0 0
    %2699 = vmatprep.mubr.bf16.mxu0 0
    %2700 = vmatmul.mubr.bf16.gmra.mrb[0].mxu0 %v2662
    %v2701 = vpop.f32.mrb[0].mxu0
    %v2702 = vadd.f32 0.0, %v2701
    %v2703 = vpop.f32.mrb[0].mxu0
    %v2704 = vpop.f32.mrb[0].mxu0
    %v2705 = vadd.f32 0.0, %v2704
    %v2706 = vpop.f32.mrb[0].mxu0
    %2707 = vdwg.mxu0
    %v2708 = vadd.f32 %v2434, %v2702
    %v2709 = vadd.f32 %v2435, %v2705
    %v2710 = vadd.f32 %v1507, %v2708
    %v2711 = vadd.f32 %v1508, %v2709
    %v2712 = vld [vmem:[%s6 + $0x1] sm:$0x1]
    %v2713 = vlaneseq
    %v2714 = vshrl.u32 %v2713, 7
    %v2715 = vsub.s32 0, %v2714
    %v2716 = vrot.slane %v2712, %v2715
    %v2717 = vadd.f32 %v2710, %v2716
    %v2718 = vadd.f32 %v2711, %v2716
    %v2719 = vld [vmem:[%s7 + $0x1] sm:$0x1]
    %v2720 = vld [vmem:[%s8 + $0x1] sm:$0x1]
    %v2721 = vsel %vm90, %v2717, 0.0
    %2722 = vadd.xlane.f32.xlu0 %v2721
    %v2723 = vpop.xlane.xlu0 %2722
    %v2724 = vsel %vm90, %v2718, 0.0
    %2725 = vadd.xlane.f32.xlu0 %v2724
    %v2726 = vpop.xlane.xlu0 %2725
    %v2727 = vmul.f32 %v2723, %v97
    %v2728 = vmul.f32 %v2726, %v97
    %v2729 = vsub.f32 %v2717, %v2727
    %v2730 = vsub.f32 %v2718, %v2728
    %v2731 = vmul.f32 %v2729, %v2729
    %v2732 = vmul.f32 %v2730, %v2730
    %v2733 = vsel %vm90, %v2731, 0.0
    %2734 = vadd.xlane.f32.xlu0 %v2733
    %v2735 = vpop.xlane.xlu0 %2734
    %v2736 = vsel %vm90, %v2732, 0.0
    %2737 = vadd.xlane.f32.xlu0 %v2736
    %v2738 = vpop.xlane.xlu0 %2737
    %v2739 = vmul.f32 %v2735, %v97
    %v2740 = vmul.f32 %v2738, %v97
    %v2741 = vadd.f32 %v2739, 1e-05
    %v2742 = vadd.f32 %v2740, 1e-05
    %v2743 = vrsqrt.pop %v2741
    %v2744 = vrsqrt.pop %v2742
    %v2745 = vmul.f32 %v2729, %v2743
    %v2746 = vmul.f32 %v2730, %v2744
    %v2747 = vlaneseq
    %v2748 = vshrl.u32 %v2747, 7
    %v2749 = vsub.s32 0, %v2748
    %v2750 = vrot.slane %v2719, %v2749
    %v2751 = vmul.f32 %v2745, %v2750
    %v2752 = vmul.f32 %v2746, %v2750
    %v2753 = vlaneseq
    %v2754 = vshrl.u32 %v2753, 7
    %v2755 = vsub.s32 0, %v2754
    %v2756 = vrot.slane %v2720, %v2755
    %v2757 = vadd.f32 %v2751, %v2756
    %v2758 = vadd.f32 %v2752, %v2756
    %v2759 = vpack.c.bf16 %v2758, %v2757
    %s2760 = scalar_lea.vmem %s9, 16
    %v2761 = vld [vmem:[%s2760] sm:$0xf]
    %v2762 = vld [vmem:[%s2760 + $0x4] sm:$0xf]
    %v2763 = vld [vmem:[%s2760 + $0x8] sm:$0xf]
    %v2764 = vld [vmem:[%s2760 + $0xc] sm:$0xf]
    %v2765 = vld [vmem:[#allocation5 + $0x1] sm:$0x1]
    %v2766 = vlaneseq
    %v2767 = vshrl.u32 %v2766, 7
    %v2768 = vsub.s32 0, %v2767
    %v2769 = vrot.slane %v2765, %v2768
    %v2774 = vunpack.c.l.b16 %v2761
    %v2775 = vunpack.c.l.b16 %v2762
    %v2776 = vunpack.c.l.b16 %v2763
    %v2777 = vunpack.c.l.b16 %v2764
    %v2778 = vpack.c.b16 %v2775, %v2774
    %v2779 = vpack.c.b16 %v2777, %v2776
    %v2783 = vsel %vm90, %v2759, 0
    %2785 = vmatprep.subr.bf16.mxu0 0
    %2786 = vmatpush1.bf16.msra.mxu0 %v2778
    %2787 = vmatprep.subr.bf16.mxu0 0
    %2788 = vmatpush1.bf16.msra.mxu0 %v2779
    %2789 = vmatprep.subr.bf16.mxu0 0
    %2790 = vmatpush1.bf16.msra.mxu0 0
    %2791 = vmatprep.subr.bf16.mxu0 0
    %2792 = vmatpush1.bf16.msra.mxu0 0
    %2793 = vmatprep.subr.bf16.mxu0 0
    %2794 = vmatpush1.bf16.msra.mxu0 0
    %2795 = vmatprep.subr.bf16.mxu0 0
    %2796 = vmatpush1.bf16.msra.mxu0 0
    %2797 = vmatprep.subr.bf16.mxu0 0
    %2798 = vmatpush1.bf16.msra.mxu0 0
    %2799 = vmatprep.subr.bf16.mxu0 0
    %2800 = vmatpush1.bf16.msra.mxu0 0
    %2801 = vmatprep.subr.bf16.mxu0 0
    %2802 = vmatpush1.bf16.msra.mxu0 0
    %2803 = vmatprep.subr.bf16.mxu0 0
    %2804 = vmatpush1.bf16.msra.mxu0 0
    %2805 = vmatprep.subr.bf16.mxu0 0
    %2806 = vmatpush1.bf16.msra.mxu0 0
    %2807 = vmatprep.subr.bf16.mxu0 0
    %2808 = vmatpush1.bf16.msra.mxu0 0
    %2809 = vmatprep.subr.bf16.mxu0 0
    %2810 = vmatpush1.bf16.msra.mxu0 0
    %2811 = vmatprep.subr.bf16.mxu0 0
    %2812 = vmatpush1.bf16.msra.mxu0 0
    %2813 = vmatprep.subr.bf16.mxu0 0
    %2814 = vmatpush1.bf16.msra.mxu0 0
    %2815 = vmatprep.subr.bf16.mxu0 0
    %2816 = vmatpush1.bf16.msra.mxu0 0
    %2817 = vmatprep.mubr.bf16.mxu0 0
    %2818 = vmatmul.mubr.bf16.gmra.mrb[0].mxu0 %v2783
    %v2819 = vpop.f32.mrb[0].mxu0
    %v2820 = vadd.f32 %v2769, %v2819
    %v2821 = vpop.f32.mrb[0].mxu0
    %v2822 = vpop.f32.mrb[0].mxu0
    %v2823 = vadd.f32 %v2769, %v2822
    %v2824 = vpop.f32.mrb[0].mxu0
    %2825 = vdwg.mxu0
    %v2826 = vmul.f32 %v2820, 0.5
    %v2827 = vmul.f32 %v2823, 0.5
    %v2828 = vmul.f32 %v2820, 0.044715
    %v2829 = vmul.f32 %v2823, 0.044715
    %v2830 = vmul.f32 %v2828, %v2820
    %v2831 = vmul.f32 %v2829, %v2823
    %v2832 = vmul.f32 %v2830, %v2820
    %v2833 = vmul.f32 %v2831, %v2823
    %v2834 = vadd.f32 %v2820, %v2832
    %v2835 = vadd.f32 %v2823, %v2833
    %v2836 = vmul.f32 %v2834, 0.7978846
    %v2837 = vmul.f32 %v2835, 0.7978846
    %v2838 = vtanh.pop %v2836
    %v2839 = vtanh.pop %v2837
    %v2840 = vadd.f32 %v2838, 1.0
    %v2841 = vadd.f32 %v2839, 1.0
    %v2842 = vmul.f32 %v2826, %v2840
    %v2843 = vmul.f32 %v2827, %v2841
    %v2844 = vpack.c.bf16 %v2843, %v2842
    %s2845 = scalar_lea.vmem %s11, 32
    %v2846 = vld [vmem:[%s2845] sm:$0xf]
    %v2847 = vld [vmem:[%s2845 + $0x4] sm:$0xf]
    %v2848 = vld [vmem:[%s2845 + $0x8] sm:$0xf]
    %v2849 = vld [vmem:[%s2845 + $0xc] sm:$0xf]
    %v2850 = vld [vmem:[%s2845 + $0x10] sm:$0xf]
    %v2851 = vld [vmem:[%s2845 + $0x14] sm:$0xf]
    %v2852 = vld [vmem:[%s2845 + $0x18] sm:$0xf]
    %v2853 = vld [vmem:[%s2845 + $0x1c] sm:$0xf]
    %v2854 = vld [vmem:[%s12 + $0x1] sm:$0x1]
    %v2855 = vlaneseq
    %v2856 = vshrl.u32 %v2855, 7
    %v2857 = vsub.s32 0, %v2856
    %v2858 = vrot.slane %v2854, %v2857
    %v2867 = vunpack.c.l.b16 %v2846
    %v2868 = vunpack.c.l.b16 %v2847
    %v2869 = vunpack.c.l.b16 %v2848
    %v2870 = vunpack.c.l.b16 %v2849
    %v2871 = vunpack.c.l.b16 %v2850
    %v2872 = vunpack.c.l.b16 %v2851
    %v2873 = vunpack.c.l.b16 %v2852
    %v2874 = vunpack.c.l.b16 %v2853
    %v2875 = vpack.c.b16 %v2868, %v2867
    %v2876 = vpack.c.b16 %v2870, %v2869
    %v2877 = vpack.c.b16 %v2872, %v2871
    %v2878 = vpack.c.b16 %v2874, %v2873
    %v2884 = vsel %vm1462, %v2844, 0
    %2886 = vmatprep.subr.bf16.mxu0 0
    %2887 = vmatpush1.bf16.msra.mxu0 %v2875
    %2888 = vmatprep.subr.bf16.mxu0 0
    %2889 = vmatpush1.bf16.msra.mxu0 %v2876
    %2890 = vmatprep.subr.bf16.mxu0 0
    %2891 = vmatpush1.bf16.msra.mxu0 %v2877
    %2892 = vmatprep.subr.bf16.mxu0 0
    %2893 = vmatpush1.bf16.msra.mxu0 %v2878
    %2894 = vmatprep.subr.bf16.mxu0 0
    %2895 = vmatpush1.bf16.msra.mxu0 0
    %2896 = vmatprep.subr.bf16.mxu0 0
    %2897 = vmatpush1.bf16.msra.mxu0 0
    %2898 = vmatprep.subr.bf16.mxu0 0
    %2899 = vmatpush1.bf16.msra.mxu0 0
    %2900 = vmatprep.subr.bf16.mxu0 0
    %2901 = vmatpush1.bf16.msra.mxu0 0
    %2902 = vmatprep.subr.bf16.mxu0 0
    %2903 = vmatpush1.bf16.msra.mxu0 0
    %2904 = vmatprep.subr.bf16.mxu0 0
    %2905 = vmatpush1.bf16.msra.mxu0 0
    %2906 = vmatprep.subr.bf16.mxu0 0
    %2907 = vmatpush1.bf16.msra.mxu0 0
    %2908 = vmatprep.subr.bf16.mxu0 0
    %2909 = vmatpush1.bf16.msra.mxu0 0
    %2910 = vmatprep.subr.bf16.mxu0 0
    %2911 = vmatpush1.bf16.msra.mxu0 0
    %2912 = vmatprep.subr.bf16.mxu0 0
    %2913 = vmatpush1.bf16.msra.mxu0 0
    %2914 = vmatprep.subr.bf16.mxu0 0
    %2915 = vmatpush1.bf16.msra.mxu0 0
    %2916 = vmatprep.subr.bf16.mxu0 0
    %2917 = vmatpush1.bf16.msra.mxu0 0
    %2918 = vmatprep.mubr.bf16.mxu0 0
    %2919 = vmatmul.mubr.bf16.gmra.mrb[0].mxu0 %v2884
    %v2920 = vpop.f32.mrb[0].mxu0
    %v2921 = vadd.f32 %v2858, %v2920
    %v2922 = vpop.f32.mrb[0].mxu0
    %v2923 = vpop.f32.mrb[0].mxu0
    %v2924 = vadd.f32 %v2858, %v2923
    %v2925 = vpop.f32.mrb[0].mxu0
    %2926 = vdwg.mxu0
    %v2927 = vadd.f32 %v2717, %v2921
    %v2928 = vadd.f32 %v2718, %v2924
    %v2929 = vld [vmem:[%s13] sm:$0x1]
    %v2930 = vld [vmem:[%s14] sm:$0x1]
    %v2933 = vrot.slane %v2928, 7
    %vm2934 = vcmask 1041409
    %v2935 = vsel %vm2934, %v2933, %v2927
    %vm2937 = vcmask 254976
    %v2938 = vsel %vm2937, %v2935, 0.0
    %2939 = vadd.xlane.f32.xlu0 %v2938
    %v2940 = vpop.xlane.xlu0 %2939
    %v2941 = vmul.f32 %v2940, %v97
    %v2943 = vrot.slane %v2941, 1
    %v2946 = vsub.f32 %v2927, %v2941
    %v2947 = vsub.f32 %v2928, %v2943
    %v2948 = vmul.f32 %v2946, %v2946
    %v2949 = vmul.f32 %v2947, %v2947
    %v2952 = vrot.slane %v2949, 7
    %v2953 = vsel %vm2934, %v2952, %v2948
    %v2955 = vsel %vm2937, %v2953, 0.0
    %2956 = vadd.xlane.f32.xlu0 %v2955
    %v2957 = vpop.xlane.xlu0 %2956
    %v2958 = vmul.f32 %v2957, %v97
    %v2959 = vadd.f32 %v2958, 1e-05
    %v2960 = vrsqrt.pop %v2959
    %v2962 = vrot.slane %v2960, 1
    %v2965 = vmul.f32 %v2946, %v2960
    %v2966 = vmul.f32 %v2947, %v2962
    %v2968 = vlaneseq
    %v2969 = vshrl.u32 %v2968, 7
    %v2970 = vsub.s32 0, %v2969
    %v2971 = vrot.slane %v2929, %v2970
    %v2973 = vmul.f32 %v2965, %v2971
    %v2974 = vmul.f32 %v2966, %v2971
    %v2976 = vlaneseq
    %v2977 = vshrl.u32 %v2976, 7
    %v2978 = vsub.s32 0, %v2977
    %v2979 = vrot.slane %v2930, %v2978
    %v2981 = vadd.f32 %v2973, %v2979
    %v2982 = vadd.f32 %v2974, %v2979
    %v2983 = vpack.c.bf16 %v2981, %v2981
    %v2984 = vpack.c.bf16 %v2982, %v2982
    %v2985 = vld [vmem:[%s15] sm:$0xf]
    %v2986 = vld [vmem:[%s15 + $0x4] sm:$0xf]
    %v2987 = vld [vmem:[%s15 + $0x8] sm:$0xf]
    %v2988 = vld [vmem:[%s15 + $0xc] sm:$0xf]
    %v2989 = vld [vmem:[%s16] sm:$0x1]
    %v2991 = vlaneseq
    %v2992 = vshrl.u32 %v2991, 7
    %v2993 = vsub.s32 0, %v2992
    %v2994 = vrot.slane %v2989, %v2993
    %v2998 = vunpack.c.l.b16 %v2983
    %v2999 = vunpack.c.l.b16 %v2984
    %v3000 = vrot.slane %v2999, 7
    %v3001 = vsel %vm2934, %v3000, %v2998
    %v3002 = vpack.c.b16 %v3001, %v3001
    %v3007 = vunpack.c.l.b16 %v2985
    %v3008 = vunpack.c.l.b16 %v2986
    %v3009 = vunpack.c.l.b16 %v2987
    %v3010 = vunpack.c.l.b16 %v2988
    %v3011 = vpack.c.b16 %v3008, %v3007
    %v3012 = vpack.c.b16 %v3010, %v3009
    %v3016 = vsel %vm90, %v3002, 0
    %3018 = vmatprep.subr.bf16.mxu0 0
    %3019 = vmatpush1.bf16.msra.mxu0 %v3011
    %3020 = vmatprep.subr.bf16.mxu0 0
    %3021 = vmatpush1.bf16.msra.mxu0 %v3012
    %3022 = vmatprep.subr.bf16.mxu0 0
    %3023 = vmatpush1.bf16.msra.mxu0 0
    %3024 = vmatprep.subr.bf16.mxu0 0
    %3025 = vmatpush1.bf16.msra.mxu0 0
    %3026 = vmatprep.subr.bf16.mxu0 0
    %3027 = vmatpush1.bf16.msra.mxu0 0
    %3028 = vmatprep.subr.bf16.mxu0 0
    %3029 = vmatpush1.bf16.msra.mxu0 0
    %3030 = vmatprep.subr.bf16.mxu0 0
    %3031 = vmatpush1.bf16.msra.mxu0 0
    %3032 = vmatprep.subr.bf16.mxu0 0
    %3033 = vmatpush1.bf16.msra.mxu0 0
    %3034 = vmatprep.subr.bf16.mxu0 0
    %3035 = vmatpush1.bf16.msra.mxu0 0
    %3036 = vmatprep.subr.bf16.mxu0 0
    %3037 = vmatpush1.bf16.msra.mxu0 0
    %3038 = vmatprep.subr.bf16.mxu0 0
    %3039 = vmatpush1.bf16.msra.mxu0 0
    %3040 = vmatprep.subr.bf16.mxu0 0
    %3041 = vmatpush1.bf16.msra.mxu0 0
    %3042 = vmatprep.subr.bf16.mxu0 0
    %3043 = vmatpush1.bf16.msra.mxu0 0
    %3044 = vmatprep.subr.bf16.mxu0 0
    %3045 = vmatpush1.bf16.msra.mxu0 0
    %3046 = vmatprep.subr.bf16.mxu0 0
    %3047 = vmatpush1.bf16.msra.mxu0 0
    %3048 = vmatprep.subr.bf16.mxu0 0
    %3049 = vmatpush1.bf16.msra.mxu0 0
    %3050 = vmatprep.mubr.bf16.mxu0 0
    %3051 = vmatmul.mubr.bf16.gmra.mrb[0].mxu0 %v3016
    %v3052 = vpop.f32.mrb[0].mxu0
    %v3053 = vadd.f32 %v2994, %v3052
    %v3054 = vpop.f32.mrb[0].mxu0
    %v3055 = vpop.f32.mrb[0].mxu0
    %v3056 = vpop.f32.mrb[0].mxu0
    %3057 = vdwg.mxu0
    %vm3058 = vcmask 25600
    %3059 = vst.msk [vmem:[#allocation7] sm:$0x3] %vm3058, %v3053
    // Predicated region
    $region78: #{tpu_custom_call.1} parent=1 // pred_check
      _
    $region79: #{tpu_custom_call.1} parent=1 // pred_check_branch
      %3061 = sbr.rel (0) target = $region81
    $region80: #{tpu_custom_call.1} parent=1 // pred_region
      %s3063 = ssub.s32 32, 32
      %3064 = vsyncadd [#allocation4], %s3063
      %s3066 = sshll.u32 [#allocation7], 4
      %s3067 = int_to_ptr.vmem [resolvable:$true] %s3066
      %3069 = dma.vmem_to_hbm [thread:$0]  %s3067, 32, %s17, [#allocation4]
    $region81: #{tpu_custom_call.1} parent=1 // pred_fallthru
      _
    // Predicated region
    $region82: #{tpu_custom_call.1} parent=1 // pred_check
      _
    $region83: #{tpu_custom_call.1} parent=1 // pred_check_branch
      %3071 = sbr.rel (0) target = $region85
    $region84: #{tpu_custom_call.1} parent=1 // pred_region
      %3072 = dma.done [#allocation4], 32
    $region85: #{tpu_custom_call.1} parent=1 // pred_fallthru
      _
    %3073 = vsyncpa [#allocation3], 1
    %3074 = vsyncpa [#allocation6], 1
    %3075 = vsyncpa [#allocation4], 1

</llo_original>
